<compile_context>
chip_gen: v7x
topology: tpu7x:2x2x1
jax: 0.10.0
libtpu: 0.0.40
codegen_flags: <defaults>
</compile_context>

<pallas_src>
from functools import partial

import jax
import jax.numpy as jnp
from jax import lax
from jax.experimental import pallas as pl
from jax.experimental.pallas import tpu as pltpu

EXPANSION = 4
BN_EPS = 1e-5
LANE = 128


def _round_up(x, m):
    return (x + m - 1) // m * m


# ----------------------------- Pallas kernel ------------------------------- #
def _make_bottleneck_kernel(conv2_single_matmul):
    def kernel(x_ref, w1_ref, b1_ref, w2_ref, b2_ref, w3_ref, b3_ref,
               o_ref, *scratch):
        if conv2_single_matmul:
            h1p_ref, slab_ref = scratch
        else:
            (h1p_ref,) = scratch

        _, H, W, C = x_ref.shape
        P = w1_ref.shape[1]
        HW = H * W

        # conv1 (1x1, BN1 scale pre-folded into w1) + bias + ReLU.
        xb = x_ref[...].reshape(HW, C).astype(jnp.bfloat16)
        h1 = jnp.dot(xb, w1_ref[...], preferred_element_type=jnp.float32)
        h1 = jnp.maximum(h1 + b1_ref[...], 0.0)
        h1 = h1.astype(jnp.bfloat16).reshape(H, W, P)

        # Circular pad=1 into VMEM scratch: interior store + 4 wrap strips
        # (no full-size concatenate copies).
        h1p_ref[1:H + 1, 1:W + 1, :] = h1
        h1p_ref[0:1, 1:W + 1, :] = h1[H - 1:H]
        h1p_ref[H + 1:H + 2, 1:W + 1, :] = h1[0:1]
        h1p_ref[:, 0:1, :] = h1p_ref[:, W:W + 1, :]          # left  <- wrapped right col
        h1p_ref[:, W + 1:W + 2, :] = h1p_ref[:, 1:2, :]      # right <- wrapped left col

        # conv2 (3x3, circular, stride=1).
        if conv2_single_matmul:
            # im2col taps written straight into the slab scratch columns
            # (no tap temporaries, no concat); single K=9P MXU matmul.
            for k in range(9):
                dy, dx = divmod(k, 3)
                slab_ref[:, k * P:(k + 1) * P] = (
                    h1p_ref[dy:dy + H, dx:dx + W, :].reshape(HW, P))
            h2 = jnp.dot(slab_ref[...], w2_ref[...],
                         preferred_element_type=jnp.float32)
        else:
            # v5e-friendly: 9 accumulating K=P matmuls, no slab materialized.
            h2 = jnp.zeros((HW, P), jnp.float32)
            for k in range(9):
                dy, dx = divmod(k, 3)
                tap = h1p_ref[dy:dy + H, dx:dx + W, :].reshape(HW, P)
                h2 = h2 + jnp.dot(tap, w2_ref[k * P:(k + 1) * P, :],
                                  preferred_element_type=jnp.float32)
        h2 = jnp.maximum(h2 + b2_ref[...], 0.0).astype(jnp.bfloat16)

        # conv3 (1x1, BN3 scale pre-folded) + bias.
        h3 = jnp.dot(h2, w3_ref[...], preferred_element_type=jnp.float32)
        h3 = h3 + b3_ref[...]

        # Residual add (downsample=None, endRelu=False): re-read x from the
        # live VMEM block, no f32 copy held across the matmuls.
        out = h3 + x_ref[...].reshape(HW, C).astype(jnp.float32)
        o_ref[...] = out.reshape(1, H, W, C).astype(o_ref.dtype)

    return kernel


# ------------------------------- pallas_call -------------------------------- #
def bottleneck_pallas_nhwc(x_nhwc, p, *, true_cin=None, true_planes=None,
                           conv2_single_matmul=True):
    """x_nhwc: (N, H, W, Cp) lane-padded NHWC; p: padded/folded params."""
    N, H, W, Cp = x_nhwc.shape
    Pp = p["w1"].shape[1]
    cin = true_cin if true_cin is not None else Cp
    pch = true_planes if true_planes is not None else Pp

    # FLOPs from UNPADDED dims (avoid up-to-32x padded inflation misleading
    # the XLA scheduler); bytes from what actually crosses HBM.
    flops = 2 * N * H * W * (cin * pch + 9 * pch * pch + pch * cin) + N * H * W * cin
    weight_bytes = sum(int(p[k].size) * p[k].dtype.itemsize
                       for k in ("w1", "w2", "w3", "b1", "b2", "b3"))
    bytes_accessed = 2 * N * H * W * Cp * x_nhwc.dtype.itemsize + weight_bytes

    # Explicit VMEM budget: double-buffered activation blocks + (default
    # double-buffered) resident weights + scratches, with headroom; clamped to
    # v7x's 64 MiB physical per-TC VMEM.
    block_bytes = H * W * Cp * x_nhwc.dtype.itemsize
    scratch_bytes = (H + 2) * (W + 2) * Pp * 2
    if conv2_single_matmul:
        scratch_bytes += H * W * 9 * Pp * 2
    vmem_est = 2 * (2 * block_bytes) + 2 * weight_bytes + scratch_bytes
    vmem_limit = int(min(max(2 * vmem_est + (8 << 20), 32 << 20), 64 << 20))

    def resident(shape):
        # Constant index_map -> fetched once, stays resident across the grid.
        return pl.BlockSpec(shape, lambda n: (0,) * len(shape))

    scratch_shapes = [pltpu.VMEM((H + 2, W + 2, Pp), jnp.bfloat16)]
    if conv2_single_matmul:
        scratch_shapes.append(pltpu.VMEM((H * W, 9 * Pp), jnp.bfloat16))

    return pl.pallas_call(
        _make_bottleneck_kernel(conv2_single_matmul),
        out_shape=jax.ShapeDtypeStruct((N, H, W, Cp), x_nhwc.dtype),
        grid=(N,),
        in_specs=[
            pl.BlockSpec((1, H, W, Cp), lambda n: (n, 0, 0, 0)),
            resident(p["w1"].shape), resident(p["b1"].shape),
            resident(p["w2"].shape), resident(p["b2"].shape),
            resident(p["w3"].shape), resident(p["b3"].shape),
        ],
        out_specs=pl.BlockSpec((1, H, W, Cp), lambda n: (n, 0, 0, 0)),
        scratch_shapes=scratch_shapes,
        compiler_params=pltpu.CompilerParams(
            dimension_semantics=("parallel",),      # megacore sharding on v7x
            vmem_limit_bytes=vmem_limit),
        cost_estimate=pl.CostEstimate(flops=flops, transcendentals=0,
                                      bytes_accessed=bytes_accessed),
    )(x_nhwc, p["w1"], p["b1"], p["w2"], p["b2"], p["w3"], p["b3"])


# -------------------------- Parameter construction ------------------------- #
def fold_bn(gamma, beta, mean, var):
    scale = gamma / jnp.sqrt(var + BN_EPS)
    bias = beta - mean * scale
    return scale, bias


def make_params(key, inplanes, planes):
    """Unpadded f32 parameters mirroring the PyTorch module (inference BN)."""
    cout = planes * EXPANSION
    assert cout == inplanes, "identity add requires inplanes == planes * 4"
    ks = jax.random.split(key, 15)

    def bn(k0, k1, k2, k3, c):
        gamma = jax.random.uniform(k0, (c,), jnp.float32, 0.5, 1.5)
        beta = 0.1 * jax.random.normal(k1, (c,), jnp.float32)
        mean = 0.1 * jax.random.normal(k2, (c,), jnp.float32)
        var = jax.random.uniform(k3, (c,), jnp.float32, 0.5, 1.5)
        return fold_bn(gamma, beta, mean, var)

    w1 = 0.2 * jax.random.normal(ks[0], (inplanes, planes), jnp.float32)      # 1x1 (Cin, P)
    w2 = 0.2 * jax.random.normal(ks[1], (3, 3, planes, planes), jnp.float32)  # 3x3 HWIO
    w3 = 0.2 * jax.random.normal(ks[2], (planes, cout), jnp.float32)          # 1x1 (P, Cout)
    s1, b1 = bn(ks[3], ks[4], ks[5], ks[6], planes)
    s2, b2 = bn(ks[7], ks[8], ks[9], ks[10], planes)
    s3, b3 = bn(ks[11], ks[12], ks[13], ks[14], cout)
    return dict(w1=w1, s1=s1, b1=b1, w2=w2, s2=s2, b2=b2, w3=w3, s3=s3, b3=b3)


def pad_params(p):
    """Fold BN scales into conv weights (f32), zero-pad channel dims to the
    128-lane width, reshape w2 to (9P, P) for the im2col matmul, cast weights
    to bf16 (MXU-native).  Folded BN biases stay f32."""
    cin, pch = p["w1"].shape
    cinp, pp = _round_up(cin, LANE), _round_up(pch, LANE)

    # BN scale folded into the output-channel axis of each conv weight.
    w1 = p["w1"] * p["s1"][None, :]
    w2 = p["w2"] * p["s2"]                     # (3,3,P,P) * (P,) -> out channel
    w3 = p["w3"] * p["s3"][None, :]

    def padc(a, axis, to):
        pads = [(0, 0)] * a.ndim
        pads[axis] = (0, to - a.shape[axis])
        return jnp.pad(a, pads)

    w1 = padc(padc(w1, 0, cinp), 1, pp).astype(jnp.bfloat16)
    w2 = padc(padc(w2, 2, pp), 3, pp).reshape(9 * pp, pp).astype(jnp.bfloat16)
    w3 = padc(padc(w3, 0, pp), 1, cinp).astype(jnp.bfloat16)
    row = lambda v, to: padc(v, 0, to).reshape(1, to).astype(jnp.float32)
    return dict(w1=w1, b1=row(p["b1"], pp),
                w2=w2, b2=row(p["b2"], pp),
                w3=w3, b3=row(p["b3"], cinp))


# ------------------------------ Module wrapper ------------------------------ #
@partial(jax.jit, static_argnames=("cin", "planes"))
def _forward_one(x_nchw, padded_params, cin, planes):
    # Boundary transpose / lane-pad / slice are fused by XLA inside this jit.
    cinp = padded_params["w1"].shape[0]
    x_nhwc = jnp.transpose(x_nchw, (0, 2, 3, 1))
    x_nhwc = jnp.pad(x_nhwc, ((0, 0), (0, 0), (0, 0), (0, cinp - cin)))
    y_nhwc = bottleneck_pallas_nhwc(x_nhwc, padded_params,
                                    true_cin=cin, true_planes=planes)
    return jnp.transpose(y_nhwc[..., :cin], (0, 3, 1, 2))


def bottleneck_forward(inp_dict, padded_params, cin, planes):
    """Mirrors Bottleneck.forward (stride=1, downsample=None, endRelu=False):
    dict of NCHW tensors in, dict out.  For chained blocks, call
    bottleneck_pallas_nhwc directly and keep activations NHWC + lane-padded so
    the boundary transposes/pads disappear from the hot path."""
    return {k: _forward_one(x, padded_params, cin=cin, planes=planes)
            for k, x in inp_dict.items()}


# ----------------------------- Pure-JAX reference --------------------------- #
def reference_nhwc(x, p):
    """Same bf16-fed, BN-scale-folded computation, via XLA ops."""
    bf = jnp.bfloat16
    w1 = (p["w1"] * p["s1"][None, :]).astype(bf)
    w2 = (p["w2"] * p["s2"]).astype(bf)
    w3 = (p["w3"] * p["s3"][None, :]).astype(bf)
    h1 = jnp.einsum("nhwc,cp->nhwp", x.astype(bf), w1,
                    preferred_element_type=jnp.float32)
    h1 = jnp.maximum(h1 + p["b1"], 0.0)
    h1p = jnp.pad(h1.astype(bf), ((0, 0), (1, 1), (1, 1), (0, 0)), mode="wrap")
    h2 = lax.conv_general_dilated(h1p, w2, (1, 1), "VALID",
                                  dimension_numbers=("NHWC", "HWIO", "NHWC"),
                                  preferred_element_type=jnp.float32)
    h2 = jnp.maximum(h2 + p["b2"], 0.0)
    h3 = jnp.einsum("nhwp,pc->nhwc", h2.astype(bf), w3,
                    preferred_element_type=jnp.float32)
    h3 = h3 + p["b3"]
    return h3 + x


# ----------------------------------- main ----------------------------------- #
if __name__ == "__main__":
    key = jax.random.PRNGKey(0)
    k_x, k_p = jax.random.split(key)

    batch, inplanes, planes, hw = 2, 16, 4, 16   # inplanes == planes * expansion
    x = jax.random.normal(k_x, (batch, inplanes, hw, hw), jnp.float32)  # NCHW
    params = make_params(k_p, inplanes, planes)
    pparams = pad_params(params)

    out = bottleneck_forward({"0": x}, pparams, inplanes, planes)
    out = jax.block_until_ready(out)

    # Sanity check against a pure-JAX reference (same bf16-fed, folded matmuls).
    ref = reference_nhwc(jnp.transpose(x, (0, 2, 3, 1)), params)
    ref = jnp.transpose(ref, (0, 3, 1, 2))
    assert out["0"].shape == (batch, planes * EXPANSION, hw, hw)
    err = float(jnp.max(jnp.abs(out["0"] - ref)))
    assert jnp.allclose(out["0"], ref, atol=2e-2, rtol=2e-2), err

    print("KERNEL_OK")
</pallas_src>

<mosaic_0001>
module attributes {stable_mosaic.version = 11 : i64} {
  func.func @kernel(%arg0: i32, %arg1: memref<1x16x16x128xf32, #tpu.memory_space<vmem>>, %arg2: memref<128x128xbf16, #tpu.memory_space<vmem>>, %arg3: memref<1x128xf32, #tpu.memory_space<vmem>>, %arg4: memref<1152x128xbf16, #tpu.memory_space<vmem>>, %arg5: memref<1x128xf32, #tpu.memory_space<vmem>>, %arg6: memref<128x128xbf16, #tpu.memory_space<vmem>>, %arg7: memref<1x128xf32, #tpu.memory_space<vmem>>, %arg8: memref<1x16x16x128xf32, #tpu.memory_space<vmem>>, %arg9: memref<18x18x128xbf16, #tpu.memory_space<vmem>>, %arg10: memref<256x1152xbf16, #tpu.memory_space<vmem>>) attributes {dimension_semantics = [#tpu.dimension_semantics<parallel>], iteration_bounds = array<i64: 2>, scalar_prefetch = 0 : i64, scratch_operands = 2 : i64, tpu.core_type = #tpu.core_type<tc>, window_params = [{transform_indices = @transform_0, window_bounds = array<i64: 1, 16, 16, 128>}, {pipeline_mode = #tpu.pipeline_mode<synchronous>, transform_indices = @transform_1, window_bounds = array<i64: 128, 128>}, {pipeline_mode = #tpu.pipeline_mode<synchronous>, transform_indices = @transform_2, window_bounds = array<i64: 1, 128>}, {pipeline_mode = #tpu.pipeline_mode<synchronous>, transform_indices = @transform_3, window_bounds = array<i64: 1152, 128>}, {pipeline_mode = #tpu.pipeline_mode<synchronous>, transform_indices = @transform_4, window_bounds = array<i64: 1, 128>}, {pipeline_mode = #tpu.pipeline_mode<synchronous>, transform_indices = @transform_5, window_bounds = array<i64: 128, 128>}, {pipeline_mode = #tpu.pipeline_mode<synchronous>, transform_indices = @transform_6, window_bounds = array<i64: 1, 128>}, {transform_indices = @transform_7, window_bounds = array<i64: 1, 16, 16, 128>}]} {
    %c0 = arith.constant 0 : index
    %c0_0 = arith.constant 0 : index
    %c0_1 = arith.constant 0 : index
    %c0_2 = arith.constant 0 : index
    %0 = vector.load %arg1[%c0, %c0_0, %c0_1, %c0_2] : memref<1x16x16x128xf32, #tpu.memory_space<vmem>>, vector<1x16x16x128xf32>
    %1 = vector.shape_cast %0 : vector<1x16x16x128xf32> to vector<256x128xf32>
    %2 = arith.truncf %1 : vector<256x128xf32> to vector<256x128xbf16>
    %c0_3 = arith.constant 0 : index
    %c0_4 = arith.constant 0 : index
    %3 = vector.load %arg2[%c0_3, %c0_4] : memref<128x128xbf16, #tpu.memory_space<vmem>>, vector<128x128xbf16>
    %cst = arith.constant dense<0.000000e+00> : vector<256x128xf32>
    %4 = tpu.matmul %2, %3, %cst {dimension_numbers = #tpu.dot_dimension_numbers<[1], [0], [0], [1], [0, 0, 1, 1], [], []>} : vector<256x128xbf16>, vector<128x128xbf16>, vector<256x128xf32> -> vector<256x128xf32>
    %c0_5 = arith.constant 0 : index
    %c0_6 = arith.constant 0 : index
    %5 = vector.load %arg3[%c0_5, %c0_6] : memref<1x128xf32, #tpu.memory_space<vmem>>, vector<1x128xf32>
    %6 = vector.broadcast %5 : vector<1x128xf32> to vector<256x128xf32>
    %7 = arith.addf %4, %6 : vector<256x128xf32>
    %cst_7 = arith.constant 0.000000e+00 : f32
    %8 = vector.broadcast %cst_7 : f32 to vector<256x128xf32>
    %9 = arith.maximumf %7, %8 : vector<256x128xf32>
    %10 = arith.truncf %9 : vector<256x128xf32> to vector<256x128xbf16>
    %11 = vector.shape_cast %10 : vector<256x128xbf16> to vector<16x16x128xbf16>
    %c1 = arith.constant 1 : index
    %c1_8 = arith.constant 1 : index
    %c0_9 = arith.constant 0 : index
    %12 = vector.load %arg9[%c1, %c1_8, %c0_9] : memref<18x18x128xbf16, #tpu.memory_space<vmem>>, vector<16x16x128xbf16>
    tpu.vector_store %arg9[%c1, %c1_8, %c0_9], %11 {strides = array<i32>} : memref<18x18x128xbf16, #tpu.memory_space<vmem>>, vector<16x16x128xbf16>,
    %13 = vector.extract_strided_slice %11 {offsets = [15, 0, 0], sizes = [1, 16, 128], strides = [1, 1, 1]} : vector<16x16x128xbf16> to vector<1x16x128xbf16>
    %c0_10 = arith.constant 0 : index
    %c1_11 = arith.constant 1 : index
    %c0_12 = arith.constant 0 : index
    %14 = vector.load %arg9[%c0_10, %c1_11, %c0_12] : memref<18x18x128xbf16, #tpu.memory_space<vmem>>, vector<1x16x128xbf16>
    tpu.vector_store %arg9[%c0_10, %c1_11, %c0_12], %13 {strides = array<i32>} : memref<18x18x128xbf16, #tpu.memory_space<vmem>>, vector<1x16x128xbf16>,
    %15 = vector.extract_strided_slice %11 {offsets = [0, 0, 0], sizes = [1, 16, 128], strides = [1, 1, 1]} : vector<16x16x128xbf16> to vector<1x16x128xbf16>
    %c17 = arith.constant 17 : index
    %c1_13 = arith.constant 1 : index
    %c0_14 = arith.constant 0 : index
    %16 = vector.load %arg9[%c17, %c1_13, %c0_14] : memref<18x18x128xbf16, #tpu.memory_space<vmem>>, vector<1x16x128xbf16>
    tpu.vector_store %arg9[%c17, %c1_13, %c0_14], %15 {strides = array<i32>} : memref<18x18x128xbf16, #tpu.memory_space<vmem>>, vector<1x16x128xbf16>,
    %c0_15 = arith.constant 0 : index
    %c16 = arith.constant 16 : index
    %c0_16 = arith.constant 0 : index
    %17 = vector.load %arg9[%c0_15, %c16, %c0_16] : memref<18x18x128xbf16, #tpu.memory_space<vmem>>, vector<18x1x128xbf16>
    %c0_17 = arith.constant 0 : index
    %c0_18 = arith.constant 0 : index
    %c0_19 = arith.constant 0 : index
    %18 = vector.load %arg9[%c0_17, %c0_18, %c0_19] : memref<18x18x128xbf16, #tpu.memory_space<vmem>>, vector<18x1x128xbf16>
    tpu.vector_store %arg9[%c0_17, %c0_18, %c0_19], %17 {strides = array<i32>} : memref<18x18x128xbf16, #tpu.memory_space<vmem>>, vector<18x1x128xbf16>,
    %c0_20 = arith.constant 0 : index
    %c1_21 = arith.constant 1 : index
    %c0_22 = arith.constant 0 : index
    %19 = vector.load %arg9[%c0_20, %c1_21, %c0_22] : memref<18x18x128xbf16, #tpu.memory_space<vmem>>, vector<18x1x128xbf16>
    %c0_23 = arith.constant 0 : index
    %c17_24 = arith.constant 17 : index
    %c0_25 = arith.constant 0 : index
    %20 = vector.load %arg9[%c0_23, %c17_24, %c0_25] : memref<18x18x128xbf16, #tpu.memory_space<vmem>>, vector<18x1x128xbf16>
    tpu.vector_store %arg9[%c0_23, %c17_24, %c0_25], %19 {strides = array<i32>} : memref<18x18x128xbf16, #tpu.memory_space<vmem>>, vector<18x1x128xbf16>,
    %c0_26 = arith.constant 0 : index
    %c0_27 = arith.constant 0 : index
    %c0_28 = arith.constant 0 : index
    %21 = vector.load %arg9[%c0_26, %c0_27, %c0_28] : memref<18x18x128xbf16, #tpu.memory_space<vmem>>, vector<16x16x128xbf16>
    %22 = vector.shape_cast %21 : vector<16x16x128xbf16> to vector<256x128xbf16>
    %c0_29 = arith.constant 0 : index
    %c0_30 = arith.constant 0 : index
    %23 = vector.load %arg10[%c0_29, %c0_30] : memref<256x1152xbf16, #tpu.memory_space<vmem>>, vector<256x128xbf16>
    tpu.vector_store %arg10[%c0_29, %c0_30], %22 {strides = array<i32>} : memref<256x1152xbf16, #tpu.memory_space<vmem>>, vector<256x128xbf16>,
    %c0_31 = arith.constant 0 : index
    %c1_32 = arith.constant 1 : index
    %c0_33 = arith.constant 0 : index
    %24 = vector.load %arg9[%c0_31, %c1_32, %c0_33] : memref<18x18x128xbf16, #tpu.memory_space<vmem>>, vector<16x16x128xbf16>
    %25 = vector.shape_cast %24 : vector<16x16x128xbf16> to vector<256x128xbf16>
    %c0_34 = arith.constant 0 : index
    %c128 = arith.constant 128 : index
    %26 = vector.load %arg10[%c0_34, %c128] : memref<256x1152xbf16, #tpu.memory_space<vmem>>, vector<256x128xbf16>
    tpu.vector_store %arg10[%c0_34, %c128], %25 {strides = array<i32>} : memref<256x1152xbf16, #tpu.memory_space<vmem>>, vector<256x128xbf16>,
    %c0_35 = arith.constant 0 : index
    %c2 = arith.constant 2 : index
    %c0_36 = arith.constant 0 : index
    %27 = vector.load %arg9[%c0_35, %c2, %c0_36] : memref<18x18x128xbf16, #tpu.memory_space<vmem>>, vector<16x16x128xbf16>
    %28 = vector.shape_cast %27 : vector<16x16x128xbf16> to vector<256x128xbf16>
    %c0_37 = arith.constant 0 : index
    %c256 = arith.constant 256 : index
    %29 = vector.load %arg10[%c0_37, %c256] : memref<256x1152xbf16, #tpu.memory_space<vmem>>, vector<256x128xbf16>
    tpu.vector_store %arg10[%c0_37, %c256], %28 {strides = array<i32>} : memref<256x1152xbf16, #tpu.memory_space<vmem>>, vector<256x128xbf16>,
    %c1_38 = arith.constant 1 : index
    %c0_39 = arith.constant 0 : index
    %c0_40 = arith.constant 0 : index
    %30 = vector.load %arg9[%c1_38, %c0_39, %c0_40] : memref<18x18x128xbf16, #tpu.memory_space<vmem>>, vector<16x16x128xbf16>
    %31 = vector.shape_cast %30 : vector<16x16x128xbf16> to vector<256x128xbf16>
    %c0_41 = arith.constant 0 : index
    %c384 = arith.constant 384 : index
    %32 = vector.load %arg10[%c0_41, %c384] : memref<256x1152xbf16, #tpu.memory_space<vmem>>, vector<256x128xbf16>
    tpu.vector_store %arg10[%c0_41, %c384], %31 {strides = array<i32>} : memref<256x1152xbf16, #tpu.memory_space<vmem>>, vector<256x128xbf16>,
    %c1_42 = arith.constant 1 : index
    %c1_43 = arith.constant 1 : index
    %c0_44 = arith.constant 0 : index
    %33 = vector.load %arg9[%c1_42, %c1_43, %c0_44] : memref<18x18x128xbf16, #tpu.memory_space<vmem>>, vector<16x16x128xbf16>
    %34 = vector.shape_cast %33 : vector<16x16x128xbf16> to vector<256x128xbf16>
    %c0_45 = arith.constant 0 : index
    %c512 = arith.constant 512 : index
    %35 = vector.load %arg10[%c0_45, %c512] : memref<256x1152xbf16, #tpu.memory_space<vmem>>, vector<256x128xbf16>
    tpu.vector_store %arg10[%c0_45, %c512], %34 {strides = array<i32>} : memref<256x1152xbf16, #tpu.memory_space<vmem>>, vector<256x128xbf16>,
    %c1_46 = arith.constant 1 : index
    %c2_47 = arith.constant 2 : index
    %c0_48 = arith.constant 0 : index
    %36 = vector.load %arg9[%c1_46, %c2_47, %c0_48] : memref<18x18x128xbf16, #tpu.memory_space<vmem>>, vector<16x16x128xbf16>
    %37 = vector.shape_cast %36 : vector<16x16x128xbf16> to vector<256x128xbf16>
    %c0_49 = arith.constant 0 : index
    %c640 = arith.constant 640 : index
    %38 = vector.load %arg10[%c0_49, %c640] : memref<256x1152xbf16, #tpu.memory_space<vmem>>, vector<256x128xbf16>
    tpu.vector_store %arg10[%c0_49, %c640], %37 {strides = array<i32>} : memref<256x1152xbf16, #tpu.memory_space<vmem>>, vector<256x128xbf16>,
    %c2_50 = arith.constant 2 : index
    %c0_51 = arith.constant 0 : index
    %c0_52 = arith.constant 0 : index
    %39 = vector.load %arg9[%c2_50, %c0_51, %c0_52] : memref<18x18x128xbf16, #tpu.memory_space<vmem>>, vector<16x16x128xbf16>
    %40 = vector.shape_cast %39 : vector<16x16x128xbf16> to vector<256x128xbf16>
    %c0_53 = arith.constant 0 : index
    %c768 = arith.constant 768 : index
    %41 = vector.load %arg10[%c0_53, %c768] : memref<256x1152xbf16, #tpu.memory_space<vmem>>, vector<256x128xbf16>
    tpu.vector_store %arg10[%c0_53, %c768], %40 {strides = array<i32>} : memref<256x1152xbf16, #tpu.memory_space<vmem>>, vector<256x128xbf16>,
    %c2_54 = arith.constant 2 : index
    %c1_55 = arith.constant 1 : index
    %c0_56 = arith.constant 0 : index
    %42 = vector.load %arg9[%c2_54, %c1_55, %c0_56] : memref<18x18x128xbf16, #tpu.memory_space<vmem>>, vector<16x16x128xbf16>
    %43 = vector.shape_cast %42 : vector<16x16x128xbf16> to vector<256x128xbf16>
    %c0_57 = arith.constant 0 : index
    %c896 = arith.constant 896 : index
    %44 = vector.load %arg10[%c0_57, %c896] : memref<256x1152xbf16, #tpu.memory_space<vmem>>, vector<256x128xbf16>
    tpu.vector_store %arg10[%c0_57, %c896], %43 {strides = array<i32>} : memref<256x1152xbf16, #tpu.memory_space<vmem>>, vector<256x128xbf16>,
    %c2_58 = arith.constant 2 : index
    %c2_59 = arith.constant 2 : index
    %c0_60 = arith.constant 0 : index
    %45 = vector.load %arg9[%c2_58, %c2_59, %c0_60] : memref<18x18x128xbf16, #tpu.memory_space<vmem>>, vector<16x16x128xbf16>
    %46 = vector.shape_cast %45 : vector<16x16x128xbf16> to vector<256x128xbf16>
    %c0_61 = arith.constant 0 : index
    %c1024 = arith.constant 1024 : index
    %47 = vector.load %arg10[%c0_61, %c1024] : memref<256x1152xbf16, #tpu.memory_space<vmem>>, vector<256x128xbf16>
    tpu.vector_store %arg10[%c0_61, %c1024], %46 {strides = array<i32>} : memref<256x1152xbf16, #tpu.memory_space<vmem>>, vector<256x128xbf16>,
    %c0_62 = arith.constant 0 : index
    %c0_63 = arith.constant 0 : index
    %48 = vector.load %arg10[%c0_62, %c0_63] : memref<256x1152xbf16, #tpu.memory_space<vmem>>, vector<256x1152xbf16>
    %c0_64 = arith.constant 0 : index
    %c0_65 = arith.constant 0 : index
    %49 = vector.load %arg4[%c0_64, %c0_65] : memref<1152x128xbf16, #tpu.memory_space<vmem>>, vector<1152x128xbf16>
    %cst_66 = arith.constant dense<0.000000e+00> : vector<256x128xf32>
    %50 = tpu.matmul %48, %49, %cst_66 {dimension_numbers = #tpu.dot_dimension_numbers<[1], [0], [0], [1], [0, 0, 1, 1], [], []>} : vector<256x1152xbf16>, vector<1152x128xbf16>, vector<256x128xf32> -> vector<256x128xf32>
    %c0_67 = arith.constant 0 : index
    %c0_68 = arith.constant 0 : index
    %51 = vector.load %arg5[%c0_67, %c0_68] : memref<1x128xf32, #tpu.memory_space<vmem>>, vector<1x128xf32>
    %52 = vector.broadcast %51 : vector<1x128xf32> to vector<256x128xf32>
    %53 = arith.addf %50, %52 : vector<256x128xf32>
    %cst_69 = arith.constant 0.000000e+00 : f32
    %54 = vector.broadcast %cst_69 : f32 to vector<256x128xf32>
    %55 = arith.maximumf %53, %54 : vector<256x128xf32>
    %56 = arith.truncf %55 : vector<256x128xf32> to vector<256x128xbf16>
    %c0_70 = arith.constant 0 : index
    %c0_71 = arith.constant 0 : index
    %57 = vector.load %arg6[%c0_70, %c0_71] : memref<128x128xbf16, #tpu.memory_space<vmem>>, vector<128x128xbf16>
    %cst_72 = arith.constant dense<0.000000e+00> : vector<256x128xf32>
    %58 = tpu.matmul %56, %57, %cst_72 {dimension_numbers = #tpu.dot_dimension_numbers<[1], [0], [0], [1], [0, 0, 1, 1], [], []>} : vector<256x128xbf16>, vector<128x128xbf16>, vector<256x128xf32> -> vector<256x128xf32>
    %c0_73 = arith.constant 0 : index
    %c0_74 = arith.constant 0 : index
    %59 = vector.load %arg7[%c0_73, %c0_74] : memref<1x128xf32, #tpu.memory_space<vmem>>, vector<1x128xf32>
    %60 = vector.broadcast %59 : vector<1x128xf32> to vector<256x128xf32>
    %61 = arith.addf %58, %60 : vector<256x128xf32>
    %c0_75 = arith.constant 0 : index
    %c0_76 = arith.constant 0 : index
    %c0_77 = arith.constant 0 : index
    %c0_78 = arith.constant 0 : index
    %62 = vector.load %arg1[%c0_75, %c0_76, %c0_77, %c0_78] : memref<1x16x16x128xf32, #tpu.memory_space<vmem>>, vector<1x16x16x128xf32>
    %63 = vector.shape_cast %62 : vector<1x16x16x128xf32> to vector<256x128xf32>
    %64 = arith.addf %61, %63 : vector<256x128xf32>
    %65 = vector.shape_cast %64 : vector<256x128xf32> to vector<1x16x16x128xf32>
    %c0_79 = arith.constant 0 : index
    %c0_80 = arith.constant 0 : index
    %c0_81 = arith.constant 0 : index
    %c0_82 = arith.constant 0 : index
    %66 = vector.load %arg8[%c0_79, %c0_80, %c0_81, %c0_82] : memref<1x16x16x128xf32, #tpu.memory_space<vmem>>, vector<1x16x16x128xf32>
    tpu.vector_store %arg8[%c0_79, %c0_80, %c0_81, %c0_82], %65 {strides = array<i32>} : memref<1x16x16x128xf32, #tpu.memory_space<vmem>>, vector<1x16x16x128xf32>,
    return
  }
  func.func @transform_0(%arg0: i32) -> (i32, i32, i32, i32) {
    %c0_i32 = arith.constant 0 : i32
    %c0_i32_0 = arith.constant 0 : i32
    %c0_i32_1 = arith.constant 0 : i32
    %c0_i32_2 = arith.constant 0 : i32
    return %arg0, %c0_i32, %c0_i32_0, %c0_i32_1 : i32, i32, i32, i32
  }
  func.func @transform_1(%arg0: i32) -> (i32, i32) {
    %c0_i32 = arith.constant 0 : i32
    %c0_i32_0 = arith.constant 0 : i32
    %c0_i32_1 = arith.constant 0 : i32
    return %c0_i32, %c0_i32_0 : i32, i32
  }
  func.func @transform_2(%arg0: i32) -> (i32, i32) {
    %c0_i32 = arith.constant 0 : i32
    %c0_i32_0 = arith.constant 0 : i32
    %c0_i32_1 = arith.constant 0 : i32
    return %c0_i32, %c0_i32_0 : i32, i32
  }
  func.func @transform_3(%arg0: i32) -> (i32, i32) {
    %c0_i32 = arith.constant 0 : i32
    %c0_i32_0 = arith.constant 0 : i32
    %c0_i32_1 = arith.constant 0 : i32
    return %c0_i32, %c0_i32_0 : i32, i32
  }
  func.func @transform_4(%arg0: i32) -> (i32, i32) {
    %c0_i32 = arith.constant 0 : i32
    %c0_i32_0 = arith.constant 0 : i32
    %c0_i32_1 = arith.constant 0 : i32
    return %c0_i32, %c0_i32_0 : i32, i32
  }
  func.func @transform_5(%arg0: i32) -> (i32, i32) {
    %c0_i32 = arith.constant 0 : i32
    %c0_i32_0 = arith.constant 0 : i32
    %c0_i32_1 = arith.constant 0 : i32
    return %c0_i32, %c0_i32_0 : i32, i32
  }
  func.func @transform_6(%arg0: i32) -> (i32, i32) {
    %c0_i32 = arith.constant 0 : i32
    %c0_i32_0 = arith.constant 0 : i32
    %c0_i32_1 = arith.constant 0 : i32
    return %c0_i32, %c0_i32_0 : i32, i32
  }
  func.func @transform_7(%arg0: i32) -> (i32, i32, i32, i32) {
    %c0_i32 = arith.constant 0 : i32
    %c0_i32_0 = arith.constant 0 : i32
    %c0_i32_1 = arith.constant 0 : i32
    %c0_i32_2 = arith.constant 0 : i32
    return %arg0, %c0_i32, %c0_i32_0, %c0_i32_1 : i32, i32, i32, i32
  }
}

</mosaic_0001>

<llo_original>
// kernel: _forward_one.1
$region0: #{_forward_one.1}
  #allocation0 [shape = 'u32[]', space=smem, size = 0x4, offset = 0x4, fixed_abs, tag = 'smem constant byte address 0x4 - core index']
  #allocation1 [shape = 'u32[144,128]{1,0:T(1,128)}', space=vmem, size = 0x12000, scoped, tag = 'internal scratch']
  #allocation2 [shape = 'bf16[18,18,128]{2,1,0:T(8,128)(2,1)}', space=vmem, size = 0x1b000, scoped, tag = 'scratch operand']
  #allocation3 [shape = 'bf16[256,1152]{1,0:T(16,128)(2,1)}', space=vmem, size = 0x90000, scoped, tag = 'scratch operand']
  %s0 = inlined_call_operand.vmem [shape: f32[2,16,16,128], index: 0, kind: input, shape index: {}]
  %s1 = inlined_call_operand.vmem [shape: bf16[128,128], index: 1, kind: input, shape index: {}]
  %s2 = inlined_call_operand.vmem [shape: f32[1,128], index: 2, kind: input, shape index: {}]
  %s3 = inlined_call_operand.vmem [shape: bf16[1152,128], index: 3, kind: input, shape index: {}]
  %s4 = inlined_call_operand.vmem [shape: f32[1,128], index: 4, kind: input, shape index: {}]
  %s5 = inlined_call_operand.vmem [shape: bf16[128,128], index: 5, kind: input, shape index: {}]
  %s6 = inlined_call_operand.vmem [shape: f32[1,128], index: 6, kind: input, shape index: {}]
  %s7 = inlined_call_operand.vmem [shape: f32[2,16,16,128], index: 7, kind: output, shape index: {}]
  %s8 = sld [smem:[#allocation0]]
  $region61: #{_forward_one.1} parent=0
    _
  %s10 = ssub.s32 1, %s8
  %s11 = scalar_select 0, %s10, %s8
  loop: start=0, step=1, limit=4
  $region2: #{_forward_one.1} parent=0 // loop_pre_header
    _
  $region3: #{_forward_one.1} parent=0 // loop_header
    %s13 = sphi 0, %s17
    %p14 = scmp.ge.s32.totalorder %s13, 4
    %s23 = sphi 0, %s25
    %s26 = sphi 0, %s23
    %s27 = sphi 0, %s26
    %s43 = sphi 0, %s27
    %s47 = sphi 0, %s47
    %s49 = sphi 0, %s47
    %s50 = sphi 0, %s49
    %s64 = sphi 0, %s50
    %s68 = sphi 0, %s68
    %s70 = sphi 0, %s68
    %s71 = sphi 0, %s70
    %s85 = sphi 0, %s71
    %s89 = sphi 0, %s89
    %s91 = sphi 0, %s89
    %s92 = sphi 0, %s91
    %s106 = sphi 0, %s92
    %s110 = sphi 0, %s110
    %s112 = sphi 0, %s110
    %s113 = sphi 0, %s112
    %s127 = sphi 0, %s113
    %s131 = sphi 0, %s131
    %s133 = sphi 0, %s131
    %s134 = sphi 0, %s133
    %s148 = sphi 0, %s134
    %s152 = sphi 0, %s152
    %s154 = sphi 0, %s152
    %s155 = sphi 0, %s154
    %s169 = sphi 0, %s155
    %s175 = sphi 0, %s177
    %s178 = sphi 0, %s175
    %s179 = sphi 0, %s178
    %s195 = sphi 0, %s179
  $region4: #{_forward_one.1} parent=0 // loop_header_branch
    %16 = sbr.rel (%p14) target = $region8
  $region5: #{_forward_one.1} parent=0 // loop_body
    %s18 = ssub.s32 %s13, 1
    %s19 = ssub.s32 %s13, 2
    %s20 = sadd.s32 %s13, 1
    %s21 = ssub.s32 %s13, %s20
    %p22 = scmp.eq.s32.totalorder %s21, 0
    %s24 = sadd.s32 %s23, 1
    %s25 = scalar_select %p22, %s23, %s24
    %p28 = pneg %p22
    %p29 = scmp.eq.s32.totalorder %s13, 1
    %p30 = por %p28, %p29
    %p31 = scmp.ne.s32.totalorder %s23, %s26
    %p32 = scmp.eq.s32.totalorder %s13, 0
    %p33 = por %p31, %p32
    %p34 = scmp.ne.s32.totalorder %s23, %s26
    %p35 = scmp.eq.s32.totalorder %s18, 1
    %p36 = por %p34, %p35
    %p37 = scmp.ne.s32.totalorder %s26, %s27
    %p38 = scmp.eq.s32.totalorder %s18, 0
    %p39 = por %p37, %p38
    %p40 = scmp.ne.s32.totalorder %s26, %s27
    %p41 = scmp.eq.s32.totalorder %s19, 1
    %p42 = por %p40, %p41
    %p44 = scmp.ne.s32.totalorder %s27, %s43
    %p45 = scmp.eq.s32.totalorder %s19, 0
    %p46 = por %p44, %p45
    %s48 = sadd.s32 %s47, 1
    %p51 = scmp.eq.s32.totalorder %s13, 1
    %p52 = scmp.ne.s32.totalorder %s47, %s49
    %p53 = scmp.eq.s32.totalorder %s13, 0
    %p54 = por %p52, %p53
    %p55 = scmp.ne.s32.totalorder %s47, %s49
    %p56 = scmp.eq.s32.totalorder %s18, 1
    %p57 = por %p55, %p56
    %p58 = scmp.ne.s32.totalorder %s49, %s50
    %p59 = scmp.eq.s32.totalorder %s18, 0
    %p60 = por %p58, %p59
    %p61 = scmp.ne.s32.totalorder %s49, %s50
    %p62 = scmp.eq.s32.totalorder %s19, 1
    %p63 = por %p61, %p62
    %p65 = scmp.ne.s32.totalorder %s50, %s64
    %p66 = scmp.eq.s32.totalorder %s19, 0
    %p67 = por %p65, %p66
    %s69 = sadd.s32 %s68, 1
    %p72 = scmp.eq.s32.totalorder %s13, 1
    %p73 = scmp.ne.s32.totalorder %s68, %s70
    %p74 = scmp.eq.s32.totalorder %s13, 0
    %p75 = por %p73, %p74
    %p76 = scmp.ne.s32.totalorder %s68, %s70
    %p77 = scmp.eq.s32.totalorder %s18, 1
    %p78 = por %p76, %p77
    %p79 = scmp.ne.s32.totalorder %s70, %s71
    %p80 = scmp.eq.s32.totalorder %s18, 0
    %p81 = por %p79, %p80
    %p82 = scmp.ne.s32.totalorder %s70, %s71
    %p83 = scmp.eq.s32.totalorder %s19, 1
    %p84 = por %p82, %p83
    %p86 = scmp.ne.s32.totalorder %s71, %s85
    %p87 = scmp.eq.s32.totalorder %s19, 0
    %p88 = por %p86, %p87
    %s90 = sadd.s32 %s89, 1
    %p93 = scmp.eq.s32.totalorder %s13, 1
    %p94 = scmp.ne.s32.totalorder %s89, %s91
    %p95 = scmp.eq.s32.totalorder %s13, 0
    %p96 = por %p94, %p95
    %p97 = scmp.ne.s32.totalorder %s89, %s91
    %p98 = scmp.eq.s32.totalorder %s18, 1
    %p99 = por %p97, %p98
    %p100 = scmp.ne.s32.totalorder %s91, %s92
    %p101 = scmp.eq.s32.totalorder %s18, 0
    %p102 = por %p100, %p101
    %p103 = scmp.ne.s32.totalorder %s91, %s92
    %p104 = scmp.eq.s32.totalorder %s19, 1
    %p105 = por %p103, %p104
    %p107 = scmp.ne.s32.totalorder %s92, %s106
    %p108 = scmp.eq.s32.totalorder %s19, 0
    %p109 = por %p107, %p108
    %s111 = sadd.s32 %s110, 1
    %p114 = scmp.eq.s32.totalorder %s13, 1
    %p115 = scmp.ne.s32.totalorder %s110, %s112
    %p116 = scmp.eq.s32.totalorder %s13, 0
    %p117 = por %p115, %p116
    %p118 = scmp.ne.s32.totalorder %s110, %s112
    %p119 = scmp.eq.s32.totalorder %s18, 1
    %p120 = por %p118, %p119
    %p121 = scmp.ne.s32.totalorder %s112, %s113
    %p122 = scmp.eq.s32.totalorder %s18, 0
    %p123 = por %p121, %p122
    %p124 = scmp.ne.s32.totalorder %s112, %s113
    %p125 = scmp.eq.s32.totalorder %s19, 1
    %p126 = por %p124, %p125
    %p128 = scmp.ne.s32.totalorder %s113, %s127
    %p129 = scmp.eq.s32.totalorder %s19, 0
    %p130 = por %p128, %p129
    %s132 = sadd.s32 %s131, 1
    %p135 = scmp.eq.s32.totalorder %s13, 1
    %p136 = scmp.ne.s32.totalorder %s131, %s133
    %p137 = scmp.eq.s32.totalorder %s13, 0
    %p138 = por %p136, %p137
    %p139 = scmp.ne.s32.totalorder %s131, %s133
    %p140 = scmp.eq.s32.totalorder %s18, 1
    %p141 = por %p139, %p140
    %p142 = scmp.ne.s32.totalorder %s133, %s134
    %p143 = scmp.eq.s32.totalorder %s18, 0
    %p144 = por %p142, %p143
    %p145 = scmp.ne.s32.totalorder %s133, %s134
    %p146 = scmp.eq.s32.totalorder %s19, 1
    %p147 = por %p145, %p146
    %p149 = scmp.ne.s32.totalorder %s134, %s148
    %p150 = scmp.eq.s32.totalorder %s19, 0
    %p151 = por %p149, %p150
    %s153 = sadd.s32 %s152, 1
    %p156 = scmp.eq.s32.totalorder %s13, 1
    %p157 = scmp.ne.s32.totalorder %s152, %s154
    %p158 = scmp.eq.s32.totalorder %s13, 0
    %p159 = por %p157, %p158
    %p160 = scmp.ne.s32.totalorder %s152, %s154
    %p161 = scmp.eq.s32.totalorder %s18, 1
    %p162 = por %p160, %p161
    %p163 = scmp.ne.s32.totalorder %s154, %s155
    %p164 = scmp.eq.s32.totalorder %s18, 0
    %p165 = por %p163, %p164
    %p166 = scmp.ne.s32.totalorder %s154, %s155
    %p167 = scmp.eq.s32.totalorder %s19, 1
    %p168 = por %p166, %p167
    %p170 = scmp.ne.s32.totalorder %s155, %s169
    %p171 = scmp.eq.s32.totalorder %s19, 0
    %p172 = por %p170, %p171
    %s173 = ssub.s32 %s13, %s20
    %p174 = scmp.eq.s32.totalorder %s173, 0
    %s176 = sadd.s32 %s175, 1
    %s177 = scalar_select %p174, %s175, %s176
    %p180 = pneg %p174
    %p181 = scmp.eq.s32.totalorder %s13, 1
    %p182 = por %p180, %p181
    %p183 = scmp.ne.s32.totalorder %s175, %s178
    %p184 = scmp.eq.s32.totalorder %s13, 0
    %p185 = por %p183, %p184
    %p186 = scmp.ne.s32.totalorder %s175, %s178
    %p187 = scmp.eq.s32.totalorder %s18, 1
    %p188 = por %p186, %p187
    %p189 = scmp.ne.s32.totalorder %s178, %s179
    %p190 = scmp.eq.s32.totalorder %s18, 0
    %p191 = por %p189, %p190
    %p192 = scmp.ne.s32.totalorder %s178, %s179
    %p193 = scmp.eq.s32.totalorder %s19, 1
    %p194 = por %p192, %p193
    %p196 = scmp.ne.s32.totalorder %s179, %s195
    %p197 = scmp.eq.s32.totalorder %s19, 0
    %p198 = por %p196, %p197
    %p199 = scmp.le.s32.totalorder 1, %s13
    %p200 = scmp.lt.s32.totalorder %s13, 3
    %p201 = pnand %p199, %p200
    %p202 = pneg %p201
    // Predicated region
    $region9: #{_forward_one.1} parent=5 // pred_check
      _
    $region10: #{_forward_one.1} parent=5 // pred_check_branch
      %204 = sbr.rel (%p201) target = $region12
    $region11: #{_forward_one.1} parent=5 // pred_region
      %s205 = ssub.s32 %s13, 1
      // Predicated region
      $region13: #{_forward_one.1} parent=11 // pred_check
        %p206 = pneg %p60
      $region14: #{_forward_one.1} parent=11 // pred_check_branch
        %208 = sbr.rel (%p206) target = $region16
      $region15: #{_forward_one.1} parent=11 // pred_region
        _
      $region16: #{_forward_one.1} parent=11 // pred_fallthru
        _
      // Predicated region
      $region17: #{_forward_one.1} parent=11 // pred_check
        %p209 = pneg %p81
      $region18: #{_forward_one.1} parent=11 // pred_check_branch
        %211 = sbr.rel (%p209) target = $region20
      $region19: #{_forward_one.1} parent=11 // pred_region
        _
      $region20: #{_forward_one.1} parent=11 // pred_fallthru
        _
      // Predicated region
      $region21: #{_forward_one.1} parent=11 // pred_check
        %p212 = pneg %p102
      $region22: #{_forward_one.1} parent=11 // pred_check_branch
        %214 = sbr.rel (%p212) target = $region24
      $region23: #{_forward_one.1} parent=11 // pred_region
        _
      $region24: #{_forward_one.1} parent=11 // pred_fallthru
        _
      // Predicated region
      $region25: #{_forward_one.1} parent=11 // pred_check
        %p215 = pneg %p123
      $region26: #{_forward_one.1} parent=11 // pred_check_branch
        %217 = sbr.rel (%p215) target = $region28
      $region27: #{_forward_one.1} parent=11 // pred_region
        _
      $region28: #{_forward_one.1} parent=11 // pred_fallthru
        _
      // Predicated region
      $region29: #{_forward_one.1} parent=11 // pred_check
        %p218 = pneg %p144
      $region30: #{_forward_one.1} parent=11 // pred_check_branch
        %220 = sbr.rel (%p218) target = $region32
      $region31: #{_forward_one.1} parent=11 // pred_region
        _
      $region32: #{_forward_one.1} parent=11 // pred_fallthru
        _
      // Predicated region
      $region33: #{_forward_one.1} parent=11 // pred_check
        %p221 = pneg %p165
      $region34: #{_forward_one.1} parent=11 // pred_check_branch
        %223 = sbr.rel (%p221) target = $region36
      $region35: #{_forward_one.1} parent=11 // pred_region
        _
      $region36: #{_forward_one.1} parent=11 // pred_fallthru
        _
    $region12: #{_forward_one.1} parent=5 // pred_fallthru
      _
    %p224 = scmp.lt.s32.totalorder %s13, 2
    // Predicated region
    $region37: #{_forward_one.1} parent=5 // pred_check
      %p225 = pneg %p224
    $region38: #{_forward_one.1} parent=5 // pred_check_branch
      %227 = sbr.rel (%p225) target = $region40
    $region39: #{_forward_one.1} parent=5 // pred_region
      // Predicated region
      $region41: #{_forward_one.1} parent=39 // pred_check
        %p228 = pneg %p33
      $region42: #{_forward_one.1} parent=39 // pred_check_branch
        %230 = sbr.rel (%p228) target = $region44
      $region43: #{_forward_one.1} parent=39 // pred_region
        %p231 = scmp.lt.s32.totalorder %s13, 1
        %s232 = scalar_select %p231, %s13, 1
        %s233 = smul.addr %s232, 32
        %s234 = smul.addr %s233, 8
        %s235 = scalar_lea.vmem %s0, %s234
      $region44: #{_forward_one.1} parent=39 // pred_fallthru
        _
    $region40: #{_forward_one.1} parent=5 // pred_fallthru
      _
    %p236 = scmp.le.s32.totalorder 1, %s13
    %p237 = scmp.lt.s32.totalorder %s13, 3
    %p238 = pnand %p236, %p237
    %p239 = pneg %p238
    // Predicated region
    $region45: #{_forward_one.1} parent=5 // pred_check
      _
    $region46: #{_forward_one.1} parent=5 // pred_check_branch
      %241 = sbr.rel (%p238) target = $region48
    $region47: #{_forward_one.1} parent=5 // pred_region
      %s242 = ssub.s32 %s13, 1
      %p243 = scmp.lt.s32.totalorder %s18, 1
      %s244 = scalar_select %p243, %s18, 1
      %s245 = smul.addr %s244, 32
      %s246 = smul.addr %s245, 8
      %s247 = scalar_lea.vmem %s0, %s246
      %p248 = pneg %p39
      %p249 = pneg %p36
      %p250 = pneg %p60
      %p251 = pneg %p57
      %p252 = pneg %p81
      %p253 = pneg %p78
      %p254 = pneg %p102
      %p255 = pneg %p99
      %p256 = pneg %p123
      %p257 = pneg %p120
      %p258 = pneg %p144
      %p259 = pneg %p141
      %p260 = pneg %p165
      %p261 = pneg %p162
      %p262 = pneg %p191
      %p263 = pneg %p188
      %p264 = scmp.lt.s32.totalorder %s18, 1
      %s265 = scalar_select %p264, %s18, 1
      %s266 = smul.addr %s265, 32
      %s267 = smul.addr %s266, 8
      %s268 = scalar_lea.vmem %s7, %s267
      %p269 = scmp.lt.s32.totalorder %s18, 1
      %s270 = scalar_select %p269, %s18, 1
      %s271 = smul.addr %s270, 32
      %s272 = smul.addr %s271, 8
      %s273 = scalar_lea.vmem %s0, %s272
      %p274 = scmp.lt.s32.totalorder %s18, 1
      %s275 = scalar_select %p274, %s18, 1
      %s276 = smul.addr %s275, 32
      %s277 = smul.addr %s276, 8
      %s278 = scalar_lea.vmem %s7, %s277
      %v280 = vld [vmem:[%s273] sm:$0xff]
      %v281 = vld [vmem:[%s273 + $0x8] sm:$0xff]
      %v282 = vld [vmem:[%s273 + $0x10] sm:$0xff]
      %v283 = vld [vmem:[%s273 + $0x18] sm:$0xff]
      %v284 = vld [vmem:[%s273 + $0x20] sm:$0xff]
      %v285 = vld [vmem:[%s273 + $0x28] sm:$0xff]
      %v286 = vld [vmem:[%s273 + $0x30] sm:$0xff]
      %v287 = vld [vmem:[%s273 + $0x38] sm:$0xff]
      %v288 = vld [vmem:[%s273 + $0x40] sm:$0xff]
      %v289 = vld [vmem:[%s273 + $0x48] sm:$0xff]
      %v290 = vld [vmem:[%s273 + $0x50] sm:$0xff]
      %v291 = vld [vmem:[%s273 + $0x58] sm:$0xff]
      %v292 = vld [vmem:[%s273 + $0x60] sm:$0xff]
      %v293 = vld [vmem:[%s273 + $0x68] sm:$0xff]
      %v294 = vld [vmem:[%s273 + $0x70] sm:$0xff]
      %v295 = vld [vmem:[%s273 + $0x78] sm:$0xff]
      %v296 = vld [vmem:[%s273 + $0x80] sm:$0xff]
      %v297 = vld [vmem:[%s273 + $0x88] sm:$0xff]
      %v298 = vld [vmem:[%s273 + $0x90] sm:$0xff]
      %v299 = vld [vmem:[%s273 + $0x98] sm:$0xff]
      %v300 = vld [vmem:[%s273 + $0xa0] sm:$0xff]
      %v301 = vld [vmem:[%s273 + $0xa8] sm:$0xff]
      %v302 = vld [vmem:[%s273 + $0xb0] sm:$0xff]
      %v303 = vld [vmem:[%s273 + $0xb8] sm:$0xff]
      %v304 = vld [vmem:[%s273 + $0xc0] sm:$0xff]
      %v305 = vld [vmem:[%s273 + $0xc8] sm:$0xff]
      %v306 = vld [vmem:[%s273 + $0xd0] sm:$0xff]
      %v307 = vld [vmem:[%s273 + $0xd8] sm:$0xff]
      %v308 = vld [vmem:[%s273 + $0xe0] sm:$0xff]
      %v309 = vld [vmem:[%s273 + $0xe8] sm:$0xff]
      %v310 = vld [vmem:[%s273 + $0xf0] sm:$0xff]
      %v311 = vld [vmem:[%s273 + $0xf8] sm:$0xff]
      %v312 = vpack.c.bf16 %v281, %v280
      %v313 = vpack.c.bf16 %v283, %v282
      %v314 = vpack.c.bf16 %v285, %v284
      %v315 = vpack.c.bf16 %v287, %v286
      %v316 = vpack.c.bf16 %v289, %v288
      %v317 = vpack.c.bf16 %v291, %v290
      %v318 = vpack.c.bf16 %v293, %v292
      %v319 = vpack.c.bf16 %v295, %v294
      %v320 = vpack.c.bf16 %v297, %v296
      %v321 = vpack.c.bf16 %v299, %v298
      %v322 = vpack.c.bf16 %v301, %v300
      %v323 = vpack.c.bf16 %v303, %v302
      %v324 = vpack.c.bf16 %v305, %v304
      %v325 = vpack.c.bf16 %v307, %v306
      %v326 = vpack.c.bf16 %v309, %v308
      %v327 = vpack.c.bf16 %v311, %v310
      %v328 = vld [vmem:[%s1] sm:$0xf]
      %v329 = vld [vmem:[%s1 + $0x4] sm:$0xf]
      %v330 = vld [vmem:[%s1 + $0x8] sm:$0xf]
      %v331 = vld [vmem:[%s1 + $0xc] sm:$0xf]
      %v332 = vld [vmem:[%s1 + $0x10] sm:$0xf]
      %v333 = vld [vmem:[%s1 + $0x14] sm:$0xf]
      %v334 = vld [vmem:[%s1 + $0x18] sm:$0xf]
      %v335 = vld [vmem:[%s1 + $0x1c] sm:$0xf]
      %v336 = vld [vmem:[%s1 + $0x20] sm:$0xf]
      %v337 = vld [vmem:[%s1 + $0x24] sm:$0xf]
      %v338 = vld [vmem:[%s1 + $0x28] sm:$0xf]
      %v339 = vld [vmem:[%s1 + $0x2c] sm:$0xf]
      %v340 = vld [vmem:[%s1 + $0x30] sm:$0xf]
      %v341 = vld [vmem:[%s1 + $0x34] sm:$0xf]
      %v342 = vld [vmem:[%s1 + $0x38] sm:$0xf]
      %v343 = vld [vmem:[%s1 + $0x3c] sm:$0xf]
      %v344 = vld [vmem:[%s2] sm:$0x1]
      %v346 = vlaneseq
      %v347 = vshrl.u32 %v346, 7
      %v348 = vsub.s32 0, %v347
      %v349 = vrot.slane %v344, %v348
      %v367 = vunpack.c.l.b16 %v328
      %v368 = vunpack.c.l.b16 %v329
      %v369 = vunpack.c.l.b16 %v330
      %v370 = vunpack.c.l.b16 %v331
      %v371 = vunpack.c.l.b16 %v332
      %v372 = vunpack.c.l.b16 %v333
      %v373 = vunpack.c.l.b16 %v334
      %v374 = vunpack.c.l.b16 %v335
      %v375 = vunpack.c.l.b16 %v336
      %v376 = vunpack.c.l.b16 %v337
      %v377 = vunpack.c.l.b16 %v338
      %v378 = vunpack.c.l.b16 %v339
      %v379 = vunpack.c.l.b16 %v340
      %v380 = vunpack.c.l.b16 %v341
      %v381 = vunpack.c.l.b16 %v342
      %v382 = vunpack.c.l.b16 %v343
      %v383 = vpack.c.b16 %v368, %v367
      %v384 = vpack.c.b16 %v370, %v369
      %v385 = vpack.c.b16 %v372, %v371
      %v386 = vpack.c.b16 %v374, %v373
      %v387 = vpack.c.b16 %v376, %v375
      %v388 = vpack.c.b16 %v378, %v377
      %v389 = vpack.c.b16 %v380, %v379
      %v390 = vpack.c.b16 %v382, %v381
      %399 = vmatprep.subr.bf16.mxu0 0
      %400 = vmatpush1.bf16.msra.mxu0 %v383
      %401 = vmatprep.subr.bf16.mxu0 0
      %402 = vmatpush1.bf16.msra.mxu0 %v384
      %403 = vmatprep.subr.bf16.mxu0 0
      %404 = vmatpush1.bf16.msra.mxu0 %v385
      %405 = vmatprep.subr.bf16.mxu0 0
      %406 = vmatpush1.bf16.msra.mxu0 %v386
      %407 = vmatprep.subr.bf16.mxu0 0
      %408 = vmatpush1.bf16.msra.mxu0 %v387
      %409 = vmatprep.subr.bf16.mxu0 0
      %410 = vmatpush1.bf16.msra.mxu0 %v388
      %411 = vmatprep.subr.bf16.mxu0 0
      %412 = vmatpush1.bf16.msra.mxu0 %v389
      %413 = vmatprep.subr.bf16.mxu0 0
      %414 = vmatpush1.bf16.msra.mxu0 %v390
      %415 = vmatprep.subr.bf16.mxu0 0
      %416 = vmatpush1.bf16.msra.mxu0 0
      %417 = vmatprep.subr.bf16.mxu0 0
      %418 = vmatpush1.bf16.msra.mxu0 0
      %419 = vmatprep.subr.bf16.mxu0 0
      %420 = vmatpush1.bf16.msra.mxu0 0
      %421 = vmatprep.subr.bf16.mxu0 0
      %422 = vmatpush1.bf16.msra.mxu0 0
      %423 = vmatprep.subr.bf16.mxu0 0
      %424 = vmatpush1.bf16.msra.mxu0 0
      %425 = vmatprep.subr.bf16.mxu0 0
      %426 = vmatpush1.bf16.msra.mxu0 0
      %427 = vmatprep.subr.bf16.mxu0 0
      %428 = vmatpush1.bf16.msra.mxu0 0
      %429 = vmatprep.subr.bf16.mxu0 0
      %430 = vmatpush1.bf16.msra.mxu0 0
      %431 = vmatprep.mubr.bf16.mxu0 0
      %432 = vmatmul.mubr.bf16.gmra.mrb[0].mxu0 %v312
      %v433 = vpop.f32.mrb[0].mxu0
      %v434 = vadd.f32 %v349, %v433
      %v435 = vpop.f32.mrb[0].mxu0
      %v436 = vpop.f32.mrb[0].mxu0
      %v437 = vadd.f32 %v349, %v436
      %v438 = vpop.f32.mrb[0].mxu0
      %439 = vmatprep.mubr.bf16.mxu0 0
      %440 = vmatmul.mubr.bf16.gmra.mrb[0].mxu0 %v313
      %v441 = vpop.f32.mrb[0].mxu0
      %v442 = vadd.f32 %v349, %v441
      %v443 = vpop.f32.mrb[0].mxu0
      %v444 = vpop.f32.mrb[0].mxu0
      %v445 = vadd.f32 %v349, %v444
      %v446 = vpop.f32.mrb[0].mxu0
      %447 = vmatprep.mubr.bf16.mxu0 0
      %448 = vmatmul.mubr.bf16.gmra.mrb[0].mxu0 %v314
      %v449 = vpop.f32.mrb[0].mxu0
      %v450 = vadd.f32 %v349, %v449
      %v451 = vpop.f32.mrb[0].mxu0
      %v452 = vpop.f32.mrb[0].mxu0
      %v453 = vadd.f32 %v349, %v452
      %v454 = vpop.f32.mrb[0].mxu0
      %455 = vmatprep.mubr.bf16.mxu0 0
      %456 = vmatmul.mubr.bf16.gmra.mrb[0].mxu0 %v315
      %v457 = vpop.f32.mrb[0].mxu0
      %v458 = vadd.f32 %v349, %v457
      %v459 = vpop.f32.mrb[0].mxu0
      %v460 = vpop.f32.mrb[0].mxu0
      %v461 = vadd.f32 %v349, %v460
      %v462 = vpop.f32.mrb[0].mxu0
      %463 = vmatprep.mubr.bf16.mxu0 0
      %464 = vmatmul.mubr.bf16.gmra.mrb[0].mxu0 %v316
      %v465 = vpop.f32.mrb[0].mxu0
      %v466 = vadd.f32 %v349, %v465
      %v467 = vpop.f32.mrb[0].mxu0
      %v468 = vpop.f32.mrb[0].mxu0
      %v469 = vadd.f32 %v349, %v468
      %v470 = vpop.f32.mrb[0].mxu0
      %471 = vmatprep.mubr.bf16.mxu0 0
      %472 = vmatmul.mubr.bf16.gmra.mrb[0].mxu0 %v317
      %v473 = vpop.f32.mrb[0].mxu0
      %v474 = vadd.f32 %v349, %v473
      %v475 = vpop.f32.mrb[0].mxu0
      %v476 = vpop.f32.mrb[0].mxu0
      %v477 = vadd.f32 %v349, %v476
      %v478 = vpop.f32.mrb[0].mxu0
      %479 = vmatprep.mubr.bf16.mxu0 0
      %480 = vmatmul.mubr.bf16.gmra.mrb[0].mxu0 %v318
      %v481 = vpop.f32.mrb[0].mxu0
      %v482 = vadd.f32 %v349, %v481
      %v483 = vpop.f32.mrb[0].mxu0
      %v484 = vpop.f32.mrb[0].mxu0
      %v485 = vadd.f32 %v349, %v484
      %v486 = vpop.f32.mrb[0].mxu0
      %487 = vmatprep.mubr.bf16.mxu0 0
      %488 = vmatmul.mubr.bf16.gmra.mrb[0].mxu0 %v319
      %v489 = vpop.f32.mrb[0].mxu0
      %v490 = vadd.f32 %v349, %v489
      %v491 = vpop.f32.mrb[0].mxu0
      %v492 = vpop.f32.mrb[0].mxu0
      %v493 = vadd.f32 %v349, %v492
      %v494 = vpop.f32.mrb[0].mxu0
      %495 = vmatprep.mubr.bf16.mxu0 0
      %496 = vmatmul.mubr.bf16.gmra.mrb[0].mxu0 %v320
      %v497 = vpop.f32.mrb[0].mxu0
      %v498 = vadd.f32 %v349, %v497
      %v499 = vpop.f32.mrb[0].mxu0
      %v500 = vpop.f32.mrb[0].mxu0
      %v501 = vadd.f32 %v349, %v500
      %v502 = vpop.f32.mrb[0].mxu0
      %503 = vmatprep.mubr.bf16.mxu0 0
      %504 = vmatmul.mubr.bf16.gmra.mrb[0].mxu0 %v321
      %v505 = vpop.f32.mrb[0].mxu0
      %v506 = vadd.f32 %v349, %v505
      %v507 = vpop.f32.mrb[0].mxu0
      %v508 = vpop.f32.mrb[0].mxu0
      %v509 = vadd.f32 %v349, %v508
      %v510 = vpop.f32.mrb[0].mxu0
      %511 = vmatprep.mubr.bf16.mxu0 0
      %512 = vmatmul.mubr.bf16.gmra.mrb[0].mxu0 %v322
      %v513 = vpop.f32.mrb[0].mxu0
      %v514 = vadd.f32 %v349, %v513
      %v515 = vpop.f32.mrb[0].mxu0
      %v516 = vpop.f32.mrb[0].mxu0
      %v517 = vadd.f32 %v349, %v516
      %v518 = vpop.f32.mrb[0].mxu0
      %519 = vmatprep.mubr.bf16.mxu0 0
      %520 = vmatmul.mubr.bf16.gmra.mrb[0].mxu0 %v323
      %v521 = vpop.f32.mrb[0].mxu0
      %v522 = vadd.f32 %v349, %v521
      %v523 = vpop.f32.mrb[0].mxu0
      %v524 = vpop.f32.mrb[0].mxu0
      %v525 = vadd.f32 %v349, %v524
      %v526 = vpop.f32.mrb[0].mxu0
      %527 = vmatprep.mubr.bf16.mxu0 0
      %528 = vmatmul.mubr.bf16.gmra.mrb[0].mxu0 %v324
      %v529 = vpop.f32.mrb[0].mxu0
      %v530 = vadd.f32 %v349, %v529
      %v531 = vpop.f32.mrb[0].mxu0
      %v532 = vpop.f32.mrb[0].mxu0
      %v533 = vadd.f32 %v349, %v532
      %v534 = vpop.f32.mrb[0].mxu0
      %535 = vmatprep.mubr.bf16.mxu0 0
      %536 = vmatmul.mubr.bf16.gmra.mrb[0].mxu0 %v325
      %v537 = vpop.f32.mrb[0].mxu0
      %v538 = vadd.f32 %v349, %v537
      %v539 = vpop.f32.mrb[0].mxu0
      %v540 = vpop.f32.mrb[0].mxu0
      %v541 = vadd.f32 %v349, %v540
      %v542 = vpop.f32.mrb[0].mxu0
      %543 = vmatprep.mubr.bf16.mxu0 0
      %544 = vmatmul.mubr.bf16.gmra.mrb[0].mxu0 %v326
      %v545 = vpop.f32.mrb[0].mxu0
      %v546 = vadd.f32 %v349, %v545
      %v547 = vpop.f32.mrb[0].mxu0
      %v548 = vpop.f32.mrb[0].mxu0
      %v549 = vadd.f32 %v349, %v548
      %v550 = vpop.f32.mrb[0].mxu0
      %551 = vmatprep.mubr.bf16.mxu0 0
      %552 = vmatmul.mubr.bf16.gmra.mrb[0].mxu0 %v327
      %v553 = vpop.f32.mrb[0].mxu0
      %v554 = vadd.f32 %v349, %v553
      %v555 = vpop.f32.mrb[0].mxu0
      %v556 = vpop.f32.mrb[0].mxu0
      %v557 = vadd.f32 %v349, %v556
      %v558 = vpop.f32.mrb[0].mxu0
      %559 = vdwg.mxu0
      %v560 = vmax.f32 %v434, 0.0
      %v561 = vmax.f32 %v437, 0.0
      %v562 = vmax.f32 %v442, 0.0
      %v563 = vmax.f32 %v445, 0.0
      %v564 = vmax.f32 %v450, 0.0
      %v565 = vmax.f32 %v453, 0.0
      %v566 = vmax.f32 %v458, 0.0
      %v567 = vmax.f32 %v461, 0.0
      %v568 = vmax.f32 %v466, 0.0
      %v569 = vmax.f32 %v469, 0.0
      %v570 = vmax.f32 %v474, 0.0
      %v571 = vmax.f32 %v477, 0.0
      %v572 = vmax.f32 %v482, 0.0
      %v573 = vmax.f32 %v485, 0.0
      %v574 = vmax.f32 %v490, 0.0
      %v575 = vmax.f32 %v493, 0.0
      %v576 = vmax.f32 %v498, 0.0
      %v577 = vmax.f32 %v501, 0.0
      %v578 = vmax.f32 %v506, 0.0
      %v579 = vmax.f32 %v509, 0.0
      %v580 = vmax.f32 %v514, 0.0
      %v581 = vmax.f32 %v517, 0.0
      %v582 = vmax.f32 %v522, 0.0
      %v583 = vmax.f32 %v525, 0.0
      %v584 = vmax.f32 %v530, 0.0
      %v585 = vmax.f32 %v533, 0.0
      %v586 = vmax.f32 %v538, 0.0
      %v587 = vmax.f32 %v541, 0.0
      %v588 = vmax.f32 %v546, 0.0
      %v589 = vmax.f32 %v549, 0.0
      %v590 = vmax.f32 %v554, 0.0
      %v591 = vmax.f32 %v557, 0.0
      %v592 = vpack.c.bf16 %v561, %v560
      %v593 = vpack.c.bf16 %v563, %v562
      %v594 = vpack.c.bf16 %v565, %v564
      %v595 = vpack.c.bf16 %v567, %v566
      %v596 = vpack.c.bf16 %v569, %v568
      %v597 = vpack.c.bf16 %v571, %v570
      %v598 = vpack.c.bf16 %v573, %v572
      %v599 = vpack.c.bf16 %v575, %v574
      %v600 = vpack.c.bf16 %v577, %v576
      %v601 = vpack.c.bf16 %v579, %v578
      %v602 = vpack.c.bf16 %v581, %v580
      %v603 = vpack.c.bf16 %v583, %v582
      %v604 = vpack.c.bf16 %v585, %v584
      %v605 = vpack.c.bf16 %v587, %v586
      %v606 = vpack.c.bf16 %v589, %v588
      %v607 = vpack.c.bf16 %v591, %v590
      %v624 = vunpack.c.l.b16 %v592
      %v625 = vunpack.c.h.b16 %v592
      %v626 = vunpack.c.l.b16 %v593
      %v627 = vunpack.c.h.b16 %v593
      %v628 = vunpack.c.l.b16 %v594
      %v629 = vunpack.c.h.b16 %v594
      %v630 = vunpack.c.l.b16 %v595
      %v631 = vunpack.c.h.b16 %v595
      %v632 = vunpack.c.l.b16 %v596
      %v633 = vunpack.c.h.b16 %v596
      %v634 = vunpack.c.l.b16 %v597
      %v635 = vunpack.c.h.b16 %v597
      %v636 = vunpack.c.l.b16 %v598
      %v637 = vunpack.c.h.b16 %v598
      %v638 = vunpack.c.l.b16 %v599
      %v639 = vunpack.c.h.b16 %v599
      %v640 = vunpack.c.l.b16 %v600
      %v641 = vunpack.c.h.b16 %v600
      %v642 = vunpack.c.l.b16 %v601
      %v643 = vunpack.c.h.b16 %v601
      %v644 = vunpack.c.l.b16 %v602
      %v645 = vunpack.c.h.b16 %v602
      %v646 = vunpack.c.l.b16 %v603
      %v647 = vunpack.c.h.b16 %v603
      %v648 = vunpack.c.l.b16 %v604
      %v649 = vunpack.c.h.b16 %v604
      %v650 = vunpack.c.l.b16 %v605
      %v651 = vunpack.c.h.b16 %v605
      %v652 = vunpack.c.l.b16 %v606
      %v653 = vunpack.c.h.b16 %v606
      %v654 = vunpack.c.l.b16 %v607
      %v655 = vunpack.c.h.b16 %v607
      %v656 = vpack.c.b16 %v624, %v624
      %v657 = vpack.c.b16 %v625, %v625
      %v658 = vpack.c.b16 %v626, %v626
      %v659 = vpack.c.b16 %v627, %v627
      %v660 = vpack.c.b16 %v628, %v628
      %v661 = vpack.c.b16 %v629, %v629
      %v662 = vpack.c.b16 %v630, %v630
      %v663 = vpack.c.b16 %v631, %v631
      %v664 = vpack.c.b16 %v632, %v632
      %v665 = vpack.c.b16 %v633, %v633
      %v666 = vpack.c.b16 %v634, %v634
      %v667 = vpack.c.b16 %v635, %v635
      %v668 = vpack.c.b16 %v636, %v636
      %v669 = vpack.c.b16 %v637, %v637
      %v670 = vpack.c.b16 %v638, %v638
      %v671 = vpack.c.b16 %v639, %v639
      %v672 = vpack.c.b16 %v640, %v640
      %v673 = vpack.c.b16 %v641, %v641
      %v674 = vpack.c.b16 %v642, %v642
      %v675 = vpack.c.b16 %v643, %v643
      %v676 = vpack.c.b16 %v644, %v644
      %v677 = vpack.c.b16 %v645, %v645
      %v678 = vpack.c.b16 %v646, %v646
      %v679 = vpack.c.b16 %v647, %v647
      %v680 = vpack.c.b16 %v648, %v648
      %v681 = vpack.c.b16 %v649, %v649
      %v682 = vpack.c.b16 %v650, %v650
      %v683 = vpack.c.b16 %v651, %v651
      %v684 = vpack.c.b16 %v652, %v652
      %v685 = vpack.c.b16 %v653, %v653
      %v686 = vpack.c.b16 %v654, %v654
      %v687 = vpack.c.b16 %v655, %v655
      %vm688 = vsmask.f32 256
      %vm689 = vsmask.f32 4368
      %vm690 = vmor %vm688, %vm689
      %v692 = vshrl.u32 %v656, 16
      %v694 = vrot.slane %v692, 7
      %v695 = vshll.u32 %v656, 16
      %v697 = vor.u32 %v694, %v695
      %v698 = vrot.slane %v694, 4
      %v700 = vshrl.u32 %v657, 16
      %v702 = vrot.slane %v700, 7
      %v703 = vshll.u32 %v657, 16
      %v705 = vor.u32 %v702, %v703
      %v706 = vsel %vm690, %v698, %v705
      %v707 = vrot.slane %v702, 4
      %v709 = vshrl.u32 %v658, 16
      %v711 = vrot.slane %v709, 7
      %v712 = vshll.u32 %v658, 16
      %v714 = vor.u32 %v711, %v712
      %v715 = vrot.slane %v711, 4
      %v717 = vshrl.u32 %v659, 16
      %v719 = vrot.slane %v717, 7
      %v720 = vshll.u32 %v659, 16
      %v722 = vor.u32 %v719, %v720
      %v723 = vsel %vm690, %v715, %v722
      %v724 = vrot.slane %v719, 4
      %v726 = vshrl.u32 %v660, 16
      %v728 = vrot.slane %v726, 7
      %v729 = vshll.u32 %v660, 16
      %v731 = vor.u32 %v728, %v729
      %v732 = vrot.slane %v728, 4
      %v734 = vshrl.u32 %v661, 16
      %v736 = vrot.slane %v734, 7
      %v737 = vshll.u32 %v661, 16
      %v739 = vor.u32 %v736, %v737
      %v740 = vsel %vm690, %v732, %v739
      %v741 = vrot.slane %v736, 4
      %v743 = vshrl.u32 %v662, 16
      %v745 = vrot.slane %v743, 7
      %v746 = vshll.u32 %v662, 16
      %v748 = vor.u32 %v745, %v746
      %v749 = vrot.slane %v745, 4
      %v751 = vshrl.u32 %v663, 16
      %v753 = vrot.slane %v751, 7
      %v754 = vshll.u32 %v663, 16
      %v756 = vor.u32 %v753, %v754
      %v757 = vsel %vm690, %v749, %v756
      %v758 = vrot.slane %v753, 4
      %v760 = vshrl.u32 %v664, 16
      %v762 = vrot.slane %v760, 7
      %v763 = vshll.u32 %v664, 16
      %v765 = vor.u32 %v762, %v763
      %v766 = vrot.slane %v762, 4
      %v768 = vshrl.u32 %v665, 16
      %v770 = vrot.slane %v768, 7
      %v771 = vshll.u32 %v665, 16
      %v773 = vor.u32 %v770, %v771
      %v774 = vsel %vm690, %v766, %v773
      %v775 = vrot.slane %v770, 4
      %v777 = vshrl.u32 %v666, 16
      %v779 = vrot.slane %v777, 7
      %v780 = vshll.u32 %v666, 16
      %v782 = vor.u32 %v779, %v780
      %v783 = vrot.slane %v779, 4
      %v785 = vshrl.u32 %v667, 16
      %v787 = vrot.slane %v785, 7
      %v788 = vshll.u32 %v667, 16
      %v790 = vor.u32 %v787, %v788
      %v791 = vsel %vm690, %v783, %v790
      %v792 = vrot.slane %v787, 4
      %v794 = vshrl.u32 %v668, 16
      %v796 = vrot.slane %v794, 7
      %v797 = vshll.u32 %v668, 16
      %v799 = vor.u32 %v796, %v797
      %v800 = vrot.slane %v796, 4
      %v802 = vshrl.u32 %v669, 16
      %v804 = vrot.slane %v802, 7
      %v805 = vshll.u32 %v669, 16
      %v807 = vor.u32 %v804, %v805
      %v808 = vsel %vm690, %v800, %v807
      %v809 = vrot.slane %v804, 4
      %v811 = vshrl.u32 %v670, 16
      %v813 = vrot.slane %v811, 7
      %v814 = vshll.u32 %v670, 16
      %v816 = vor.u32 %v813, %v814
      %v817 = vrot.slane %v813, 4
      %v819 = vshrl.u32 %v671, 16
      %v821 = vrot.slane %v819, 7
      %v822 = vshll.u32 %v671, 16
      %v824 = vor.u32 %v821, %v822
      %v825 = vsel %vm690, %v817, %v824
      %v826 = vrot.slane %v821, 4
      %v828 = vshrl.u32 %v672, 16
      %v830 = vrot.slane %v828, 7
      %v831 = vshll.u32 %v672, 16
      %v833 = vor.u32 %v830, %v831
      %v834 = vrot.slane %v830, 4
      %v836 = vshrl.u32 %v673, 16
      %v838 = vrot.slane %v836, 7
      %v839 = vshll.u32 %v673, 16
      %v841 = vor.u32 %v838, %v839
      %v842 = vsel %vm690, %v834, %v841
      %v843 = vrot.slane %v838, 4
      %v845 = vshrl.u32 %v674, 16
      %v847 = vrot.slane %v845, 7
      %v848 = vshll.u32 %v674, 16
      %v850 = vor.u32 %v847, %v848
      %v851 = vrot.slane %v847, 4
      %v853 = vshrl.u32 %v675, 16
      %v855 = vrot.slane %v853, 7
      %v856 = vshll.u32 %v675, 16
      %v858 = vor.u32 %v855, %v856
      %v859 = vsel %vm690, %v851, %v858
      %v860 = vrot.slane %v855, 4
      %v862 = vshrl.u32 %v676, 16
      %v864 = vrot.slane %v862, 7
      %v865 = vshll.u32 %v676, 16
      %v867 = vor.u32 %v864, %v865
      %v868 = vrot.slane %v864, 4
      %v870 = vshrl.u32 %v677, 16
      %v872 = vrot.slane %v870, 7
      %v873 = vshll.u32 %v677, 16
      %v875 = vor.u32 %v872, %v873
      %v876 = vsel %vm690, %v868, %v875
      %v877 = vrot.slane %v872, 4
      %v879 = vshrl.u32 %v678, 16
      %v881 = vrot.slane %v879, 7
      %v882 = vshll.u32 %v678, 16
      %v884 = vor.u32 %v881, %v882
      %v885 = vrot.slane %v881, 4
      %v887 = vshrl.u32 %v679, 16
      %v889 = vrot.slane %v887, 7
      %v890 = vshll.u32 %v679, 16
      %v892 = vor.u32 %v889, %v890
      %v893 = vsel %vm690, %v885, %v892
      %v894 = vrot.slane %v889, 4
      %v896 = vshrl.u32 %v680, 16
      %v898 = vrot.slane %v896, 7
      %v899 = vshll.u32 %v680, 16
      %v901 = vor.u32 %v898, %v899
      %v902 = vrot.slane %v898, 4
      %v904 = vshrl.u32 %v681, 16
      %v906 = vrot.slane %v904, 7
      %v907 = vshll.u32 %v681, 16
      %v909 = vor.u32 %v906, %v907
      %v910 = vsel %vm690, %v902, %v909
      %v911 = vrot.slane %v906, 4
      %v913 = vshrl.u32 %v682, 16
      %v915 = vrot.slane %v913, 7
      %v916 = vshll.u32 %v682, 16
      %v918 = vor.u32 %v915, %v916
      %v919 = vrot.slane %v915, 4
      %v921 = vshrl.u32 %v683, 16
      %v923 = vrot.slane %v921, 7
      %v924 = vshll.u32 %v683, 16
      %v926 = vor.u32 %v923, %v924
      %v927 = vsel %vm690, %v919, %v926
      %v928 = vrot.slane %v923, 4
      %v930 = vshrl.u32 %v684, 16
      %v932 = vrot.slane %v930, 7
      %v933 = vshll.u32 %v684, 16
      %v935 = vor.u32 %v932, %v933
      %v936 = vrot.slane %v932, 4
      %v938 = vshrl.u32 %v685, 16
      %v940 = vrot.slane %v938, 7
      %v941 = vshll.u32 %v685, 16
      %v943 = vor.u32 %v940, %v941
      %v944 = vsel %vm690, %v936, %v943
      %v945 = vrot.slane %v940, 4
      %v947 = vshrl.u32 %v686, 16
      %v949 = vrot.slane %v947, 7
      %v950 = vshll.u32 %v686, 16
      %v952 = vor.u32 %v949, %v950
      %v953 = vrot.slane %v949, 4
      %v955 = vshrl.u32 %v687, 16
      %v957 = vrot.slane %v955, 7
      %v958 = vshll.u32 %v687, 16
      %v960 = vor.u32 %v957, %v958
      %v961 = vsel %vm690, %v953, %v960
      %v962 = vrot.slane %v957, 4
      %s1011 = scalar_lea.vmem [#allocation2], 12
      %vm1012 = vcmask 1043456
      %vm1013 = vsmask.f32 7938
      %vm1014 = vmand %vm1012, %vm1013
      %v1015 = vld [vmem:[%s1011] sm:$0xf]
      %v1016 = vsel %vm1014, %v697, %v1015
      %1017 = vst [vmem:[%s1011] sm:$0xf] %v1016
      %1018 = vst [vmem:[%s1011 + $0x4] sm:$0xf] %v706
      %vm1019 = vcmask 1040384
      %vm1020 = vmand %vm1019, %vm688
      %v1021 = vld [vmem:[%s1011 + $0x8] sm:$0x1]
      %v1022 = vsel %vm1020, %v707, %v1021
      %1023 = vst [vmem:[%s1011 + $0x8] sm:$0x1] %v1022
      %v1024 = vld [vmem:[%s1011 + $0xc] sm:$0xf]
      %v1025 = vsel %vm1014, %v714, %v1024
      %1026 = vst [vmem:[%s1011 + $0xc] sm:$0xf] %v1025
      %1027 = vst [vmem:[%s1011 + $0x10] sm:$0xf] %v723
      %v1028 = vld [vmem:[%s1011 + $0x14] sm:$0x1]
      %v1029 = vsel %vm1020, %v724, %v1028
      %1030 = vst [vmem:[%s1011 + $0x14] sm:$0x1] %v1029
      %v1031 = vld [vmem:[%s1011 + $0x18] sm:$0xf]
      %v1032 = vsel %vm1014, %v731, %v1031
      %1033 = vst [vmem:[%s1011 + $0x18] sm:$0xf] %v1032
      %1034 = vst [vmem:[%s1011 + $0x1c] sm:$0xf] %v740
      %v1035 = vld [vmem:[%s1011 + $0x20] sm:$0x1]
      %v1036 = vsel %vm1020, %v741, %v1035
      %1037 = vst [vmem:[%s1011 + $0x20] sm:$0x1] %v1036
      %v1038 = vld [vmem:[%s1011 + $0x24] sm:$0xf]
      %v1039 = vsel %vm1014, %v748, %v1038
      %1040 = vst [vmem:[%s1011 + $0x24] sm:$0xf] %v1039
      %1041 = vst [vmem:[%s1011 + $0x28] sm:$0xf] %v757
      %v1042 = vld [vmem:[%s1011 + $0x2c] sm:$0x1]
      %v1043 = vsel %vm1020, %v758, %v1042
      %1044 = vst [vmem:[%s1011 + $0x2c] sm:$0x1] %v1043
      %v1045 = vld [vmem:[%s1011 + $0x30] sm:$0xf]
      %v1046 = vsel %vm1014, %v765, %v1045
      %1047 = vst [vmem:[%s1011 + $0x30] sm:$0xf] %v1046
      %1048 = vst [vmem:[%s1011 + $0x34] sm:$0xf] %v774
      %v1049 = vld [vmem:[%s1011 + $0x38] sm:$0x1]
      %v1050 = vsel %vm1020, %v775, %v1049
      %1051 = vst [vmem:[%s1011 + $0x38] sm:$0x1] %v1050
      %v1052 = vld [vmem:[%s1011 + $0x3c] sm:$0xf]
      %v1053 = vsel %vm1014, %v782, %v1052
      %1054 = vst [vmem:[%s1011 + $0x3c] sm:$0xf] %v1053
      %1055 = vst [vmem:[%s1011 + $0x40] sm:$0xf] %v791
      %v1056 = vld [vmem:[%s1011 + $0x44] sm:$0x1]
      %v1057 = vsel %vm1020, %v792, %v1056
      %1058 = vst [vmem:[%s1011 + $0x44] sm:$0x1] %v1057
      %v1059 = vld [vmem:[%s1011 + $0x48] sm:$0xf]
      %v1060 = vsel %vm1014, %v799, %v1059
      %1061 = vst [vmem:[%s1011 + $0x48] sm:$0xf] %v1060
      %1062 = vst [vmem:[%s1011 + $0x4c] sm:$0xf] %v808
      %v1063 = vld [vmem:[%s1011 + $0x50] sm:$0x1]
      %v1064 = vsel %vm1020, %v809, %v1063
      %1065 = vst [vmem:[%s1011 + $0x50] sm:$0x1] %v1064
      %v1066 = vld [vmem:[%s1011 + $0x54] sm:$0xf]
      %v1067 = vsel %vm1014, %v816, %v1066
      %1068 = vst [vmem:[%s1011 + $0x54] sm:$0xf] %v1067
      %1069 = vst [vmem:[%s1011 + $0x58] sm:$0xf] %v825
      %v1070 = vld [vmem:[%s1011 + $0x5c] sm:$0x1]
      %v1071 = vsel %vm1020, %v826, %v1070
      %1072 = vst [vmem:[%s1011 + $0x5c] sm:$0x1] %v1071
      %v1073 = vld [vmem:[%s1011 + $0x60] sm:$0xf]
      %v1074 = vsel %vm1014, %v833, %v1073
      %1075 = vst [vmem:[%s1011 + $0x60] sm:$0xf] %v1074
      %1076 = vst [vmem:[%s1011 + $0x64] sm:$0xf] %v842
      %v1077 = vld [vmem:[%s1011 + $0x68] sm:$0x1]
      %v1078 = vsel %vm1020, %v843, %v1077
      %1079 = vst [vmem:[%s1011 + $0x68] sm:$0x1] %v1078
      %v1080 = vld [vmem:[%s1011 + $0x6c] sm:$0xf]
      %v1081 = vsel %vm1014, %v850, %v1080
      %1082 = vst [vmem:[%s1011 + $0x6c] sm:$0xf] %v1081
      %1083 = vst [vmem:[%s1011 + $0x70] sm:$0xf] %v859
      %v1084 = vld [vmem:[%s1011 + $0x74] sm:$0x1]
      %v1085 = vsel %vm1020, %v860, %v1084
      %1086 = vst [vmem:[%s1011 + $0x74] sm:$0x1] %v1085
      %v1087 = vld [vmem:[%s1011 + $0x78] sm:$0xf]
      %v1088 = vsel %vm1014, %v867, %v1087
      %1089 = vst [vmem:[%s1011 + $0x78] sm:$0xf] %v1088
      %1090 = vst [vmem:[%s1011 + $0x7c] sm:$0xf] %v876
      %v1091 = vld [vmem:[%s1011 + $0x80] sm:$0x1]
      %v1092 = vsel %vm1020, %v877, %v1091
      %1093 = vst [vmem:[%s1011 + $0x80] sm:$0x1] %v1092
      %v1094 = vld [vmem:[%s1011 + $0x84] sm:$0xf]
      %v1095 = vsel %vm1014, %v884, %v1094
      %1096 = vst [vmem:[%s1011 + $0x84] sm:$0xf] %v1095
      %1097 = vst [vmem:[%s1011 + $0x88] sm:$0xf] %v893
      %v1098 = vld [vmem:[%s1011 + $0x8c] sm:$0x1]
      %v1099 = vsel %vm1020, %v894, %v1098
      %1100 = vst [vmem:[%s1011 + $0x8c] sm:$0x1] %v1099
      %v1101 = vld [vmem:[%s1011 + $0x90] sm:$0xf]
      %v1102 = vsel %vm1014, %v901, %v1101
      %1103 = vst [vmem:[%s1011 + $0x90] sm:$0xf] %v1102
      %1104 = vst [vmem:[%s1011 + $0x94] sm:$0xf] %v910
      %v1105 = vld [vmem:[%s1011 + $0x98] sm:$0x1]
      %v1106 = vsel %vm1020, %v911, %v1105
      %1107 = vst [vmem:[%s1011 + $0x98] sm:$0x1] %v1106
      %v1108 = vld [vmem:[%s1011 + $0x9c] sm:$0xf]
      %v1109 = vsel %vm1014, %v918, %v1108
      %1110 = vst [vmem:[%s1011 + $0x9c] sm:$0xf] %v1109
      %1111 = vst [vmem:[%s1011 + $0xa0] sm:$0xf] %v927
      %v1112 = vld [vmem:[%s1011 + $0xa4] sm:$0x1]
      %v1113 = vsel %vm1020, %v928, %v1112
      %1114 = vst [vmem:[%s1011 + $0xa4] sm:$0x1] %v1113
      %v1115 = vld [vmem:[%s1011 + $0xa8] sm:$0xf]
      %v1116 = vsel %vm1014, %v935, %v1115
      %1117 = vst [vmem:[%s1011 + $0xa8] sm:$0xf] %v1116
      %1118 = vst [vmem:[%s1011 + $0xac] sm:$0xf] %v944
      %v1119 = vld [vmem:[%s1011 + $0xb0] sm:$0x1]
      %v1120 = vsel %vm1020, %v945, %v1119
      %1121 = vst [vmem:[%s1011 + $0xb0] sm:$0x1] %v1120
      %v1122 = vld [vmem:[%s1011 + $0xb4] sm:$0xf]
      %v1123 = vsel %vm1014, %v952, %v1122
      %1124 = vst [vmem:[%s1011 + $0xb4] sm:$0xf] %v1123
      %1125 = vst [vmem:[%s1011 + $0xb8] sm:$0xf] %v961
      %v1126 = vld [vmem:[%s1011 + $0xbc] sm:$0x1]
      %v1127 = vsel %vm1020, %v962, %v1126
      %1128 = vst [vmem:[%s1011 + $0xbc] sm:$0x1] %v1127
      %v1129 = vld [vmem:[#allocation2] sm:$0xf]
      %v1130 = vsel %vm1014, %v952, %v1129
      %1131 = vst [vmem:[#allocation2] sm:$0xf] %v1130
      %1132 = vst [vmem:[#allocation2 + $0x4] sm:$0xf] %v961
      %v1133 = vld [vmem:[#allocation2 + $0x8] sm:$0x1]
      %v1134 = vsel %vm1020, %v962, %v1133
      %1135 = vst [vmem:[#allocation2 + $0x8] sm:$0x1] %v1134
      %s1136 = scalar_lea.vmem [#allocation2], 204
      %v1137 = vld [vmem:[%s1136] sm:$0xf]
      %v1138 = vsel %vm1014, %v697, %v1137
      %1139 = vst [vmem:[%s1136] sm:$0xf] %v1138
      %1140 = vst [vmem:[%s1136 + $0x4] sm:$0xf] %v706
      %v1141 = vld [vmem:[%s1136 + $0x8] sm:$0x1]
      %v1142 = vsel %vm1020, %v707, %v1141
      %1143 = vst [vmem:[%s1136 + $0x8] sm:$0x1] %v1142
      %v1144 = vld [vmem:[#allocation2 + $0x8] sm:$0x1]
      %v1145 = vld [vmem:[#allocation2 + $0x14] sm:$0x1]
      %v1146 = vld [vmem:[#allocation2 + $0x20] sm:$0x1]
      %v1147 = vld [vmem:[#allocation2 + $0x2c] sm:$0x1]
      %v1148 = vld [vmem:[#allocation2 + $0x38] sm:$0x1]
      %v1149 = vld [vmem:[#allocation2 + $0x44] sm:$0x1]
      %v1150 = vld [vmem:[#allocation2 + $0x50] sm:$0x1]
      %v1151 = vld [vmem:[#allocation2 + $0x5c] sm:$0x1]
      %v1152 = vld [vmem:[#allocation2 + $0x68] sm:$0x1]
      %v1153 = vld [vmem:[#allocation2 + $0x74] sm:$0x1]
      %v1154 = vld [vmem:[#allocation2 + $0x80] sm:$0x1]
      %v1155 = vld [vmem:[#allocation2 + $0x8c] sm:$0x1]
      %v1156 = vld [vmem:[#allocation2 + $0x98] sm:$0x1]
      %v1157 = vld [vmem:[#allocation2 + $0xa4] sm:$0x1]
      %v1158 = vld [vmem:[#allocation2 + $0xb0] sm:$0x1]
      %v1159 = vld [vmem:[#allocation2 + $0xbc] sm:$0x1]
      %v1160 = vld [vmem:[#allocation2 + $0xc8] sm:$0x1]
      %v1161 = vld [vmem:[#allocation2 + $0xd4] sm:$0x1]
      %v1162 = vld [vmem:[#allocation2] sm:$0x1]
      %v1163 = vsel %vm1020, %v1144, %v1162
      %1164 = vst [vmem:[#allocation2] sm:$0x1] %v1163
      %v1165 = vld [vmem:[#allocation2 + $0xc] sm:$0x1]
      %v1166 = vsel %vm1020, %v1145, %v1165
      %1167 = vst [vmem:[#allocation2 + $0xc] sm:$0x1] %v1166
      %v1168 = vld [vmem:[#allocation2 + $0x18] sm:$0x1]
      %v1169 = vsel %vm1020, %v1146, %v1168
      %1170 = vst [vmem:[#allocation2 + $0x18] sm:$0x1] %v1169
      %v1171 = vld [vmem:[#allocation2 + $0x24] sm:$0x1]
      %v1172 = vsel %vm1020, %v1147, %v1171
      %1173 = vst [vmem:[#allocation2 + $0x24] sm:$0x1] %v1172
      %v1174 = vld [vmem:[#allocation2 + $0x30] sm:$0x1]
      %v1175 = vsel %vm1020, %v1148, %v1174
      %1176 = vst [vmem:[#allocation2 + $0x30] sm:$0x1] %v1175
      %v1177 = vld [vmem:[#allocation2 + $0x3c] sm:$0x1]
      %v1178 = vsel %vm1020, %v1149, %v1177
      %1179 = vst [vmem:[#allocation2 + $0x3c] sm:$0x1] %v1178
      %v1180 = vld [vmem:[#allocation2 + $0x48] sm:$0x1]
      %v1181 = vsel %vm1020, %v1150, %v1180
      %1182 = vst [vmem:[#allocation2 + $0x48] sm:$0x1] %v1181
      %v1183 = vld [vmem:[#allocation2 + $0x54] sm:$0x1]
      %v1184 = vsel %vm1020, %v1151, %v1183
      %1185 = vst [vmem:[#allocation2 + $0x54] sm:$0x1] %v1184
      %v1186 = vld [vmem:[#allocation2 + $0x60] sm:$0x1]
      %v1187 = vsel %vm1020, %v1152, %v1186
      %1188 = vst [vmem:[#allocation2 + $0x60] sm:$0x1] %v1187
      %v1189 = vld [vmem:[#allocation2 + $0x6c] sm:$0x1]
      %v1190 = vsel %vm1020, %v1153, %v1189
      %1191 = vst [vmem:[#allocation2 + $0x6c] sm:$0x1] %v1190
      %v1192 = vld [vmem:[#allocation2 + $0x78] sm:$0x1]
      %v1193 = vsel %vm1020, %v1154, %v1192
      %1194 = vst [vmem:[#allocation2 + $0x78] sm:$0x1] %v1193
      %v1195 = vld [vmem:[#allocation2 + $0x84] sm:$0x1]
      %v1196 = vsel %vm1020, %v1155, %v1195
      %1197 = vst [vmem:[#allocation2 + $0x84] sm:$0x1] %v1196
      %v1198 = vld [vmem:[#allocation2 + $0x90] sm:$0x1]
      %v1199 = vsel %vm1020, %v1156, %v1198
      %1200 = vst [vmem:[#allocation2 + $0x90] sm:$0x1] %v1199
      %v1201 = vld [vmem:[#allocation2 + $0x9c] sm:$0x1]
      %v1202 = vsel %vm1020, %v1157, %v1201
      %1203 = vst [vmem:[#allocation2 + $0x9c] sm:$0x1] %v1202
      %v1204 = vld [vmem:[#allocation2 + $0xa8] sm:$0x1]
      %v1205 = vsel %vm1020, %v1158, %v1204
      %1206 = vst [vmem:[#allocation2 + $0xa8] sm:$0x1] %v1205
      %v1207 = vld [vmem:[#allocation2 + $0xb4] sm:$0x1]
      %v1208 = vsel %vm1020, %v1159, %v1207
      %1209 = vst [vmem:[#allocation2 + $0xb4] sm:$0x1] %v1208
      %v1210 = vld [vmem:[#allocation2 + $0xc0] sm:$0x1]
      %v1211 = vsel %vm1020, %v1160, %v1210
      %1212 = vst [vmem:[#allocation2 + $0xc0] sm:$0x1] %v1211
      %v1213 = vld [vmem:[#allocation2 + $0xcc] sm:$0x1]
      %v1214 = vsel %vm1020, %v1161, %v1213
      %1215 = vst [vmem:[#allocation2 + $0xcc] sm:$0x1] %v1214
      %v1216 = vld [vmem:[#allocation2] sm:$0x1]
      %v1217 = vld [vmem:[#allocation2 + $0xc] sm:$0x1]
      %v1218 = vld [vmem:[#allocation2 + $0x18] sm:$0x1]
      %v1219 = vld [vmem:[#allocation2 + $0x24] sm:$0x1]
      %v1220 = vld [vmem:[#allocation2 + $0x30] sm:$0x1]
      %v1221 = vld [vmem:[#allocation2 + $0x3c] sm:$0x1]
      %v1222 = vld [vmem:[#allocation2 + $0x48] sm:$0x1]
      %v1223 = vld [vmem:[#allocation2 + $0x54] sm:$0x1]
      %v1224 = vld [vmem:[#allocation2 + $0x60] sm:$0x1]
      %v1225 = vld [vmem:[#allocation2 + $0x6c] sm:$0x1]
      %v1226 = vld [vmem:[#allocation2 + $0x78] sm:$0x1]
      %v1227 = vld [vmem:[#allocation2 + $0x84] sm:$0x1]
      %v1228 = vld [vmem:[#allocation2 + $0x90] sm:$0x1]
      %v1229 = vld [vmem:[#allocation2 + $0x9c] sm:$0x1]
      %v1230 = vld [vmem:[#allocation2 + $0xa8] sm:$0x1]
      %v1231 = vld [vmem:[#allocation2 + $0xb4] sm:$0x1]
      %v1232 = vld [vmem:[#allocation2 + $0xc0] sm:$0x1]
      %v1233 = vld [vmem:[#allocation2 + $0xcc] sm:$0x1]
      %vm1234 = vmand %vm1019, %vm1013
      %v1235 = vld [vmem:[#allocation2 + $0x8] sm:$0x1]
      %v1236 = vsel %vm1234, %v1216, %v1235
      %1237 = vst [vmem:[#allocation2 + $0x8] sm:$0x1] %v1236
      %v1238 = vld [vmem:[#allocation2 + $0x14] sm:$0x1]
      %v1239 = vsel %vm1234, %v1217, %v1238
      %1240 = vst [vmem:[#allocation2 + $0x14] sm:$0x1] %v1239
      %v1241 = vld [vmem:[#allocation2 + $0x20] sm:$0x1]
      %v1242 = vsel %vm1234, %v1218, %v1241
      %1243 = vst [vmem:[#allocation2 + $0x20] sm:$0x1] %v1242
      %v1244 = vld [vmem:[#allocation2 + $0x2c] sm:$0x1]
      %v1245 = vsel %vm1234, %v1219, %v1244
      %1246 = vst [vmem:[#allocation2 + $0x2c] sm:$0x1] %v1245
      %v1247 = vld [vmem:[#allocation2 + $0x38] sm:$0x1]
      %v1248 = vsel %vm1234, %v1220, %v1247
      %1249 = vst [vmem:[#allocation2 + $0x38] sm:$0x1] %v1248
      %v1250 = vld [vmem:[#allocation2 + $0x44] sm:$0x1]
      %v1251 = vsel %vm1234, %v1221, %v1250
      %1252 = vst [vmem:[#allocation2 + $0x44] sm:$0x1] %v1251
      %v1253 = vld [vmem:[#allocation2 + $0x50] sm:$0x1]
      %v1254 = vsel %vm1234, %v1222, %v1253
      %1255 = vst [vmem:[#allocation2 + $0x50] sm:$0x1] %v1254
      %v1256 = vld [vmem:[#allocation2 + $0x5c] sm:$0x1]
      %v1257 = vsel %vm1234, %v1223, %v1256
      %1258 = vst [vmem:[#allocation2 + $0x5c] sm:$0x1] %v1257
      %v1259 = vld [vmem:[#allocation2 + $0x68] sm:$0x1]
      %v1260 = vsel %vm1234, %v1224, %v1259
      %1261 = vst [vmem:[#allocation2 + $0x68] sm:$0x1] %v1260
      %v1262 = vld [vmem:[#allocation2 + $0x74] sm:$0x1]
      %v1263 = vsel %vm1234, %v1225, %v1262
      %1264 = vst [vmem:[#allocation2 + $0x74] sm:$0x1] %v1263
      %v1265 = vld [vmem:[#allocation2 + $0x80] sm:$0x1]
      %v1266 = vsel %vm1234, %v1226, %v1265
      %1267 = vst [vmem:[#allocation2 + $0x80] sm:$0x1] %v1266
      %v1268 = vld [vmem:[#allocation2 + $0x8c] sm:$0x1]
      %v1269 = vsel %vm1234, %v1227, %v1268
      %1270 = vst [vmem:[#allocation2 + $0x8c] sm:$0x1] %v1269
      %v1271 = vld [vmem:[#allocation2 + $0x98] sm:$0x1]
      %v1272 = vsel %vm1234, %v1228, %v1271
      %1273 = vst [vmem:[#allocation2 + $0x98] sm:$0x1] %v1272
      %v1274 = vld [vmem:[#allocation2 + $0xa4] sm:$0x1]
      %v1275 = vsel %vm1234, %v1229, %v1274
      %1276 = vst [vmem:[#allocation2 + $0xa4] sm:$0x1] %v1275
      %v1277 = vld [vmem:[#allocation2 + $0xb0] sm:$0x1]
      %v1278 = vsel %vm1234, %v1230, %v1277
      %1279 = vst [vmem:[#allocation2 + $0xb0] sm:$0x1] %v1278
      %v1280 = vld [vmem:[#allocation2 + $0xbc] sm:$0x1]
      %v1281 = vsel %vm1234, %v1231, %v1280
      %1282 = vst [vmem:[#allocation2 + $0xbc] sm:$0x1] %v1281
      %v1283 = vld [vmem:[#allocation2 + $0xc8] sm:$0x1]
      %v1284 = vsel %vm1234, %v1232, %v1283
      %1285 = vst [vmem:[#allocation2 + $0xc8] sm:$0x1] %v1284
      %v1286 = vld [vmem:[#allocation2 + $0xd4] sm:$0x1]
      %v1287 = vsel %vm1234, %v1233, %v1286
      %1288 = vst [vmem:[#allocation2 + $0xd4] sm:$0x1] %v1287
      %v1289 = vld [vmem:[#allocation2] sm:$0xf]
      %v1290 = vld [vmem:[#allocation2 + $0x4] sm:$0xf]
      %v1291 = vld [vmem:[#allocation2 + $0xc] sm:$0xf]
      %v1292 = vld [vmem:[#allocation2 + $0x10] sm:$0xf]
      %v1293 = vld [vmem:[#allocation2 + $0x18] sm:$0xf]
      %v1294 = vld [vmem:[#allocation2 + $0x1c] sm:$0xf]
      %v1295 = vld [vmem:[#allocation2 + $0x24] sm:$0xf]
      %v1296 = vld [vmem:[#allocation2 + $0x28] sm:$0xf]
      %v1297 = vld [vmem:[#allocation2 + $0x30] sm:$0xf]
      %v1298 = vld [vmem:[#allocation2 + $0x34] sm:$0xf]
      %v1299 = vld [vmem:[#allocation2 + $0x3c] sm:$0xf]
      %v1300 = vld [vmem:[#allocation2 + $0x40] sm:$0xf]
      %v1301 = vld [vmem:[#allocation2 + $0x48] sm:$0xf]
      %v1302 = vld [vmem:[#allocation2 + $0x4c] sm:$0xf]
      %v1303 = vld [vmem:[#allocation2 + $0x54] sm:$0xf]
      %v1304 = vld [vmem:[#allocation2 + $0x58] sm:$0xf]
      %v1305 = vld [vmem:[#allocation2 + $0x60] sm:$0xf]
      %v1306 = vld [vmem:[#allocation2 + $0x64] sm:$0xf]
      %v1307 = vld [vmem:[#allocation2 + $0x6c] sm:$0xf]
      %v1308 = vld [vmem:[#allocation2 + $0x70] sm:$0xf]
      %v1309 = vld [vmem:[#allocation2 + $0x78] sm:$0xf]
      %v1310 = vld [vmem:[#allocation2 + $0x7c] sm:$0xf]
      %v1311 = vld [vmem:[#allocation2 + $0x84] sm:$0xf]
      %v1312 = vld [vmem:[#allocation2 + $0x88] sm:$0xf]
      %v1313 = vld [vmem:[#allocation2 + $0x90] sm:$0xf]
      %v1314 = vld [vmem:[#allocation2 + $0x94] sm:$0xf]
      %v1315 = vld [vmem:[#allocation2 + $0x9c] sm:$0xf]
      %v1316 = vld [vmem:[#allocation2 + $0xa0] sm:$0xf]
      %v1317 = vld [vmem:[#allocation2 + $0xa8] sm:$0xf]
      %v1318 = vld [vmem:[#allocation2 + $0xac] sm:$0xf]
      %v1319 = vld [vmem:[#allocation2 + $0xb4] sm:$0xf]
      %v1320 = vld [vmem:[#allocation2 + $0xb8] sm:$0xf]
      %v1353 = vunpack.c.l.b16 %v1289
      %v1354 = vunpack.c.l.b16 %v1290
      %v1355 = vunpack.c.l.b16 %v1291
      %v1356 = vunpack.c.l.b16 %v1292
      %v1357 = vunpack.c.l.b16 %v1293
      %v1358 = vunpack.c.l.b16 %v1294
      %v1359 = vunpack.c.l.b16 %v1295
      %v1360 = vunpack.c.l.b16 %v1296
      %v1361 = vunpack.c.l.b16 %v1297
      %v1362 = vunpack.c.l.b16 %v1298
      %v1363 = vunpack.c.l.b16 %v1299
      %v1364 = vunpack.c.l.b16 %v1300
      %v1365 = vunpack.c.l.b16 %v1301
      %v1366 = vunpack.c.l.b16 %v1302
      %v1367 = vunpack.c.l.b16 %v1303
      %v1368 = vunpack.c.l.b16 %v1304
      %v1369 = vunpack.c.l.b16 %v1305
      %v1370 = vunpack.c.l.b16 %v1306
      %v1371 = vunpack.c.l.b16 %v1307
      %v1372 = vunpack.c.l.b16 %v1308
      %v1373 = vunpack.c.l.b16 %v1309
      %v1374 = vunpack.c.l.b16 %v1310
      %v1375 = vunpack.c.l.b16 %v1311
      %v1376 = vunpack.c.l.b16 %v1312
      %v1377 = vunpack.c.l.b16 %v1313
      %v1378 = vunpack.c.l.b16 %v1314
      %v1379 = vunpack.c.l.b16 %v1315
      %v1380 = vunpack.c.l.b16 %v1316
      %v1381 = vunpack.c.l.b16 %v1317
      %v1382 = vunpack.c.l.b16 %v1318
      %v1383 = vunpack.c.l.b16 %v1319
      %v1384 = vunpack.c.l.b16 %v1320
      %v1385 = vpack.c.b16 %v1354, %v1353
      %v1386 = vpack.c.b16 %v1356, %v1355
      %v1387 = vpack.c.b16 %v1358, %v1357
      %v1388 = vpack.c.b16 %v1360, %v1359
      %v1389 = vpack.c.b16 %v1362, %v1361
      %v1390 = vpack.c.b16 %v1364, %v1363
      %v1391 = vpack.c.b16 %v1366, %v1365
      %v1392 = vpack.c.b16 %v1368, %v1367
      %v1393 = vpack.c.b16 %v1370, %v1369
      %v1394 = vpack.c.b16 %v1372, %v1371
      %v1395 = vpack.c.b16 %v1374, %v1373
      %v1396 = vpack.c.b16 %v1376, %v1375
      %v1397 = vpack.c.b16 %v1378, %v1377
      %v1398 = vpack.c.b16 %v1380, %v1379
      %v1399 = vpack.c.b16 %v1382, %v1381
      %v1400 = vpack.c.b16 %v1384, %v1383
      %1417 = vst [vmem:[#allocation3] sm:$0xff] %v1385
      %1418 = vst [vmem:[#allocation3 + $0x48] sm:$0xff] %v1386
      %1419 = vst [vmem:[#allocation3 + $0x90] sm:$0xff] %v1387
      %1420 = vst [vmem:[#allocation3 + $0xd8] sm:$0xff] %v1388
      %1421 = vst [vmem:[#allocation3 + $0x120] sm:$0xff] %v1389
      %1422 = vst [vmem:[#allocation3 + $0x168] sm:$0xff] %v1390
      %1423 = vst [vmem:[#allocation3 + $0x1b0] sm:$0xff] %v1391
      %1424 = vst [vmem:[#allocation3 + $0x1f8] sm:$0xff] %v1392
      %1425 = vst [vmem:[#allocation3 + $0x240] sm:$0xff] %v1393
      %1426 = vst [vmem:[#allocation3 + $0x288] sm:$0xff] %v1394
      %1427 = vst [vmem:[#allocation3 + $0x2d0] sm:$0xff] %v1395
      %1428 = vst [vmem:[#allocation3 + $0x318] sm:$0xff] %v1396
      %1429 = vst [vmem:[#allocation3 + $0x360] sm:$0xff] %v1397
      %1430 = vst [vmem:[#allocation3 + $0x3a8] sm:$0xff] %v1398
      %1431 = vst [vmem:[#allocation3 + $0x3f0] sm:$0xff] %v1399
      %1432 = vst [vmem:[#allocation3 + $0x438] sm:$0xff] %v1400
      %v1433 = vld [vmem:[#allocation2] sm:$0xf]
      %v1434 = vld [vmem:[#allocation2 + $0x4] sm:$0xf]
      %v1435 = vld [vmem:[#allocation2 + $0x8] sm:$0x1]
      %v1436 = vld [vmem:[#allocation2 + $0xc] sm:$0xf]
      %v1437 = vld [vmem:[#allocation2 + $0x10] sm:$0xf]
      %v1438 = vld [vmem:[#allocation2 + $0x14] sm:$0x1]
      %v1439 = vld [vmem:[#allocation2 + $0x18] sm:$0xf]
      %v1440 = vld [vmem:[#allocation2 + $0x1c] sm:$0xf]
      %v1441 = vld [vmem:[#allocation2 + $0x20] sm:$0x1]
      %v1442 = vld [vmem:[#allocation2 + $0x24] sm:$0xf]
      %v1443 = vld [vmem:[#allocation2 + $0x28] sm:$0xf]
      %v1444 = vld [vmem:[#allocation2 + $0x2c] sm:$0x1]
      %v1445 = vld [vmem:[#allocation2 + $0x30] sm:$0xf]
      %v1446 = vld [vmem:[#allocation2 + $0x34] sm:$0xf]
      %v1447 = vld [vmem:[#allocation2 + $0x38] sm:$0x1]
      %v1448 = vld [vmem:[#allocation2 + $0x3c] sm:$0xf]
      %v1449 = vld [vmem:[#allocation2 + $0x40] sm:$0xf]
      %v1450 = vld [vmem:[#allocation2 + $0x44] sm:$0x1]
      %v1451 = vld [vmem:[#allocation2 + $0x48] sm:$0xf]
      %v1452 = vld [vmem:[#allocation2 + $0x4c] sm:$0xf]
      %v1453 = vld [vmem:[#allocation2 + $0x50] sm:$0x1]
      %v1454 = vld [vmem:[#allocation2 + $0x54] sm:$0xf]
      %v1455 = vld [vmem:[#allocation2 + $0x58] sm:$0xf]
      %v1456 = vld [vmem:[#allocation2 + $0x5c] sm:$0x1]
      %v1457 = vld [vmem:[#allocation2 + $0x60] sm:$0xf]
      %v1458 = vld [vmem:[#allocation2 + $0x64] sm:$0xf]
      %v1459 = vld [vmem:[#allocation2 + $0x68] sm:$0x1]
      %v1460 = vld [vmem:[#allocation2 + $0x6c] sm:$0xf]
      %v1461 = vld [vmem:[#allocation2 + $0x70] sm:$0xf]
      %v1462 = vld [vmem:[#allocation2 + $0x74] sm:$0x1]
      %v1463 = vld [vmem:[#allocation2 + $0x78] sm:$0xf]
      %v1464 = vld [vmem:[#allocation2 + $0x7c] sm:$0xf]
      %v1465 = vld [vmem:[#allocation2 + $0x80] sm:$0x1]
      %v1466 = vld [vmem:[#allocation2 + $0x84] sm:$0xf]
      %v1467 = vld [vmem:[#allocation2 + $0x88] sm:$0xf]
      %v1468 = vld [vmem:[#allocation2 + $0x8c] sm:$0x1]
      %v1469 = vld [vmem:[#allocation2 + $0x90] sm:$0xf]
      %v1470 = vld [vmem:[#allocation2 + $0x94] sm:$0xf]
      %v1471 = vld [vmem:[#allocation2 + $0x98] sm:$0x1]
      %v1472 = vld [vmem:[#allocation2 + $0x9c] sm:$0xf]
      %v1473 = vld [vmem:[#allocation2 + $0xa0] sm:$0xf]
      %v1474 = vld [vmem:[#allocation2 + $0xa4] sm:$0x1]
      %v1475 = vld [vmem:[#allocation2 + $0xa8] sm:$0xf]
      %v1476 = vld [vmem:[#allocation2 + $0xac] sm:$0xf]
      %v1477 = vld [vmem:[#allocation2 + $0xb0] sm:$0x1]
      %v1478 = vld [vmem:[#allocation2 + $0xb4] sm:$0xf]
      %v1479 = vld [vmem:[#allocation2 + $0xb8] sm:$0xf]
      %v1480 = vld [vmem:[#allocation2 + $0xbc] sm:$0x1]
      %vm1481 = vsmask.f32 3328
      %vm1482 = vsmask.f32 7440
      %vm1483 = vmor %vm1481, %vm1482
      %v1485 = vshrl.u32 %v1433, 16
      %v1487 = vrot.slane %v1485, 4
      %v1488 = vshll.u32 %v1433, 16
      %v1490 = vrot.slane %v1488, 5
      %v1491 = vor.u32 %v1487, %v1490
      %v1492 = vrot.slane %v1491, 4
      %v1494 = vshll.u32 %v1434, 16
      %v1496 = vrot.slane %v1494, 5
      %v1497 = vsel %vm1483, %v1492, %v1496
      %v1498 = vshrl.u32 %v1434, 16
      %v1500 = vrot.slane %v1498, 4
      %v1501 = vor.u32 %v1500, %v1496
      %v1502 = vrot.slane %v1501, 4
      %v1504 = vshll.u32 %v1435, 16
      %v1506 = vrot.slane %v1504, 5
      %v1507 = vsel %vm1483, %v1502, %v1506
      %v1509 = vshrl.u32 %v1436, 16
      %v1511 = vrot.slane %v1509, 4
      %v1512 = vshll.u32 %v1436, 16
      %v1514 = vrot.slane %v1512, 5
      %v1515 = vor.u32 %v1511, %v1514
      %v1516 = vrot.slane %v1515, 4
      %v1518 = vshll.u32 %v1437, 16
      %v1520 = vrot.slane %v1518, 5
      %v1521 = vsel %vm1483, %v1516, %v1520
      %v1522 = vshrl.u32 %v1437, 16
      %v1524 = vrot.slane %v1522, 4
      %v1525 = vor.u32 %v1524, %v1520
      %v1526 = vrot.slane %v1525, 4
      %v1528 = vshll.u32 %v1438, 16
      %v1530 = vrot.slane %v1528, 5
      %v1531 = vsel %vm1483, %v1526, %v1530
      %v1533 = vshrl.u32 %v1439, 16
      %v1535 = vrot.slane %v1533, 4
      %v1536 = vshll.u32 %v1439, 16
      %v1538 = vrot.slane %v1536, 5
      %v1539 = vor.u32 %v1535, %v1538
      %v1540 = vrot.slane %v1539, 4
      %v1542 = vshll.u32 %v1440, 16
      %v1544 = vrot.slane %v1542, 5
      %v1545 = vsel %vm1483, %v1540, %v1544
      %v1546 = vshrl.u32 %v1440, 16
      %v1548 = vrot.slane %v1546, 4
      %v1549 = vor.u32 %v1548, %v1544
      %v1550 = vrot.slane %v1549, 4
      %v1552 = vshll.u32 %v1441, 16
      %v1554 = vrot.slane %v1552, 5
      %v1555 = vsel %vm1483, %v1550, %v1554
      %v1557 = vshrl.u32 %v1442, 16
      %v1559 = vrot.slane %v1557, 4
      %v1560 = vshll.u32 %v1442, 16
      %v1562 = vrot.slane %v1560, 5
      %v1563 = vor.u32 %v1559, %v1562
      %v1564 = vrot.slane %v1563, 4
      %v1566 = vshll.u32 %v1443, 16
      %v1568 = vrot.slane %v1566, 5
      %v1569 = vsel %vm1483, %v1564, %v1568
      %v1570 = vshrl.u32 %v1443, 16
      %v1572 = vrot.slane %v1570, 4
      %v1573 = vor.u32 %v1572, %v1568
      %v1574 = vrot.slane %v1573, 4
      %v1576 = vshll.u32 %v1444, 16
      %v1578 = vrot.slane %v1576, 5
      %v1579 = vsel %vm1483, %v1574, %v1578
      %v1581 = vshrl.u32 %v1445, 16
      %v1583 = vrot.slane %v1581, 4
      %v1584 = vshll.u32 %v1445, 16
      %v1586 = vrot.slane %v1584, 5
      %v1587 = vor.u32 %v1583, %v1586
      %v1588 = vrot.slane %v1587, 4
      %v1590 = vshll.u32 %v1446, 16
      %v1592 = vrot.slane %v1590, 5
      %v1593 = vsel %vm1483, %v1588, %v1592
      %v1594 = vshrl.u32 %v1446, 16
      %v1596 = vrot.slane %v1594, 4
      %v1597 = vor.u32 %v1596, %v1592
      %v1598 = vrot.slane %v1597, 4
      %v1600 = vshll.u32 %v1447, 16
      %v1602 = vrot.slane %v1600, 5
      %v1603 = vsel %vm1483, %v1598, %v1602
      %v1605 = vshrl.u32 %v1448, 16
      %v1607 = vrot.slane %v1605, 4
      %v1608 = vshll.u32 %v1448, 16
      %v1610 = vrot.slane %v1608, 5
      %v1611 = vor.u32 %v1607, %v1610
      %v1612 = vrot.slane %v1611, 4
      %v1614 = vshll.u32 %v1449, 16
      %v1616 = vrot.slane %v1614, 5
      %v1617 = vsel %vm1483, %v1612, %v1616
      %v1618 = vshrl.u32 %v1449, 16
      %v1620 = vrot.slane %v1618, 4
      %v1621 = vor.u32 %v1620, %v1616
      %v1622 = vrot.slane %v1621, 4
      %v1624 = vshll.u32 %v1450, 16
      %v1626 = vrot.slane %v1624, 5
      %v1627 = vsel %vm1483, %v1622, %v1626
      %v1629 = vshrl.u32 %v1451, 16
      %v1631 = vrot.slane %v1629, 4
      %v1632 = vshll.u32 %v1451, 16
      %v1634 = vrot.slane %v1632, 5
      %v1635 = vor.u32 %v1631, %v1634
      %v1636 = vrot.slane %v1635, 4
      %v1638 = vshll.u32 %v1452, 16
      %v1640 = vrot.slane %v1638, 5
      %v1641 = vsel %vm1483, %v1636, %v1640
      %v1642 = vshrl.u32 %v1452, 16
      %v1644 = vrot.slane %v1642, 4
      %v1645 = vor.u32 %v1644, %v1640
      %v1646 = vrot.slane %v1645, 4
      %v1648 = vshll.u32 %v1453, 16
      %v1650 = vrot.slane %v1648, 5
      %v1651 = vsel %vm1483, %v1646, %v1650
      %v1653 = vshrl.u32 %v1454, 16
      %v1655 = vrot.slane %v1653, 4
      %v1656 = vshll.u32 %v1454, 16
      %v1658 = vrot.slane %v1656, 5
      %v1659 = vor.u32 %v1655, %v1658
      %v1660 = vrot.slane %v1659, 4
      %v1662 = vshll.u32 %v1455, 16
      %v1664 = vrot.slane %v1662, 5
      %v1665 = vsel %vm1483, %v1660, %v1664
      %v1666 = vshrl.u32 %v1455, 16
      %v1668 = vrot.slane %v1666, 4
      %v1669 = vor.u32 %v1668, %v1664
      %v1670 = vrot.slane %v1669, 4
      %v1672 = vshll.u32 %v1456, 16
      %v1674 = vrot.slane %v1672, 5
      %v1675 = vsel %vm1483, %v1670, %v1674
      %v1677 = vshrl.u32 %v1457, 16
      %v1679 = vrot.slane %v1677, 4
      %v1680 = vshll.u32 %v1457, 16
      %v1682 = vrot.slane %v1680, 5
      %v1683 = vor.u32 %v1679, %v1682
      %v1684 = vrot.slane %v1683, 4
      %v1686 = vshll.u32 %v1458, 16
      %v1688 = vrot.slane %v1686, 5
      %v1689 = vsel %vm1483, %v1684, %v1688
      %v1690 = vshrl.u32 %v1458, 16
      %v1692 = vrot.slane %v1690, 4
      %v1693 = vor.u32 %v1692, %v1688
      %v1694 = vrot.slane %v1693, 4
      %v1696 = vshll.u32 %v1459, 16
      %v1698 = vrot.slane %v1696, 5
      %v1699 = vsel %vm1483, %v1694, %v1698
      %v1701 = vshrl.u32 %v1460, 16
      %v1703 = vrot.slane %v1701, 4
      %v1704 = vshll.u32 %v1460, 16
      %v1706 = vrot.slane %v1704, 5
      %v1707 = vor.u32 %v1703, %v1706
      %v1708 = vrot.slane %v1707, 4
      %v1710 = vshll.u32 %v1461, 16
      %v1712 = vrot.slane %v1710, 5
      %v1713 = vsel %vm1483, %v1708, %v1712
      %v1714 = vshrl.u32 %v1461, 16
      %v1716 = vrot.slane %v1714, 4
      %v1717 = vor.u32 %v1716, %v1712
      %v1718 = vrot.slane %v1717, 4
      %v1720 = vshll.u32 %v1462, 16
      %v1722 = vrot.slane %v1720, 5
      %v1723 = vsel %vm1483, %v1718, %v1722
      %v1725 = vshrl.u32 %v1463, 16
      %v1727 = vrot.slane %v1725, 4
      %v1728 = vshll.u32 %v1463, 16
      %v1730 = vrot.slane %v1728, 5
      %v1731 = vor.u32 %v1727, %v1730
      %v1732 = vrot.slane %v1731, 4
      %v1734 = vshll.u32 %v1464, 16
      %v1736 = vrot.slane %v1734, 5
      %v1737 = vsel %vm1483, %v1732, %v1736
      %v1738 = vshrl.u32 %v1464, 16
      %v1740 = vrot.slane %v1738, 4
      %v1741 = vor.u32 %v1740, %v1736
      %v1742 = vrot.slane %v1741, 4
      %v1744 = vshll.u32 %v1465, 16
      %v1746 = vrot.slane %v1744, 5
      %v1747 = vsel %vm1483, %v1742, %v1746
      %v1749 = vshrl.u32 %v1466, 16
      %v1751 = vrot.slane %v1749, 4
      %v1752 = vshll.u32 %v1466, 16
      %v1754 = vrot.slane %v1752, 5
      %v1755 = vor.u32 %v1751, %v1754
      %v1756 = vrot.slane %v1755, 4
      %v1758 = vshll.u32 %v1467, 16
      %v1760 = vrot.slane %v1758, 5
      %v1761 = vsel %vm1483, %v1756, %v1760
      %v1762 = vshrl.u32 %v1467, 16
      %v1764 = vrot.slane %v1762, 4
      %v1765 = vor.u32 %v1764, %v1760
      %v1766 = vrot.slane %v1765, 4
      %v1768 = vshll.u32 %v1468, 16
      %v1770 = vrot.slane %v1768, 5
      %v1771 = vsel %vm1483, %v1766, %v1770
      %v1773 = vshrl.u32 %v1469, 16
      %v1775 = vrot.slane %v1773, 4
      %v1776 = vshll.u32 %v1469, 16
      %v1778 = vrot.slane %v1776, 5
      %v1779 = vor.u32 %v1775, %v1778
      %v1780 = vrot.slane %v1779, 4
      %v1782 = vshll.u32 %v1470, 16
      %v1784 = vrot.slane %v1782, 5
      %v1785 = vsel %vm1483, %v1780, %v1784
      %v1786 = vshrl.u32 %v1470, 16
      %v1788 = vrot.slane %v1786, 4
      %v1789 = vor.u32 %v1788, %v1784
      %v1790 = vrot.slane %v1789, 4
      %v1792 = vshll.u32 %v1471, 16
      %v1794 = vrot.slane %v1792, 5
      %v1795 = vsel %vm1483, %v1790, %v1794
      %v1797 = vshrl.u32 %v1472, 16
      %v1799 = vrot.slane %v1797, 4
      %v1800 = vshll.u32 %v1472, 16
      %v1802 = vrot.slane %v1800, 5
      %v1803 = vor.u32 %v1799, %v1802
      %v1804 = vrot.slane %v1803, 4
      %v1806 = vshll.u32 %v1473, 16
      %v1808 = vrot.slane %v1806, 5
      %v1809 = vsel %vm1483, %v1804, %v1808
      %v1810 = vshrl.u32 %v1473, 16
      %v1812 = vrot.slane %v1810, 4
      %v1813 = vor.u32 %v1812, %v1808
      %v1814 = vrot.slane %v1813, 4
      %v1816 = vshll.u32 %v1474, 16
      %v1818 = vrot.slane %v1816, 5
      %v1819 = vsel %vm1483, %v1814, %v1818
      %v1821 = vshrl.u32 %v1475, 16
      %v1823 = vrot.slane %v1821, 4
      %v1824 = vshll.u32 %v1475, 16
      %v1826 = vrot.slane %v1824, 5
      %v1827 = vor.u32 %v1823, %v1826
      %v1828 = vrot.slane %v1827, 4
      %v1830 = vshll.u32 %v1476, 16
      %v1832 = vrot.slane %v1830, 5
      %v1833 = vsel %vm1483, %v1828, %v1832
      %v1834 = vshrl.u32 %v1476, 16
      %v1836 = vrot.slane %v1834, 4
      %v1837 = vor.u32 %v1836, %v1832
      %v1838 = vrot.slane %v1837, 4
      %v1840 = vshll.u32 %v1477, 16
      %v1842 = vrot.slane %v1840, 5
      %v1843 = vsel %vm1483, %v1838, %v1842
      %v1845 = vshrl.u32 %v1478, 16
      %v1847 = vrot.slane %v1845, 4
      %v1848 = vshll.u32 %v1478, 16
      %v1850 = vrot.slane %v1848, 5
      %v1851 = vor.u32 %v1847, %v1850
      %v1852 = vrot.slane %v1851, 4
      %v1854 = vshll.u32 %v1479, 16
      %v1856 = vrot.slane %v1854, 5
      %v1857 = vsel %vm1483, %v1852, %v1856
      %v1858 = vshrl.u32 %v1479, 16
      %v1860 = vrot.slane %v1858, 4
      %v1861 = vor.u32 %v1860, %v1856
      %v1862 = vrot.slane %v1861, 4
      %v1864 = vshll.u32 %v1480, 16
      %v1866 = vrot.slane %v1864, 5
      %v1867 = vsel %vm1483, %v1862, %v1866
      %v1868 = vunpack.c.l.b16 %v1497
      %v1869 = vunpack.c.l.b16 %v1507
      %v1870 = vunpack.c.l.b16 %v1521
      %v1871 = vunpack.c.l.b16 %v1531
      %v1872 = vunpack.c.l.b16 %v1545
      %v1873 = vunpack.c.l.b16 %v1555
      %v1874 = vunpack.c.l.b16 %v1569
      %v1875 = vunpack.c.l.b16 %v1579
      %v1876 = vunpack.c.l.b16 %v1593
      %v1877 = vunpack.c.l.b16 %v1603
      %v1878 = vunpack.c.l.b16 %v1617
      %v1879 = vunpack.c.l.b16 %v1627
      %v1880 = vunpack.c.l.b16 %v1641
      %v1881 = vunpack.c.l.b16 %v1651
      %v1882 = vunpack.c.l.b16 %v1665
      %v1883 = vunpack.c.l.b16 %v1675
      %v1884 = vunpack.c.l.b16 %v1689
      %v1885 = vunpack.c.l.b16 %v1699
      %v1886 = vunpack.c.l.b16 %v1713
      %v1887 = vunpack.c.l.b16 %v1723
      %v1888 = vunpack.c.l.b16 %v1737
      %v1889 = vunpack.c.l.b16 %v1747
      %v1890 = vunpack.c.l.b16 %v1761
      %v1891 = vunpack.c.l.b16 %v1771
      %v1892 = vunpack.c.l.b16 %v1785
      %v1893 = vunpack.c.l.b16 %v1795
      %v1894 = vunpack.c.l.b16 %v1809
      %v1895 = vunpack.c.l.b16 %v1819
      %v1896 = vunpack.c.l.b16 %v1833
      %v1897 = vunpack.c.l.b16 %v1843
      %v1898 = vunpack.c.l.b16 %v1857
      %v1899 = vunpack.c.l.b16 %v1867
      %v1900 = vpack.c.b16 %v1869, %v1868
      %v1901 = vpack.c.b16 %v1871, %v1870
      %v1902 = vpack.c.b16 %v1873, %v1872
      %v1903 = vpack.c.b16 %v1875, %v1874
      %v1904 = vpack.c.b16 %v1877, %v1876
      %v1905 = vpack.c.b16 %v1879, %v1878
      %v1906 = vpack.c.b16 %v1881, %v1880
      %v1907 = vpack.c.b16 %v1883, %v1882
      %v1908 = vpack.c.b16 %v1885, %v1884
      %v1909 = vpack.c.b16 %v1887, %v1886
      %v1910 = vpack.c.b16 %v1889, %v1888
      %v1911 = vpack.c.b16 %v1891, %v1890
      %v1912 = vpack.c.b16 %v1893, %v1892
      %v1913 = vpack.c.b16 %v1895, %v1894
      %v1914 = vpack.c.b16 %v1897, %v1896
      %v1915 = vpack.c.b16 %v1899, %v1898
      %1932 = vst [vmem:[#allocation3 + $0x8] sm:$0xff] %v1900
      %1933 = vst [vmem:[#allocation3 + $0x50] sm:$0xff] %v1901
      %1934 = vst [vmem:[#allocation3 + $0x98] sm:$0xff] %v1902
      %1935 = vst [vmem:[#allocation3 + $0xe0] sm:$0xff] %v1903
      %1936 = vst [vmem:[#allocation3 + $0x128] sm:$0xff] %v1904
      %1937 = vst [vmem:[#allocation3 + $0x170] sm:$0xff] %v1905
      %1938 = vst [vmem:[#allocation3 + $0x1b8] sm:$0xff] %v1906
      %1939 = vst [vmem:[#allocation3 + $0x200] sm:$0xff] %v1907
      %1940 = vst [vmem:[#allocation3 + $0x248] sm:$0xff] %v1908
      %1941 = vst [vmem:[#allocation3 + $0x290] sm:$0xff] %v1909
      %1942 = vst [vmem:[#allocation3 + $0x2d8] sm:$0xff] %v1910
      %1943 = vst [vmem:[#allocation3 + $0x320] sm:$0xff] %v1911
      %1944 = vst [vmem:[#allocation3 + $0x368] sm:$0xff] %v1912
      %1945 = vst [vmem:[#allocation3 + $0x3b0] sm:$0xff] %v1913
      %1946 = vst [vmem:[#allocation3 + $0x3f8] sm:$0xff] %v1914
      %1947 = vst [vmem:[#allocation3 + $0x440] sm:$0xff] %v1915
      %v1948 = vld [vmem:[#allocation2] sm:$0xe]
      %v1949 = vld [vmem:[#allocation2 + $0x4] sm:$0xf]
      %v1950 = vld [vmem:[#allocation2 + $0x8] sm:$0x1]
      %v1951 = vld [vmem:[#allocation2 + $0xc] sm:$0xe]
      %v1952 = vld [vmem:[#allocation2 + $0x10] sm:$0xf]
      %v1953 = vld [vmem:[#allocation2 + $0x14] sm:$0x1]
      %v1954 = vld [vmem:[#allocation2 + $0x18] sm:$0xe]
      %v1955 = vld [vmem:[#allocation2 + $0x1c] sm:$0xf]
      %v1956 = vld [vmem:[#allocation2 + $0x20] sm:$0x1]
      %v1957 = vld [vmem:[#allocation2 + $0x24] sm:$0xe]
      %v1958 = vld [vmem:[#allocation2 + $0x28] sm:$0xf]
      %v1959 = vld [vmem:[#allocation2 + $0x2c] sm:$0x1]
      %v1960 = vld [vmem:[#allocation2 + $0x30] sm:$0xe]
      %v1961 = vld [vmem:[#allocation2 + $0x34] sm:$0xf]
      %v1962 = vld [vmem:[#allocation2 + $0x38] sm:$0x1]
      %v1963 = vld [vmem:[#allocation2 + $0x3c] sm:$0xe]
      %v1964 = vld [vmem:[#allocation2 + $0x40] sm:$0xf]
      %v1965 = vld [vmem:[#allocation2 + $0x44] sm:$0x1]
      %v1966 = vld [vmem:[#allocation2 + $0x48] sm:$0xe]
      %v1967 = vld [vmem:[#allocation2 + $0x4c] sm:$0xf]
      %v1968 = vld [vmem:[#allocation2 + $0x50] sm:$0x1]
      %v1969 = vld [vmem:[#allocation2 + $0x54] sm:$0xe]
      %v1970 = vld [vmem:[#allocation2 + $0x58] sm:$0xf]
      %v1971 = vld [vmem:[#allocation2 + $0x5c] sm:$0x1]
      %v1972 = vld [vmem:[#allocation2 + $0x60] sm:$0xe]
      %v1973 = vld [vmem:[#allocation2 + $0x64] sm:$0xf]
      %v1974 = vld [vmem:[#allocation2 + $0x68] sm:$0x1]
      %v1975 = vld [vmem:[#allocation2 + $0x6c] sm:$0xe]
      %v1976 = vld [vmem:[#allocation2 + $0x70] sm:$0xf]
      %v1977 = vld [vmem:[#allocation2 + $0x74] sm:$0x1]
      %v1978 = vld [vmem:[#allocation2 + $0x78] sm:$0xe]
      %v1979 = vld [vmem:[#allocation2 + $0x7c] sm:$0xf]
      %v1980 = vld [vmem:[#allocation2 + $0x80] sm:$0x1]
      %v1981 = vld [vmem:[#allocation2 + $0x84] sm:$0xe]
      %v1982 = vld [vmem:[#allocation2 + $0x88] sm:$0xf]
      %v1983 = vld [vmem:[#allocation2 + $0x8c] sm:$0x1]
      %v1984 = vld [vmem:[#allocation2 + $0x90] sm:$0xe]
      %v1985 = vld [vmem:[#allocation2 + $0x94] sm:$0xf]
      %v1986 = vld [vmem:[#allocation2 + $0x98] sm:$0x1]
      %v1987 = vld [vmem:[#allocation2 + $0x9c] sm:$0xe]
      %v1988 = vld [vmem:[#allocation2 + $0xa0] sm:$0xf]
      %v1989 = vld [vmem:[#allocation2 + $0xa4] sm:$0x1]
      %v1990 = vld [vmem:[#allocation2 + $0xa8] sm:$0xe]
      %v1991 = vld [vmem:[#allocation2 + $0xac] sm:$0xf]
      %v1992 = vld [vmem:[#allocation2 + $0xb0] sm:$0x1]
      %v1993 = vld [vmem:[#allocation2 + $0xb4] sm:$0xe]
      %v1994 = vld [vmem:[#allocation2 + $0xb8] sm:$0xf]
      %v1995 = vld [vmem:[#allocation2 + $0xbc] sm:$0x1]
      %vm2044 = vcmask 1042432
      %vm2045 = vcmask 1046532
      %vm2046 = vmor %vm2044, %vm2045
      %v2047 = vrot.slane %v1948, 5
      %v2048 = vrot.slane %v2047, 4
      %v2049 = vrot.slane %v1949, 5
      %v2050 = vsel %vm2046, %v2048, %v2049
      %v2051 = vrot.slane %v2049, 4
      %v2052 = vrot.slane %v1950, 5
      %v2053 = vsel %vm2046, %v2051, %v2052
      %v2054 = vrot.slane %v1951, 5
      %v2055 = vrot.slane %v2054, 4
      %v2056 = vrot.slane %v1952, 5
      %v2057 = vsel %vm2046, %v2055, %v2056
      %v2058 = vrot.slane %v2056, 4
      %v2059 = vrot.slane %v1953, 5
      %v2060 = vsel %vm2046, %v2058, %v2059
      %v2061 = vrot.slane %v1954, 5
      %v2062 = vrot.slane %v2061, 4
      %v2063 = vrot.slane %v1955, 5
      %v2064 = vsel %vm2046, %v2062, %v2063
      %v2065 = vrot.slane %v2063, 4
      %v2066 = vrot.slane %v1956, 5
      %v2067 = vsel %vm2046, %v2065, %v2066
      %v2068 = vrot.slane %v1957, 5
      %v2069 = vrot.slane %v2068, 4
      %v2070 = vrot.slane %v1958, 5
      %v2071 = vsel %vm2046, %v2069, %v2070
      %v2072 = vrot.slane %v2070, 4
      %v2073 = vrot.slane %v1959, 5
      %v2074 = vsel %vm2046, %v2072, %v2073
      %v2075 = vrot.slane %v1960, 5
      %v2076 = vrot.slane %v2075, 4
      %v2077 = vrot.slane %v1961, 5
      %v2078 = vsel %vm2046, %v2076, %v2077
      %v2079 = vrot.slane %v2077, 4
      %v2080 = vrot.slane %v1962, 5
      %v2081 = vsel %vm2046, %v2079, %v2080
      %v2082 = vrot.slane %v1963, 5
      %v2083 = vrot.slane %v2082, 4
      %v2084 = vrot.slane %v1964, 5
      %v2085 = vsel %vm2046, %v2083, %v2084
      %v2086 = vrot.slane %v2084, 4
      %v2087 = vrot.slane %v1965, 5
      %v2088 = vsel %vm2046, %v2086, %v2087
      %v2089 = vrot.slane %v1966, 5
      %v2090 = vrot.slane %v2089, 4
      %v2091 = vrot.slane %v1967, 5
      %v2092 = vsel %vm2046, %v2090, %v2091
      %v2093 = vrot.slane %v2091, 4
      %v2094 = vrot.slane %v1968, 5
      %v2095 = vsel %vm2046, %v2093, %v2094
      %v2096 = vrot.slane %v1969, 5
      %v2097 = vrot.slane %v2096, 4
      %v2098 = vrot.slane %v1970, 5
      %v2099 = vsel %vm2046, %v2097, %v2098
      %v2100 = vrot.slane %v2098, 4
      %v2101 = vrot.slane %v1971, 5
      %v2102 = vsel %vm2046, %v2100, %v2101
      %v2103 = vrot.slane %v1972, 5
      %v2104 = vrot.slane %v2103, 4
      %v2105 = vrot.slane %v1973, 5
      %v2106 = vsel %vm2046, %v2104, %v2105
      %v2107 = vrot.slane %v2105, 4
      %v2108 = vrot.slane %v1974, 5
      %v2109 = vsel %vm2046, %v2107, %v2108
      %v2110 = vrot.slane %v1975, 5
      %v2111 = vrot.slane %v2110, 4
      %v2112 = vrot.slane %v1976, 5
      %v2113 = vsel %vm2046, %v2111, %v2112
      %v2114 = vrot.slane %v2112, 4
      %v2115 = vrot.slane %v1977, 5
      %v2116 = vsel %vm2046, %v2114, %v2115
      %v2117 = vrot.slane %v1978, 5
      %v2118 = vrot.slane %v2117, 4
      %v2119 = vrot.slane %v1979, 5
      %v2120 = vsel %vm2046, %v2118, %v2119
      %v2121 = vrot.slane %v2119, 4
      %v2122 = vrot.slane %v1980, 5
      %v2123 = vsel %vm2046, %v2121, %v2122
      %v2124 = vrot.slane %v1981, 5
      %v2125 = vrot.slane %v2124, 4
      %v2126 = vrot.slane %v1982, 5
      %v2127 = vsel %vm2046, %v2125, %v2126
      %v2128 = vrot.slane %v2126, 4
      %v2129 = vrot.slane %v1983, 5
      %v2130 = vsel %vm2046, %v2128, %v2129
      %v2131 = vrot.slane %v1984, 5
      %v2132 = vrot.slane %v2131, 4
      %v2133 = vrot.slane %v1985, 5
      %v2134 = vsel %vm2046, %v2132, %v2133
      %v2135 = vrot.slane %v2133, 4
      %v2136 = vrot.slane %v1986, 5
      %v2137 = vsel %vm2046, %v2135, %v2136
      %v2138 = vrot.slane %v1987, 5
      %v2139 = vrot.slane %v2138, 4
      %v2140 = vrot.slane %v1988, 5
      %v2141 = vsel %vm2046, %v2139, %v2140
      %v2142 = vrot.slane %v2140, 4
      %v2143 = vrot.slane %v1989, 5
      %v2144 = vsel %vm2046, %v2142, %v2143
      %v2145 = vrot.slane %v1990, 5
      %v2146 = vrot.slane %v2145, 4
      %v2147 = vrot.slane %v1991, 5
      %v2148 = vsel %vm2046, %v2146, %v2147
      %v2149 = vrot.slane %v2147, 4
      %v2150 = vrot.slane %v1992, 5
      %v2151 = vsel %vm2046, %v2149, %v2150
      %v2152 = vrot.slane %v1993, 5
      %v2153 = vrot.slane %v2152, 4
      %v2154 = vrot.slane %v1994, 5
      %v2155 = vsel %vm2046, %v2153, %v2154
      %v2156 = vrot.slane %v2154, 4
      %v2157 = vrot.slane %v1995, 5
      %v2158 = vsel %vm2046, %v2156, %v2157
      %v2159 = vunpack.c.l.b16 %v2050
      %v2160 = vunpack.c.l.b16 %v2053
      %v2161 = vunpack.c.l.b16 %v2057
      %v2162 = vunpack.c.l.b16 %v2060
      %v2163 = vunpack.c.l.b16 %v2064
      %v2164 = vunpack.c.l.b16 %v2067
      %v2165 = vunpack.c.l.b16 %v2071
      %v2166 = vunpack.c.l.b16 %v2074
      %v2167 = vunpack.c.l.b16 %v2078
      %v2168 = vunpack.c.l.b16 %v2081
      %v2169 = vunpack.c.l.b16 %v2085
      %v2170 = vunpack.c.l.b16 %v2088
      %v2171 = vunpack.c.l.b16 %v2092
      %v2172 = vunpack.c.l.b16 %v2095
      %v2173 = vunpack.c.l.b16 %v2099
      %v2174 = vunpack.c.l.b16 %v2102
      %v2175 = vunpack.c.l.b16 %v2106
      %v2176 = vunpack.c.l.b16 %v2109
      %v2177 = vunpack.c.l.b16 %v2113
      %v2178 = vunpack.c.l.b16 %v2116
      %v2179 = vunpack.c.l.b16 %v2120
      %v2180 = vunpack.c.l.b16 %v2123
      %v2181 = vunpack.c.l.b16 %v2127
      %v2182 = vunpack.c.l.b16 %v2130
      %v2183 = vunpack.c.l.b16 %v2134
      %v2184 = vunpack.c.l.b16 %v2137
      %v2185 = vunpack.c.l.b16 %v2141
      %v2186 = vunpack.c.l.b16 %v2144
      %v2187 = vunpack.c.l.b16 %v2148
      %v2188 = vunpack.c.l.b16 %v2151
      %v2189 = vunpack.c.l.b16 %v2155
      %v2190 = vunpack.c.l.b16 %v2158
      %v2191 = vpack.c.b16 %v2160, %v2159
      %v2192 = vpack.c.b16 %v2162, %v2161
      %v2193 = vpack.c.b16 %v2164, %v2163
      %v2194 = vpack.c.b16 %v2166, %v2165
      %v2195 = vpack.c.b16 %v2168, %v2167
      %v2196 = vpack.c.b16 %v2170, %v2169
      %v2197 = vpack.c.b16 %v2172, %v2171
      %v2198 = vpack.c.b16 %v2174, %v2173
      %v2199 = vpack.c.b16 %v2176, %v2175
      %v2200 = vpack.c.b16 %v2178, %v2177
      %v2201 = vpack.c.b16 %v2180, %v2179
      %v2202 = vpack.c.b16 %v2182, %v2181
      %v2203 = vpack.c.b16 %v2184, %v2183
      %v2204 = vpack.c.b16 %v2186, %v2185
      %v2205 = vpack.c.b16 %v2188, %v2187
      %v2206 = vpack.c.b16 %v2190, %v2189
      %2223 = vst [vmem:[#allocation3 + $0x10] sm:$0xff] %v2191
      %2224 = vst [vmem:[#allocation3 + $0x58] sm:$0xff] %v2192
      %2225 = vst [vmem:[#allocation3 + $0xa0] sm:$0xff] %v2193
      %2226 = vst [vmem:[#allocation3 + $0xe8] sm:$0xff] %v2194
      %2227 = vst [vmem:[#allocation3 + $0x130] sm:$0xff] %v2195
      %2228 = vst [vmem:[#allocation3 + $0x178] sm:$0xff] %v2196
      %2229 = vst [vmem:[#allocation3 + $0x1c0] sm:$0xff] %v2197
      %2230 = vst [vmem:[#allocation3 + $0x208] sm:$0xff] %v2198
      %2231 = vst [vmem:[#allocation3 + $0x250] sm:$0xff] %v2199
      %2232 = vst [vmem:[#allocation3 + $0x298] sm:$0xff] %v2200
      %2233 = vst [vmem:[#allocation3 + $0x2e0] sm:$0xff] %v2201
      %2234 = vst [vmem:[#allocation3 + $0x328] sm:$0xff] %v2202
      %2235 = vst [vmem:[#allocation3 + $0x370] sm:$0xff] %v2203
      %2236 = vst [vmem:[#allocation3 + $0x3b8] sm:$0xff] %v2204
      %2237 = vst [vmem:[#allocation3 + $0x400] sm:$0xff] %v2205
      %2238 = vst [vmem:[#allocation3 + $0x448] sm:$0xff] %v2206
      %v2239 = vld [vmem:[%s1011] sm:$0xf]
      %v2240 = vld [vmem:[%s1011 + $0x4] sm:$0xf]
      %v2241 = vld [vmem:[%s1011 + $0xc] sm:$0xf]
      %v2242 = vld [vmem:[%s1011 + $0x10] sm:$0xf]
      %v2243 = vld [vmem:[%s1011 + $0x18] sm:$0xf]
      %v2244 = vld [vmem:[%s1011 + $0x1c] sm:$0xf]
      %v2245 = vld [vmem:[%s1011 + $0x24] sm:$0xf]
      %v2246 = vld [vmem:[%s1011 + $0x28] sm:$0xf]
      %v2247 = vld [vmem:[%s1011 + $0x30] sm:$0xf]
      %v2248 = vld [vmem:[%s1011 + $0x34] sm:$0xf]
      %v2249 = vld [vmem:[%s1011 + $0x3c] sm:$0xf]
      %v2250 = vld [vmem:[%s1011 + $0x40] sm:$0xf]
      %v2251 = vld [vmem:[%s1011 + $0x48] sm:$0xf]
      %v2252 = vld [vmem:[%s1011 + $0x4c] sm:$0xf]
      %v2253 = vld [vmem:[%s1011 + $0x54] sm:$0xf]
      %v2254 = vld [vmem:[%s1011 + $0x58] sm:$0xf]
      %v2255 = vld [vmem:[%s1011 + $0x60] sm:$0xf]
      %v2256 = vld [vmem:[%s1011 + $0x64] sm:$0xf]
      %v2257 = vld [vmem:[%s1011 + $0x6c] sm:$0xf]
      %v2258 = vld [vmem:[%s1011 + $0x70] sm:$0xf]
      %v2259 = vld [vmem:[%s1011 + $0x78] sm:$0xf]
      %v2260 = vld [vmem:[%s1011 + $0x7c] sm:$0xf]
      %v2261 = vld [vmem:[%s1011 + $0x84] sm:$0xf]
      %v2262 = vld [vmem:[%s1011 + $0x88] sm:$0xf]
      %v2263 = vld [vmem:[%s1011 + $0x90] sm:$0xf]
      %v2264 = vld [vmem:[%s1011 + $0x94] sm:$0xf]
      %v2265 = vld [vmem:[%s1011 + $0x9c] sm:$0xf]
      %v2266 = vld [vmem:[%s1011 + $0xa0] sm:$0xf]
      %v2267 = vld [vmem:[%s1011 + $0xa8] sm:$0xf]
      %v2268 = vld [vmem:[%s1011 + $0xac] sm:$0xf]
      %v2269 = vld [vmem:[%s1011 + $0xb4] sm:$0xf]
      %v2270 = vld [vmem:[%s1011 + $0xb8] sm:$0xf]
      %v2303 = vunpack.c.l.b16 %v2239
      %v2304 = vunpack.c.l.b16 %v2240
      %v2305 = vunpack.c.l.b16 %v2241
      %v2306 = vunpack.c.l.b16 %v2242
      %v2307 = vunpack.c.l.b16 %v2243
      %v2308 = vunpack.c.l.b16 %v2244
      %v2309 = vunpack.c.l.b16 %v2245
      %v2310 = vunpack.c.l.b16 %v2246
      %v2311 = vunpack.c.l.b16 %v2247
      %v2312 = vunpack.c.l.b16 %v2248
      %v2313 = vunpack.c.l.b16 %v2249
      %v2314 = vunpack.c.l.b16 %v2250
      %v2315 = vunpack.c.l.b16 %v2251
      %v2316 = vunpack.c.l.b16 %v2252
      %v2317 = vunpack.c.l.b16 %v2253
      %v2318 = vunpack.c.l.b16 %v2254
      %v2319 = vunpack.c.l.b16 %v2255
      %v2320 = vunpack.c.l.b16 %v2256
      %v2321 = vunpack.c.l.b16 %v2257
      %v2322 = vunpack.c.l.b16 %v2258
      %v2323 = vunpack.c.l.b16 %v2259
      %v2324 = vunpack.c.l.b16 %v2260
      %v2325 = vunpack.c.l.b16 %v2261
      %v2326 = vunpack.c.l.b16 %v2262
      %v2327 = vunpack.c.l.b16 %v2263
      %v2328 = vunpack.c.l.b16 %v2264
      %v2329 = vunpack.c.l.b16 %v2265
      %v2330 = vunpack.c.l.b16 %v2266
      %v2331 = vunpack.c.l.b16 %v2267
      %v2332 = vunpack.c.l.b16 %v2268
      %v2333 = vunpack.c.l.b16 %v2269
      %v2334 = vunpack.c.l.b16 %v2270
      %v2335 = vpack.c.b16 %v2304, %v2303
      %v2336 = vpack.c.b16 %v2306, %v2305
      %v2337 = vpack.c.b16 %v2308, %v2307
      %v2338 = vpack.c.b16 %v2310, %v2309
      %v2339 = vpack.c.b16 %v2312, %v2311
      %v2340 = vpack.c.b16 %v2314, %v2313
      %v2341 = vpack.c.b16 %v2316, %v2315
      %v2342 = vpack.c.b16 %v2318, %v2317
      %v2343 = vpack.c.b16 %v2320, %v2319
      %v2344 = vpack.c.b16 %v2322, %v2321
      %v2345 = vpack.c.b16 %v2324, %v2323
      %v2346 = vpack.c.b16 %v2326, %v2325
      %v2347 = vpack.c.b16 %v2328, %v2327
      %v2348 = vpack.c.b16 %v2330, %v2329
      %v2349 = vpack.c.b16 %v2332, %v2331
      %v2350 = vpack.c.b16 %v2334, %v2333
      %2367 = vst [vmem:[#allocation3 + $0x18] sm:$0xff] %v2335
      %2368 = vst [vmem:[#allocation3 + $0x60] sm:$0xff] %v2336
      %2369 = vst [vmem:[#allocation3 + $0xa8] sm:$0xff] %v2337
      %2370 = vst [vmem:[#allocation3 + $0xf0] sm:$0xff] %v2338
      %2371 = vst [vmem:[#allocation3 + $0x138] sm:$0xff] %v2339
      %2372 = vst [vmem:[#allocation3 + $0x180] sm:$0xff] %v2340
      %2373 = vst [vmem:[#allocation3 + $0x1c8] sm:$0xff] %v2341
      %2374 = vst [vmem:[#allocation3 + $0x210] sm:$0xff] %v2342
      %2375 = vst [vmem:[#allocation3 + $0x258] sm:$0xff] %v2343
      %2376 = vst [vmem:[#allocation3 + $0x2a0] sm:$0xff] %v2344
      %2377 = vst [vmem:[#allocation3 + $0x2e8] sm:$0xff] %v2345
      %2378 = vst [vmem:[#allocation3 + $0x330] sm:$0xff] %v2346
      %2379 = vst [vmem:[#allocation3 + $0x378] sm:$0xff] %v2347
      %2380 = vst [vmem:[#allocation3 + $0x3c0] sm:$0xff] %v2348
      %2381 = vst [vmem:[#allocation3 + $0x408] sm:$0xff] %v2349
      %2382 = vst [vmem:[#allocation3 + $0x450] sm:$0xff] %v2350
      %v2383 = vld [vmem:[%s1011] sm:$0xf]
      %v2384 = vld [vmem:[%s1011 + $0x4] sm:$0xf]
      %v2385 = vld [vmem:[%s1011 + $0x8] sm:$0x1]
      %v2386 = vld [vmem:[%s1011 + $0xc] sm:$0xf]
      %v2387 = vld [vmem:[%s1011 + $0x10] sm:$0xf]
      %v2388 = vld [vmem:[%s1011 + $0x14] sm:$0x1]
      %v2389 = vld [vmem:[%s1011 + $0x18] sm:$0xf]
      %v2390 = vld [vmem:[%s1011 + $0x1c] sm:$0xf]
      %v2391 = vld [vmem:[%s1011 + $0x20] sm:$0x1]
      %v2392 = vld [vmem:[%s1011 + $0x24] sm:$0xf]
      %v2393 = vld [vmem:[%s1011 + $0x28] sm:$0xf]
      %v2394 = vld [vmem:[%s1011 + $0x2c] sm:$0x1]
      %v2395 = vld [vmem:[%s1011 + $0x30] sm:$0xf]
      %v2396 = vld [vmem:[%s1011 + $0x34] sm:$0xf]
      %v2397 = vld [vmem:[%s1011 + $0x38] sm:$0x1]
      %v2398 = vld [vmem:[%s1011 + $0x3c] sm:$0xf]
      %v2399 = vld [vmem:[%s1011 + $0x40] sm:$0xf]
      %v2400 = vld [vmem:[%s1011 + $0x44] sm:$0x1]
      %v2401 = vld [vmem:[%s1011 + $0x48] sm:$0xf]
      %v2402 = vld [vmem:[%s1011 + $0x4c] sm:$0xf]
      %v2403 = vld [vmem:[%s1011 + $0x50] sm:$0x1]
      %v2404 = vld [vmem:[%s1011 + $0x54] sm:$0xf]
      %v2405 = vld [vmem:[%s1011 + $0x58] sm:$0xf]
      %v2406 = vld [vmem:[%s1011 + $0x5c] sm:$0x1]
      %v2407 = vld [vmem:[%s1011 + $0x60] sm:$0xf]
      %v2408 = vld [vmem:[%s1011 + $0x64] sm:$0xf]
      %v2409 = vld [vmem:[%s1011 + $0x68] sm:$0x1]
      %v2410 = vld [vmem:[%s1011 + $0x6c] sm:$0xf]
      %v2411 = vld [vmem:[%s1011 + $0x70] sm:$0xf]
      %v2412 = vld [vmem:[%s1011 + $0x74] sm:$0x1]
      %v2413 = vld [vmem:[%s1011 + $0x78] sm:$0xf]
      %v2414 = vld [vmem:[%s1011 + $0x7c] sm:$0xf]
      %v2415 = vld [vmem:[%s1011 + $0x80] sm:$0x1]
      %v2416 = vld [vmem:[%s1011 + $0x84] sm:$0xf]
      %v2417 = vld [vmem:[%s1011 + $0x88] sm:$0xf]
      %v2418 = vld [vmem:[%s1011 + $0x8c] sm:$0x1]
      %v2419 = vld [vmem:[%s1011 + $0x90] sm:$0xf]
      %v2420 = vld [vmem:[%s1011 + $0x94] sm:$0xf]
      %v2421 = vld [vmem:[%s1011 + $0x98] sm:$0x1]
      %v2422 = vld [vmem:[%s1011 + $0x9c] sm:$0xf]
      %v2423 = vld [vmem:[%s1011 + $0xa0] sm:$0xf]
      %v2424 = vld [vmem:[%s1011 + $0xa4] sm:$0x1]
      %v2425 = vld [vmem:[%s1011 + $0xa8] sm:$0xf]
      %v2426 = vld [vmem:[%s1011 + $0xac] sm:$0xf]
      %v2427 = vld [vmem:[%s1011 + $0xb0] sm:$0x1]
      %v2428 = vld [vmem:[%s1011 + $0xb4] sm:$0xf]
      %v2429 = vld [vmem:[%s1011 + $0xb8] sm:$0xf]
      %v2430 = vld [vmem:[%s1011 + $0xbc] sm:$0x1]
      %v2432 = vshrl.u32 %v2383, 16
      %v2434 = vrot.slane %v2432, 4
      %v2435 = vshll.u32 %v2383, 16
      %v2437 = vrot.slane %v2435, 5
      %v2438 = vor.u32 %v2434, %v2437
      %v2439 = vrot.slane %v2438, 4
      %v2441 = vshll.u32 %v2384, 16
      %v2443 = vrot.slane %v2441, 5
      %v2444 = vsel %vm1483, %v2439, %v2443
      %v2445 = vshrl.u32 %v2384, 16
      %v2447 = vrot.slane %v2445, 4
      %v2448 = vor.u32 %v2447, %v2443
      %v2449 = vrot.slane %v2448, 4
      %v2451 = vshll.u32 %v2385, 16
      %v2453 = vrot.slane %v2451, 5
      %v2454 = vsel %vm1483, %v2449, %v2453
      %v2456 = vshrl.u32 %v2386, 16
      %v2458 = vrot.slane %v2456, 4
      %v2459 = vshll.u32 %v2386, 16
      %v2461 = vrot.slane %v2459, 5
      %v2462 = vor.u32 %v2458, %v2461
      %v2463 = vrot.slane %v2462, 4
      %v2465 = vshll.u32 %v2387, 16
      %v2467 = vrot.slane %v2465, 5
      %v2468 = vsel %vm1483, %v2463, %v2467
      %v2469 = vshrl.u32 %v2387, 16
      %v2471 = vrot.slane %v2469, 4
      %v2472 = vor.u32 %v2471, %v2467
      %v2473 = vrot.slane %v2472, 4
      %v2475 = vshll.u32 %v2388, 16
      %v2477 = vrot.slane %v2475, 5
      %v2478 = vsel %vm1483, %v2473, %v2477
      %v2480 = vshrl.u32 %v2389, 16
      %v2482 = vrot.slane %v2480, 4
      %v2483 = vshll.u32 %v2389, 16
      %v2485 = vrot.slane %v2483, 5
      %v2486 = vor.u32 %v2482, %v2485
      %v2487 = vrot.slane %v2486, 4
      %v2489 = vshll.u32 %v2390, 16
      %v2491 = vrot.slane %v2489, 5
      %v2492 = vsel %vm1483, %v2487, %v2491
      %v2493 = vshrl.u32 %v2390, 16
      %v2495 = vrot.slane %v2493, 4
      %v2496 = vor.u32 %v2495, %v2491
      %v2497 = vrot.slane %v2496, 4
      %v2499 = vshll.u32 %v2391, 16
      %v2501 = vrot.slane %v2499, 5
      %v2502 = vsel %vm1483, %v2497, %v2501
      %v2504 = vshrl.u32 %v2392, 16
      %v2506 = vrot.slane %v2504, 4
      %v2507 = vshll.u32 %v2392, 16
      %v2509 = vrot.slane %v2507, 5
      %v2510 = vor.u32 %v2506, %v2509
      %v2511 = vrot.slane %v2510, 4
      %v2513 = vshll.u32 %v2393, 16
      %v2515 = vrot.slane %v2513, 5
      %v2516 = vsel %vm1483, %v2511, %v2515
      %v2517 = vshrl.u32 %v2393, 16
      %v2519 = vrot.slane %v2517, 4
      %v2520 = vor.u32 %v2519, %v2515
      %v2521 = vrot.slane %v2520, 4
      %v2523 = vshll.u32 %v2394, 16
      %v2525 = vrot.slane %v2523, 5
      %v2526 = vsel %vm1483, %v2521, %v2525
      %v2528 = vshrl.u32 %v2395, 16
      %v2530 = vrot.slane %v2528, 4
      %v2531 = vshll.u32 %v2395, 16
      %v2533 = vrot.slane %v2531, 5
      %v2534 = vor.u32 %v2530, %v2533
      %v2535 = vrot.slane %v2534, 4
      %v2537 = vshll.u32 %v2396, 16
      %v2539 = vrot.slane %v2537, 5
      %v2540 = vsel %vm1483, %v2535, %v2539
      %v2541 = vshrl.u32 %v2396, 16
      %v2543 = vrot.slane %v2541, 4
      %v2544 = vor.u32 %v2543, %v2539
      %v2545 = vrot.slane %v2544, 4
      %v2547 = vshll.u32 %v2397, 16
      %v2549 = vrot.slane %v2547, 5
      %v2550 = vsel %vm1483, %v2545, %v2549
      %v2552 = vshrl.u32 %v2398, 16
      %v2554 = vrot.slane %v2552, 4
      %v2555 = vshll.u32 %v2398, 16
      %v2557 = vrot.slane %v2555, 5
      %v2558 = vor.u32 %v2554, %v2557
      %v2559 = vrot.slane %v2558, 4
      %v2561 = vshll.u32 %v2399, 16
      %v2563 = vrot.slane %v2561, 5
      %v2564 = vsel %vm1483, %v2559, %v2563
      %v2565 = vshrl.u32 %v2399, 16
      %v2567 = vrot.slane %v2565, 4
      %v2568 = vor.u32 %v2567, %v2563
      %v2569 = vrot.slane %v2568, 4
      %v2571 = vshll.u32 %v2400, 16
      %v2573 = vrot.slane %v2571, 5
      %v2574 = vsel %vm1483, %v2569, %v2573
      %v2576 = vshrl.u32 %v2401, 16
      %v2578 = vrot.slane %v2576, 4
      %v2579 = vshll.u32 %v2401, 16
      %v2581 = vrot.slane %v2579, 5
      %v2582 = vor.u32 %v2578, %v2581
      %v2583 = vrot.slane %v2582, 4
      %v2585 = vshll.u32 %v2402, 16
      %v2587 = vrot.slane %v2585, 5
      %v2588 = vsel %vm1483, %v2583, %v2587
      %v2589 = vshrl.u32 %v2402, 16
      %v2591 = vrot.slane %v2589, 4
      %v2592 = vor.u32 %v2591, %v2587
      %v2593 = vrot.slane %v2592, 4
      %v2595 = vshll.u32 %v2403, 16
      %v2597 = vrot.slane %v2595, 5
      %v2598 = vsel %vm1483, %v2593, %v2597
      %v2600 = vshrl.u32 %v2404, 16
      %v2602 = vrot.slane %v2600, 4
      %v2603 = vshll.u32 %v2404, 16
      %v2605 = vrot.slane %v2603, 5
      %v2606 = vor.u32 %v2602, %v2605
      %v2607 = vrot.slane %v2606, 4
      %v2609 = vshll.u32 %v2405, 16
      %v2611 = vrot.slane %v2609, 5
      %v2612 = vsel %vm1483, %v2607, %v2611
      %v2613 = vshrl.u32 %v2405, 16
      %v2615 = vrot.slane %v2613, 4
      %v2616 = vor.u32 %v2615, %v2611
      %v2617 = vrot.slane %v2616, 4
      %v2619 = vshll.u32 %v2406, 16
      %v2621 = vrot.slane %v2619, 5
      %v2622 = vsel %vm1483, %v2617, %v2621
      %v2624 = vshrl.u32 %v2407, 16
      %v2626 = vrot.slane %v2624, 4
      %v2627 = vshll.u32 %v2407, 16
      %v2629 = vrot.slane %v2627, 5
      %v2630 = vor.u32 %v2626, %v2629
      %v2631 = vrot.slane %v2630, 4
      %v2633 = vshll.u32 %v2408, 16
      %v2635 = vrot.slane %v2633, 5
      %v2636 = vsel %vm1483, %v2631, %v2635
      %v2637 = vshrl.u32 %v2408, 16
      %v2639 = vrot.slane %v2637, 4
      %v2640 = vor.u32 %v2639, %v2635
      %v2641 = vrot.slane %v2640, 4
      %v2643 = vshll.u32 %v2409, 16
      %v2645 = vrot.slane %v2643, 5
      %v2646 = vsel %vm1483, %v2641, %v2645
      %v2648 = vshrl.u32 %v2410, 16
      %v2650 = vrot.slane %v2648, 4
      %v2651 = vshll.u32 %v2410, 16
      %v2653 = vrot.slane %v2651, 5
      %v2654 = vor.u32 %v2650, %v2653
      %v2655 = vrot.slane %v2654, 4
      %v2657 = vshll.u32 %v2411, 16
      %v2659 = vrot.slane %v2657, 5
      %v2660 = vsel %vm1483, %v2655, %v2659
      %v2661 = vshrl.u32 %v2411, 16
      %v2663 = vrot.slane %v2661, 4
      %v2664 = vor.u32 %v2663, %v2659
      %v2665 = vrot.slane %v2664, 4
      %v2667 = vshll.u32 %v2412, 16
      %v2669 = vrot.slane %v2667, 5
      %v2670 = vsel %vm1483, %v2665, %v2669
      %v2672 = vshrl.u32 %v2413, 16
      %v2674 = vrot.slane %v2672, 4
      %v2675 = vshll.u32 %v2413, 16
      %v2677 = vrot.slane %v2675, 5
      %v2678 = vor.u32 %v2674, %v2677
      %v2679 = vrot.slane %v2678, 4
      %v2681 = vshll.u32 %v2414, 16
      %v2683 = vrot.slane %v2681, 5
      %v2684 = vsel %vm1483, %v2679, %v2683
      %v2685 = vshrl.u32 %v2414, 16
      %v2687 = vrot.slane %v2685, 4
      %v2688 = vor.u32 %v2687, %v2683
      %v2689 = vrot.slane %v2688, 4
      %v2691 = vshll.u32 %v2415, 16
      %v2693 = vrot.slane %v2691, 5
      %v2694 = vsel %vm1483, %v2689, %v2693
      %v2696 = vshrl.u32 %v2416, 16
      %v2698 = vrot.slane %v2696, 4
      %v2699 = vshll.u32 %v2416, 16
      %v2701 = vrot.slane %v2699, 5
      %v2702 = vor.u32 %v2698, %v2701
      %v2703 = vrot.slane %v2702, 4
      %v2705 = vshll.u32 %v2417, 16
      %v2707 = vrot.slane %v2705, 5
      %v2708 = vsel %vm1483, %v2703, %v2707
      %v2709 = vshrl.u32 %v2417, 16
      %v2711 = vrot.slane %v2709, 4
      %v2712 = vor.u32 %v2711, %v2707
      %v2713 = vrot.slane %v2712, 4
      %v2715 = vshll.u32 %v2418, 16
      %v2717 = vrot.slane %v2715, 5
      %v2718 = vsel %vm1483, %v2713, %v2717
      %v2720 = vshrl.u32 %v2419, 16
      %v2722 = vrot.slane %v2720, 4
      %v2723 = vshll.u32 %v2419, 16
      %v2725 = vrot.slane %v2723, 5
      %v2726 = vor.u32 %v2722, %v2725
      %v2727 = vrot.slane %v2726, 4
      %v2729 = vshll.u32 %v2420, 16
      %v2731 = vrot.slane %v2729, 5
      %v2732 = vsel %vm1483, %v2727, %v2731
      %v2733 = vshrl.u32 %v2420, 16
      %v2735 = vrot.slane %v2733, 4
      %v2736 = vor.u32 %v2735, %v2731
      %v2737 = vrot.slane %v2736, 4
      %v2739 = vshll.u32 %v2421, 16
      %v2741 = vrot.slane %v2739, 5
      %v2742 = vsel %vm1483, %v2737, %v2741
      %v2744 = vshrl.u32 %v2422, 16
      %v2746 = vrot.slane %v2744, 4
      %v2747 = vshll.u32 %v2422, 16
      %v2749 = vrot.slane %v2747, 5
      %v2750 = vor.u32 %v2746, %v2749
      %v2751 = vrot.slane %v2750, 4
      %v2753 = vshll.u32 %v2423, 16
      %v2755 = vrot.slane %v2753, 5
      %v2756 = vsel %vm1483, %v2751, %v2755
      %v2757 = vshrl.u32 %v2423, 16
      %v2759 = vrot.slane %v2757, 4
      %v2760 = vor.u32 %v2759, %v2755
      %v2761 = vrot.slane %v2760, 4
      %v2763 = vshll.u32 %v2424, 16
      %v2765 = vrot.slane %v2763, 5
      %v2766 = vsel %vm1483, %v2761, %v2765
      %v2768 = vshrl.u32 %v2425, 16
      %v2770 = vrot.slane %v2768, 4
      %v2771 = vshll.u32 %v2425, 16
      %v2773 = vrot.slane %v2771, 5
      %v2774 = vor.u32 %v2770, %v2773
      %v2775 = vrot.slane %v2774, 4
      %v2777 = vshll.u32 %v2426, 16
      %v2779 = vrot.slane %v2777, 5
      %v2780 = vsel %vm1483, %v2775, %v2779
      %v2781 = vshrl.u32 %v2426, 16
      %v2783 = vrot.slane %v2781, 4
      %v2784 = vor.u32 %v2783, %v2779
      %v2785 = vrot.slane %v2784, 4
      %v2787 = vshll.u32 %v2427, 16
      %v2789 = vrot.slane %v2787, 5
      %v2790 = vsel %vm1483, %v2785, %v2789
      %v2792 = vshrl.u32 %v2428, 16
      %v2794 = vrot.slane %v2792, 4
      %v2795 = vshll.u32 %v2428, 16
      %v2797 = vrot.slane %v2795, 5
      %v2798 = vor.u32 %v2794, %v2797
      %v2799 = vrot.slane %v2798, 4
      %v2801 = vshll.u32 %v2429, 16
      %v2803 = vrot.slane %v2801, 5
      %v2804 = vsel %vm1483, %v2799, %v2803
      %v2805 = vshrl.u32 %v2429, 16
      %v2807 = vrot.slane %v2805, 4
      %v2808 = vor.u32 %v2807, %v2803
      %v2809 = vrot.slane %v2808, 4
      %v2811 = vshll.u32 %v2430, 16
      %v2813 = vrot.slane %v2811, 5
      %v2814 = vsel %vm1483, %v2809, %v2813
      %v2815 = vunpack.c.l.b16 %v2444
      %v2816 = vunpack.c.l.b16 %v2454
      %v2817 = vunpack.c.l.b16 %v2468
      %v2818 = vunpack.c.l.b16 %v2478
      %v2819 = vunpack.c.l.b16 %v2492
      %v2820 = vunpack.c.l.b16 %v2502
      %v2821 = vunpack.c.l.b16 %v2516
      %v2822 = vunpack.c.l.b16 %v2526
      %v2823 = vunpack.c.l.b16 %v2540
      %v2824 = vunpack.c.l.b16 %v2550
      %v2825 = vunpack.c.l.b16 %v2564
      %v2826 = vunpack.c.l.b16 %v2574
      %v2827 = vunpack.c.l.b16 %v2588
      %v2828 = vunpack.c.l.b16 %v2598
      %v2829 = vunpack.c.l.b16 %v2612
      %v2830 = vunpack.c.l.b16 %v2622
      %v2831 = vunpack.c.l.b16 %v2636
      %v2832 = vunpack.c.l.b16 %v2646
      %v2833 = vunpack.c.l.b16 %v2660
      %v2834 = vunpack.c.l.b16 %v2670
      %v2835 = vunpack.c.l.b16 %v2684
      %v2836 = vunpack.c.l.b16 %v2694
      %v2837 = vunpack.c.l.b16 %v2708
      %v2838 = vunpack.c.l.b16 %v2718
      %v2839 = vunpack.c.l.b16 %v2732
      %v2840 = vunpack.c.l.b16 %v2742
      %v2841 = vunpack.c.l.b16 %v2756
      %v2842 = vunpack.c.l.b16 %v2766
      %v2843 = vunpack.c.l.b16 %v2780
      %v2844 = vunpack.c.l.b16 %v2790
      %v2845 = vunpack.c.l.b16 %v2804
      %v2846 = vunpack.c.l.b16 %v2814
      %v2847 = vpack.c.b16 %v2816, %v2815
      %v2848 = vpack.c.b16 %v2818, %v2817
      %v2849 = vpack.c.b16 %v2820, %v2819
      %v2850 = vpack.c.b16 %v2822, %v2821
      %v2851 = vpack.c.b16 %v2824, %v2823
      %v2852 = vpack.c.b16 %v2826, %v2825
      %v2853 = vpack.c.b16 %v2828, %v2827
      %v2854 = vpack.c.b16 %v2830, %v2829
      %v2855 = vpack.c.b16 %v2832, %v2831
      %v2856 = vpack.c.b16 %v2834, %v2833
      %v2857 = vpack.c.b16 %v2836, %v2835
      %v2858 = vpack.c.b16 %v2838, %v2837
      %v2859 = vpack.c.b16 %v2840, %v2839
      %v2860 = vpack.c.b16 %v2842, %v2841
      %v2861 = vpack.c.b16 %v2844, %v2843
      %v2862 = vpack.c.b16 %v2846, %v2845
      %2879 = vst [vmem:[#allocation3 + $0x20] sm:$0xff] %v2847
      %2880 = vst [vmem:[#allocation3 + $0x68] sm:$0xff] %v2848
      %2881 = vst [vmem:[#allocation3 + $0xb0] sm:$0xff] %v2849
      %2882 = vst [vmem:[#allocation3 + $0xf8] sm:$0xff] %v2850
      %2883 = vst [vmem:[#allocation3 + $0x140] sm:$0xff] %v2851
      %2884 = vst [vmem:[#allocation3 + $0x188] sm:$0xff] %v2852
      %2885 = vst [vmem:[#allocation3 + $0x1d0] sm:$0xff] %v2853
      %2886 = vst [vmem:[#allocation3 + $0x218] sm:$0xff] %v2854
      %2887 = vst [vmem:[#allocation3 + $0x260] sm:$0xff] %v2855
      %2888 = vst [vmem:[#allocation3 + $0x2a8] sm:$0xff] %v2856
      %2889 = vst [vmem:[#allocation3 + $0x2f0] sm:$0xff] %v2857
      %2890 = vst [vmem:[#allocation3 + $0x338] sm:$0xff] %v2858
      %2891 = vst [vmem:[#allocation3 + $0x380] sm:$0xff] %v2859
      %2892 = vst [vmem:[#allocation3 + $0x3c8] sm:$0xff] %v2860
      %2893 = vst [vmem:[#allocation3 + $0x410] sm:$0xff] %v2861
      %2894 = vst [vmem:[#allocation3 + $0x458] sm:$0xff] %v2862
      %v2895 = vld [vmem:[%s1011] sm:$0xe]
      %v2896 = vld [vmem:[%s1011 + $0x4] sm:$0xf]
      %v2897 = vld [vmem:[%s1011 + $0x8] sm:$0x1]
      %v2898 = vld [vmem:[%s1011 + $0xc] sm:$0xe]
      %v2899 = vld [vmem:[%s1011 + $0x10] sm:$0xf]
      %v2900 = vld [vmem:[%s1011 + $0x14] sm:$0x1]
      %v2901 = vld [vmem:[%s1011 + $0x18] sm:$0xe]
      %v2902 = vld [vmem:[%s1011 + $0x1c] sm:$0xf]
      %v2903 = vld [vmem:[%s1011 + $0x20] sm:$0x1]
      %v2904 = vld [vmem:[%s1011 + $0x24] sm:$0xe]
      %v2905 = vld [vmem:[%s1011 + $0x28] sm:$0xf]
      %v2906 = vld [vmem:[%s1011 + $0x2c] sm:$0x1]
      %v2907 = vld [vmem:[%s1011 + $0x30] sm:$0xe]
      %v2908 = vld [vmem:[%s1011 + $0x34] sm:$0xf]
      %v2909 = vld [vmem:[%s1011 + $0x38] sm:$0x1]
      %v2910 = vld [vmem:[%s1011 + $0x3c] sm:$0xe]
      %v2911 = vld [vmem:[%s1011 + $0x40] sm:$0xf]
      %v2912 = vld [vmem:[%s1011 + $0x44] sm:$0x1]
      %v2913 = vld [vmem:[%s1011 + $0x48] sm:$0xe]
      %v2914 = vld [vmem:[%s1011 + $0x4c] sm:$0xf]
      %v2915 = vld [vmem:[%s1011 + $0x50] sm:$0x1]
      %v2916 = vld [vmem:[%s1011 + $0x54] sm:$0xe]
      %v2917 = vld [vmem:[%s1011 + $0x58] sm:$0xf]
      %v2918 = vld [vmem:[%s1011 + $0x5c] sm:$0x1]
      %v2919 = vld [vmem:[%s1011 + $0x60] sm:$0xe]
      %v2920 = vld [vmem:[%s1011 + $0x64] sm:$0xf]
      %v2921 = vld [vmem:[%s1011 + $0x68] sm:$0x1]
      %v2922 = vld [vmem:[%s1011 + $0x6c] sm:$0xe]
      %v2923 = vld [vmem:[%s1011 + $0x70] sm:$0xf]
      %v2924 = vld [vmem:[%s1011 + $0x74] sm:$0x1]
      %v2925 = vld [vmem:[%s1011 + $0x78] sm:$0xe]
      %v2926 = vld [vmem:[%s1011 + $0x7c] sm:$0xf]
      %v2927 = vld [vmem:[%s1011 + $0x80] sm:$0x1]
      %v2928 = vld [vmem:[%s1011 + $0x84] sm:$0xe]
      %v2929 = vld [vmem:[%s1011 + $0x88] sm:$0xf]
      %v2930 = vld [vmem:[%s1011 + $0x8c] sm:$0x1]
      %v2931 = vld [vmem:[%s1011 + $0x90] sm:$0xe]
      %v2932 = vld [vmem:[%s1011 + $0x94] sm:$0xf]
      %v2933 = vld [vmem:[%s1011 + $0x98] sm:$0x1]
      %v2934 = vld [vmem:[%s1011 + $0x9c] sm:$0xe]
      %v2935 = vld [vmem:[%s1011 + $0xa0] sm:$0xf]
      %v2936 = vld [vmem:[%s1011 + $0xa4] sm:$0x1]
      %v2937 = vld [vmem:[%s1011 + $0xa8] sm:$0xe]
      %v2938 = vld [vmem:[%s1011 + $0xac] sm:$0xf]
      %v2939 = vld [vmem:[%s1011 + $0xb0] sm:$0x1]
      %v2940 = vld [vmem:[%s1011 + $0xb4] sm:$0xe]
      %v2941 = vld [vmem:[%s1011 + $0xb8] sm:$0xf]
      %v2942 = vld [vmem:[%s1011 + $0xbc] sm:$0x1]
      %v2991 = vrot.slane %v2895, 5
      %v2992 = vrot.slane %v2991, 4
      %v2993 = vrot.slane %v2896, 5
      %v2994 = vsel %vm2046, %v2992, %v2993
      %v2995 = vrot.slane %v2993, 4
      %v2996 = vrot.slane %v2897, 5
      %v2997 = vsel %vm2046, %v2995, %v2996
      %v2998 = vrot.slane %v2898, 5
      %v2999 = vrot.slane %v2998, 4
      %v3000 = vrot.slane %v2899, 5
      %v3001 = vsel %vm2046, %v2999, %v3000
      %v3002 = vrot.slane %v3000, 4
      %v3003 = vrot.slane %v2900, 5
      %v3004 = vsel %vm2046, %v3002, %v3003
      %v3005 = vrot.slane %v2901, 5
      %v3006 = vrot.slane %v3005, 4
      %v3007 = vrot.slane %v2902, 5
      %v3008 = vsel %vm2046, %v3006, %v3007
      %v3009 = vrot.slane %v3007, 4
      %v3010 = vrot.slane %v2903, 5
      %v3011 = vsel %vm2046, %v3009, %v3010
      %v3012 = vrot.slane %v2904, 5
      %v3013 = vrot.slane %v3012, 4
      %v3014 = vrot.slane %v2905, 5
      %v3015 = vsel %vm2046, %v3013, %v3014
      %v3016 = vrot.slane %v3014, 4
      %v3017 = vrot.slane %v2906, 5
      %v3018 = vsel %vm2046, %v3016, %v3017
      %v3019 = vrot.slane %v2907, 5
      %v3020 = vrot.slane %v3019, 4
      %v3021 = vrot.slane %v2908, 5
      %v3022 = vsel %vm2046, %v3020, %v3021
      %v3023 = vrot.slane %v3021, 4
      %v3024 = vrot.slane %v2909, 5
      %v3025 = vsel %vm2046, %v3023, %v3024
      %v3026 = vrot.slane %v2910, 5
      %v3027 = vrot.slane %v3026, 4
      %v3028 = vrot.slane %v2911, 5
      %v3029 = vsel %vm2046, %v3027, %v3028
      %v3030 = vrot.slane %v3028, 4
      %v3031 = vrot.slane %v2912, 5
      %v3032 = vsel %vm2046, %v3030, %v3031
      %v3033 = vrot.slane %v2913, 5
      %v3034 = vrot.slane %v3033, 4
      %v3035 = vrot.slane %v2914, 5
      %v3036 = vsel %vm2046, %v3034, %v3035
      %v3037 = vrot.slane %v3035, 4
      %v3038 = vrot.slane %v2915, 5
      %v3039 = vsel %vm2046, %v3037, %v3038
      %v3040 = vrot.slane %v2916, 5
      %v3041 = vrot.slane %v3040, 4
      %v3042 = vrot.slane %v2917, 5
      %v3043 = vsel %vm2046, %v3041, %v3042
      %v3044 = vrot.slane %v3042, 4
      %v3045 = vrot.slane %v2918, 5
      %v3046 = vsel %vm2046, %v3044, %v3045
      %v3047 = vrot.slane %v2919, 5
      %v3048 = vrot.slane %v3047, 4
      %v3049 = vrot.slane %v2920, 5
      %v3050 = vsel %vm2046, %v3048, %v3049
      %v3051 = vrot.slane %v3049, 4
      %v3052 = vrot.slane %v2921, 5
      %v3053 = vsel %vm2046, %v3051, %v3052
      %v3054 = vrot.slane %v2922, 5
      %v3055 = vrot.slane %v3054, 4
      %v3056 = vrot.slane %v2923, 5
      %v3057 = vsel %vm2046, %v3055, %v3056
      %v3058 = vrot.slane %v3056, 4
      %v3059 = vrot.slane %v2924, 5
      %v3060 = vsel %vm2046, %v3058, %v3059
      %v3061 = vrot.slane %v2925, 5
      %v3062 = vrot.slane %v3061, 4
      %v3063 = vrot.slane %v2926, 5
      %v3064 = vsel %vm2046, %v3062, %v3063
      %v3065 = vrot.slane %v3063, 4
      %v3066 = vrot.slane %v2927, 5
      %v3067 = vsel %vm2046, %v3065, %v3066
      %v3068 = vrot.slane %v2928, 5
      %v3069 = vrot.slane %v3068, 4
      %v3070 = vrot.slane %v2929, 5
      %v3071 = vsel %vm2046, %v3069, %v3070
      %v3072 = vrot.slane %v3070, 4
      %v3073 = vrot.slane %v2930, 5
      %v3074 = vsel %vm2046, %v3072, %v3073
      %v3075 = vrot.slane %v2931, 5
      %v3076 = vrot.slane %v3075, 4
      %v3077 = vrot.slane %v2932, 5
      %v3078 = vsel %vm2046, %v3076, %v3077
      %v3079 = vrot.slane %v3077, 4
      %v3080 = vrot.slane %v2933, 5
      %v3081 = vsel %vm2046, %v3079, %v3080
      %v3082 = vrot.slane %v2934, 5
      %v3083 = vrot.slane %v3082, 4
      %v3084 = vrot.slane %v2935, 5
      %v3085 = vsel %vm2046, %v3083, %v3084
      %v3086 = vrot.slane %v3084, 4
      %v3087 = vrot.slane %v2936, 5
      %v3088 = vsel %vm2046, %v3086, %v3087
      %v3089 = vrot.slane %v2937, 5
      %v3090 = vrot.slane %v3089, 4
      %v3091 = vrot.slane %v2938, 5
      %v3092 = vsel %vm2046, %v3090, %v3091
      %v3093 = vrot.slane %v3091, 4
      %v3094 = vrot.slane %v2939, 5
      %v3095 = vsel %vm2046, %v3093, %v3094
      %v3096 = vrot.slane %v2940, 5
      %v3097 = vrot.slane %v3096, 4
      %v3098 = vrot.slane %v2941, 5
      %v3099 = vsel %vm2046, %v3097, %v3098
      %v3100 = vrot.slane %v3098, 4
      %v3101 = vrot.slane %v2942, 5
      %v3102 = vsel %vm2046, %v3100, %v3101
      %v3103 = vunpack.c.l.b16 %v2994
      %v3104 = vunpack.c.l.b16 %v2997
      %v3105 = vunpack.c.l.b16 %v3001
      %v3106 = vunpack.c.l.b16 %v3004
      %v3107 = vunpack.c.l.b16 %v3008
      %v3108 = vunpack.c.l.b16 %v3011
      %v3109 = vunpack.c.l.b16 %v3015
      %v3110 = vunpack.c.l.b16 %v3018
      %v3111 = vunpack.c.l.b16 %v3022
      %v3112 = vunpack.c.l.b16 %v3025
      %v3113 = vunpack.c.l.b16 %v3029
      %v3114 = vunpack.c.l.b16 %v3032
      %v3115 = vunpack.c.l.b16 %v3036
      %v3116 = vunpack.c.l.b16 %v3039
      %v3117 = vunpack.c.l.b16 %v3043
      %v3118 = vunpack.c.l.b16 %v3046
      %v3119 = vunpack.c.l.b16 %v3050
      %v3120 = vunpack.c.l.b16 %v3053
      %v3121 = vunpack.c.l.b16 %v3057
      %v3122 = vunpack.c.l.b16 %v3060
      %v3123 = vunpack.c.l.b16 %v3064
      %v3124 = vunpack.c.l.b16 %v3067
      %v3125 = vunpack.c.l.b16 %v3071
      %v3126 = vunpack.c.l.b16 %v3074
      %v3127 = vunpack.c.l.b16 %v3078
      %v3128 = vunpack.c.l.b16 %v3081
      %v3129 = vunpack.c.l.b16 %v3085
      %v3130 = vunpack.c.l.b16 %v3088
      %v3131 = vunpack.c.l.b16 %v3092
      %v3132 = vunpack.c.l.b16 %v3095
      %v3133 = vunpack.c.l.b16 %v3099
      %v3134 = vunpack.c.l.b16 %v3102
      %v3135 = vpack.c.b16 %v3104, %v3103
      %v3136 = vpack.c.b16 %v3106, %v3105
      %v3137 = vpack.c.b16 %v3108, %v3107
      %v3138 = vpack.c.b16 %v3110, %v3109
      %v3139 = vpack.c.b16 %v3112, %v3111
      %v3140 = vpack.c.b16 %v3114, %v3113
      %v3141 = vpack.c.b16 %v3116, %v3115
      %v3142 = vpack.c.b16 %v3118, %v3117
      %v3143 = vpack.c.b16 %v3120, %v3119
      %v3144 = vpack.c.b16 %v3122, %v3121
      %v3145 = vpack.c.b16 %v3124, %v3123
      %v3146 = vpack.c.b16 %v3126, %v3125
      %v3147 = vpack.c.b16 %v3128, %v3127
      %v3148 = vpack.c.b16 %v3130, %v3129
      %v3149 = vpack.c.b16 %v3132, %v3131
      %v3150 = vpack.c.b16 %v3134, %v3133
      %3167 = vst [vmem:[#allocation3 + $0x28] sm:$0xff] %v3135
      %3168 = vst [vmem:[#allocation3 + $0x70] sm:$0xff] %v3136
      %3169 = vst [vmem:[#allocation3 + $0xb8] sm:$0xff] %v3137
      %3170 = vst [vmem:[#allocation3 + $0x100] sm:$0xff] %v3138
      %3171 = vst [vmem:[#allocation3 + $0x148] sm:$0xff] %v3139
      %3172 = vst [vmem:[#allocation3 + $0x190] sm:$0xff] %v3140
      %3173 = vst [vmem:[#allocation3 + $0x1d8] sm:$0xff] %v3141
      %3174 = vst [vmem:[#allocation3 + $0x220] sm:$0xff] %v3142
      %3175 = vst [vmem:[#allocation3 + $0x268] sm:$0xff] %v3143
      %3176 = vst [vmem:[#allocation3 + $0x2b0] sm:$0xff] %v3144
      %3177 = vst [vmem:[#allocation3 + $0x2f8] sm:$0xff] %v3145
      %3178 = vst [vmem:[#allocation3 + $0x340] sm:$0xff] %v3146
      %3179 = vst [vmem:[#allocation3 + $0x388] sm:$0xff] %v3147
      %3180 = vst [vmem:[#allocation3 + $0x3d0] sm:$0xff] %v3148
      %3181 = vst [vmem:[#allocation3 + $0x418] sm:$0xff] %v3149
      %3182 = vst [vmem:[#allocation3 + $0x460] sm:$0xff] %v3150
      %s3183 = scalar_lea.vmem [#allocation2], 24
      %v3184 = vld [vmem:[%s3183] sm:$0xf]
      %v3185 = vld [vmem:[%s3183 + $0x4] sm:$0xf]
      %v3186 = vld [vmem:[%s3183 + $0xc] sm:$0xf]
      %v3187 = vld [vmem:[%s3183 + $0x10] sm:$0xf]
      %v3188 = vld [vmem:[%s3183 + $0x18] sm:$0xf]
      %v3189 = vld [vmem:[%s3183 + $0x1c] sm:$0xf]
      %v3190 = vld [vmem:[%s3183 + $0x24] sm:$0xf]
      %v3191 = vld [vmem:[%s3183 + $0x28] sm:$0xf]
      %v3192 = vld [vmem:[%s3183 + $0x30] sm:$0xf]
      %v3193 = vld [vmem:[%s3183 + $0x34] sm:$0xf]
      %v3194 = vld [vmem:[%s3183 + $0x3c] sm:$0xf]
      %v3195 = vld [vmem:[%s3183 + $0x40] sm:$0xf]
      %v3196 = vld [vmem:[%s3183 + $0x48] sm:$0xf]
      %v3197 = vld [vmem:[%s3183 + $0x4c] sm:$0xf]
      %v3198 = vld [vmem:[%s3183 + $0x54] sm:$0xf]
      %v3199 = vld [vmem:[%s3183 + $0x58] sm:$0xf]
      %v3200 = vld [vmem:[%s3183 + $0x60] sm:$0xf]
      %v3201 = vld [vmem:[%s3183 + $0x64] sm:$0xf]
      %v3202 = vld [vmem:[%s3183 + $0x6c] sm:$0xf]
      %v3203 = vld [vmem:[%s3183 + $0x70] sm:$0xf]
      %v3204 = vld [vmem:[%s3183 + $0x78] sm:$0xf]
      %v3205 = vld [vmem:[%s3183 + $0x7c] sm:$0xf]
      %v3206 = vld [vmem:[%s3183 + $0x84] sm:$0xf]
      %v3207 = vld [vmem:[%s3183 + $0x88] sm:$0xf]
      %v3208 = vld [vmem:[%s3183 + $0x90] sm:$0xf]
      %v3209 = vld [vmem:[%s3183 + $0x94] sm:$0xf]
      %v3210 = vld [vmem:[%s3183 + $0x9c] sm:$0xf]
      %v3211 = vld [vmem:[%s3183 + $0xa0] sm:$0xf]
      %v3212 = vld [vmem:[%s3183 + $0xa8] sm:$0xf]
      %v3213 = vld [vmem:[%s3183 + $0xac] sm:$0xf]
      %v3214 = vld [vmem:[%s3183 + $0xb4] sm:$0xf]
      %v3215 = vld [vmem:[%s3183 + $0xb8] sm:$0xf]
      %v3248 = vunpack.c.l.b16 %v3184
      %v3249 = vunpack.c.l.b16 %v3185
      %v3250 = vunpack.c.l.b16 %v3186
      %v3251 = vunpack.c.l.b16 %v3187
      %v3252 = vunpack.c.l.b16 %v3188
      %v3253 = vunpack.c.l.b16 %v3189
      %v3254 = vunpack.c.l.b16 %v3190
      %v3255 = vunpack.c.l.b16 %v3191
      %v3256 = vunpack.c.l.b16 %v3192
      %v3257 = vunpack.c.l.b16 %v3193
      %v3258 = vunpack.c.l.b16 %v3194
      %v3259 = vunpack.c.l.b16 %v3195
      %v3260 = vunpack.c.l.b16 %v3196
      %v3261 = vunpack.c.l.b16 %v3197
      %v3262 = vunpack.c.l.b16 %v3198
      %v3263 = vunpack.c.l.b16 %v3199
      %v3264 = vunpack.c.l.b16 %v3200
      %v3265 = vunpack.c.l.b16 %v3201
      %v3266 = vunpack.c.l.b16 %v3202
      %v3267 = vunpack.c.l.b16 %v3203
      %v3268 = vunpack.c.l.b16 %v3204
      %v3269 = vunpack.c.l.b16 %v3205
      %v3270 = vunpack.c.l.b16 %v3206
      %v3271 = vunpack.c.l.b16 %v3207
      %v3272 = vunpack.c.l.b16 %v3208
      %v3273 = vunpack.c.l.b16 %v3209
      %v3274 = vunpack.c.l.b16 %v3210
      %v3275 = vunpack.c.l.b16 %v3211
      %v3276 = vunpack.c.l.b16 %v3212
      %v3277 = vunpack.c.l.b16 %v3213
      %v3278 = vunpack.c.l.b16 %v3214
      %v3279 = vunpack.c.l.b16 %v3215
      %v3280 = vpack.c.b16 %v3249, %v3248
      %v3281 = vpack.c.b16 %v3251, %v3250
      %v3282 = vpack.c.b16 %v3253, %v3252
      %v3283 = vpack.c.b16 %v3255, %v3254
      %v3284 = vpack.c.b16 %v3257, %v3256
      %v3285 = vpack.c.b16 %v3259, %v3258
      %v3286 = vpack.c.b16 %v3261, %v3260
      %v3287 = vpack.c.b16 %v3263, %v3262
      %v3288 = vpack.c.b16 %v3265, %v3264
      %v3289 = vpack.c.b16 %v3267, %v3266
      %v3290 = vpack.c.b16 %v3269, %v3268
      %v3291 = vpack.c.b16 %v3271, %v3270
      %v3292 = vpack.c.b16 %v3273, %v3272
      %v3293 = vpack.c.b16 %v3275, %v3274
      %v3294 = vpack.c.b16 %v3277, %v3276
      %v3295 = vpack.c.b16 %v3279, %v3278
      %3312 = vst [vmem:[#allocation3 + $0x30] sm:$0xff] %v3280
      %3313 = vst [vmem:[#allocation3 + $0x78] sm:$0xff] %v3281
      %3314 = vst [vmem:[#allocation3 + $0xc0] sm:$0xff] %v3282
      %3315 = vst [vmem:[#allocation3 + $0x108] sm:$0xff] %v3283
      %3316 = vst [vmem:[#allocation3 + $0x150] sm:$0xff] %v3284
      %3317 = vst [vmem:[#allocation3 + $0x198] sm:$0xff] %v3285
      %3318 = vst [vmem:[#allocation3 + $0x1e0] sm:$0xff] %v3286
      %3319 = vst [vmem:[#allocation3 + $0x228] sm:$0xff] %v3287
      %3320 = vst [vmem:[#allocation3 + $0x270] sm:$0xff] %v3288
      %3321 = vst [vmem:[#allocation3 + $0x2b8] sm:$0xff] %v3289
      %3322 = vst [vmem:[#allocation3 + $0x300] sm:$0xff] %v3290
      %3323 = vst [vmem:[#allocation3 + $0x348] sm:$0xff] %v3291
      %3324 = vst [vmem:[#allocation3 + $0x390] sm:$0xff] %v3292
      %3325 = vst [vmem:[#allocation3 + $0x3d8] sm:$0xff] %v3293
      %3326 = vst [vmem:[#allocation3 + $0x420] sm:$0xff] %v3294
      %3327 = vst [vmem:[#allocation3 + $0x468] sm:$0xff] %v3295
      %v3328 = vld [vmem:[%s3183] sm:$0xf]
      %v3329 = vld [vmem:[%s3183 + $0x4] sm:$0xf]
      %v3330 = vld [vmem:[%s3183 + $0x8] sm:$0x1]
      %v3331 = vld [vmem:[%s3183 + $0xc] sm:$0xf]
      %v3332 = vld [vmem:[%s3183 + $0x10] sm:$0xf]
      %v3333 = vld [vmem:[%s3183 + $0x14] sm:$0x1]
      %v3334 = vld [vmem:[%s3183 + $0x18] sm:$0xf]
      %v3335 = vld [vmem:[%s3183 + $0x1c] sm:$0xf]
      %v3336 = vld [vmem:[%s3183 + $0x20] sm:$0x1]
      %v3337 = vld [vmem:[%s3183 + $0x24] sm:$0xf]
      %v3338 = vld [vmem:[%s3183 + $0x28] sm:$0xf]
      %v3339 = vld [vmem:[%s3183 + $0x2c] sm:$0x1]
      %v3340 = vld [vmem:[%s3183 + $0x30] sm:$0xf]
      %v3341 = vld [vmem:[%s3183 + $0x34] sm:$0xf]
      %v3342 = vld [vmem:[%s3183 + $0x38] sm:$0x1]
      %v3343 = vld [vmem:[%s3183 + $0x3c] sm:$0xf]
      %v3344 = vld [vmem:[%s3183 + $0x40] sm:$0xf]
      %v3345 = vld [vmem:[%s3183 + $0x44] sm:$0x1]
      %v3346 = vld [vmem:[%s3183 + $0x48] sm:$0xf]
      %v3347 = vld [vmem:[%s3183 + $0x4c] sm:$0xf]
      %v3348 = vld [vmem:[%s3183 + $0x50] sm:$0x1]
      %v3349 = vld [vmem:[%s3183 + $0x54] sm:$0xf]
      %v3350 = vld [vmem:[%s3183 + $0x58] sm:$0xf]
      %v3351 = vld [vmem:[%s3183 + $0x5c] sm:$0x1]
      %v3352 = vld [vmem:[%s3183 + $0x60] sm:$0xf]
      %v3353 = vld [vmem:[%s3183 + $0x64] sm:$0xf]
      %v3354 = vld [vmem:[%s3183 + $0x68] sm:$0x1]
      %v3355 = vld [vmem:[%s3183 + $0x6c] sm:$0xf]
      %v3356 = vld [vmem:[%s3183 + $0x70] sm:$0xf]
      %v3357 = vld [vmem:[%s3183 + $0x74] sm:$0x1]
      %v3358 = vld [vmem:[%s3183 + $0x78] sm:$0xf]
      %v3359 = vld [vmem:[%s3183 + $0x7c] sm:$0xf]
      %v3360 = vld [vmem:[%s3183 + $0x80] sm:$0x1]
      %v3361 = vld [vmem:[%s3183 + $0x84] sm:$0xf]
      %v3362 = vld [vmem:[%s3183 + $0x88] sm:$0xf]
      %v3363 = vld [vmem:[%s3183 + $0x8c] sm:$0x1]
      %v3364 = vld [vmem:[%s3183 + $0x90] sm:$0xf]
      %v3365 = vld [vmem:[%s3183 + $0x94] sm:$0xf]
      %v3366 = vld [vmem:[%s3183 + $0x98] sm:$0x1]
      %v3367 = vld [vmem:[%s3183 + $0x9c] sm:$0xf]
      %v3368 = vld [vmem:[%s3183 + $0xa0] sm:$0xf]
      %v3369 = vld [vmem:[%s3183 + $0xa4] sm:$0x1]
      %v3370 = vld [vmem:[%s3183 + $0xa8] sm:$0xf]
      %v3371 = vld [vmem:[%s3183 + $0xac] sm:$0xf]
      %v3372 = vld [vmem:[%s3183 + $0xb0] sm:$0x1]
      %v3373 = vld [vmem:[%s3183 + $0xb4] sm:$0xf]
      %v3374 = vld [vmem:[%s3183 + $0xb8] sm:$0xf]
      %v3375 = vld [vmem:[%s3183 + $0xbc] sm:$0x1]
      %v3377 = vshrl.u32 %v3328, 16
      %v3379 = vrot.slane %v3377, 4
      %v3380 = vshll.u32 %v3328, 16
      %v3382 = vrot.slane %v3380, 5
      %v3383 = vor.u32 %v3379, %v3382
      %v3384 = vrot.slane %v3383, 4
      %v3386 = vshll.u32 %v3329, 16
      %v3388 = vrot.slane %v3386, 5
      %v3389 = vsel %vm1483, %v3384, %v3388
      %v3390 = vshrl.u32 %v3329, 16
      %v3392 = vrot.slane %v3390, 4
      %v3393 = vor.u32 %v3392, %v3388
      %v3394 = vrot.slane %v3393, 4
      %v3396 = vshll.u32 %v3330, 16
      %v3398 = vrot.slane %v3396, 5
      %v3399 = vsel %vm1483, %v3394, %v3398
      %v3401 = vshrl.u32 %v3331, 16
      %v3403 = vrot.slane %v3401, 4
      %v3404 = vshll.u32 %v3331, 16
      %v3406 = vrot.slane %v3404, 5
      %v3407 = vor.u32 %v3403, %v3406
      %v3408 = vrot.slane %v3407, 4
      %v3410 = vshll.u32 %v3332, 16
      %v3412 = vrot.slane %v3410, 5
      %v3413 = vsel %vm1483, %v3408, %v3412
      %v3414 = vshrl.u32 %v3332, 16
      %v3416 = vrot.slane %v3414, 4
      %v3417 = vor.u32 %v3416, %v3412
      %v3418 = vrot.slane %v3417, 4
      %v3420 = vshll.u32 %v3333, 16
      %v3422 = vrot.slane %v3420, 5
      %v3423 = vsel %vm1483, %v3418, %v3422
      %v3425 = vshrl.u32 %v3334, 16
      %v3427 = vrot.slane %v3425, 4
      %v3428 = vshll.u32 %v3334, 16
      %v3430 = vrot.slane %v3428, 5
      %v3431 = vor.u32 %v3427, %v3430
      %v3432 = vrot.slane %v3431, 4
      %v3434 = vshll.u32 %v3335, 16
      %v3436 = vrot.slane %v3434, 5
      %v3437 = vsel %vm1483, %v3432, %v3436
      %v3438 = vshrl.u32 %v3335, 16
      %v3440 = vrot.slane %v3438, 4
      %v3441 = vor.u32 %v3440, %v3436
      %v3442 = vrot.slane %v3441, 4
      %v3444 = vshll.u32 %v3336, 16
      %v3446 = vrot.slane %v3444, 5
      %v3447 = vsel %vm1483, %v3442, %v3446
      %v3449 = vshrl.u32 %v3337, 16
      %v3451 = vrot.slane %v3449, 4
      %v3452 = vshll.u32 %v3337, 16
      %v3454 = vrot.slane %v3452, 5
      %v3455 = vor.u32 %v3451, %v3454
      %v3456 = vrot.slane %v3455, 4
      %v3458 = vshll.u32 %v3338, 16
      %v3460 = vrot.slane %v3458, 5
      %v3461 = vsel %vm1483, %v3456, %v3460
      %v3462 = vshrl.u32 %v3338, 16
      %v3464 = vrot.slane %v3462, 4
      %v3465 = vor.u32 %v3464, %v3460
      %v3466 = vrot.slane %v3465, 4
      %v3468 = vshll.u32 %v3339, 16
      %v3470 = vrot.slane %v3468, 5
      %v3471 = vsel %vm1483, %v3466, %v3470
      %v3473 = vshrl.u32 %v3340, 16
      %v3475 = vrot.slane %v3473, 4
      %v3476 = vshll.u32 %v3340, 16
      %v3478 = vrot.slane %v3476, 5
      %v3479 = vor.u32 %v3475, %v3478
      %v3480 = vrot.slane %v3479, 4
      %v3482 = vshll.u32 %v3341, 16
      %v3484 = vrot.slane %v3482, 5
      %v3485 = vsel %vm1483, %v3480, %v3484
      %v3486 = vshrl.u32 %v3341, 16
      %v3488 = vrot.slane %v3486, 4
      %v3489 = vor.u32 %v3488, %v3484
      %v3490 = vrot.slane %v3489, 4
      %v3492 = vshll.u32 %v3342, 16
      %v3494 = vrot.slane %v3492, 5
      %v3495 = vsel %vm1483, %v3490, %v3494
      %v3497 = vshrl.u32 %v3343, 16
      %v3499 = vrot.slane %v3497, 4
      %v3500 = vshll.u32 %v3343, 16
      %v3502 = vrot.slane %v3500, 5
      %v3503 = vor.u32 %v3499, %v3502
      %v3504 = vrot.slane %v3503, 4
      %v3506 = vshll.u32 %v3344, 16
      %v3508 = vrot.slane %v3506, 5
      %v3509 = vsel %vm1483, %v3504, %v3508
      %v3510 = vshrl.u32 %v3344, 16
      %v3512 = vrot.slane %v3510, 4
      %v3513 = vor.u32 %v3512, %v3508
      %v3514 = vrot.slane %v3513, 4
      %v3516 = vshll.u32 %v3345, 16
      %v3518 = vrot.slane %v3516, 5
      %v3519 = vsel %vm1483, %v3514, %v3518
      %v3521 = vshrl.u32 %v3346, 16
      %v3523 = vrot.slane %v3521, 4
      %v3524 = vshll.u32 %v3346, 16
      %v3526 = vrot.slane %v3524, 5
      %v3527 = vor.u32 %v3523, %v3526
      %v3528 = vrot.slane %v3527, 4
      %v3530 = vshll.u32 %v3347, 16
      %v3532 = vrot.slane %v3530, 5
      %v3533 = vsel %vm1483, %v3528, %v3532
      %v3534 = vshrl.u32 %v3347, 16
      %v3536 = vrot.slane %v3534, 4
      %v3537 = vor.u32 %v3536, %v3532
      %v3538 = vrot.slane %v3537, 4
      %v3540 = vshll.u32 %v3348, 16
      %v3542 = vrot.slane %v3540, 5
      %v3543 = vsel %vm1483, %v3538, %v3542
      %v3545 = vshrl.u32 %v3349, 16
      %v3547 = vrot.slane %v3545, 4
      %v3548 = vshll.u32 %v3349, 16
      %v3550 = vrot.slane %v3548, 5
      %v3551 = vor.u32 %v3547, %v3550
      %v3552 = vrot.slane %v3551, 4
      %v3554 = vshll.u32 %v3350, 16
      %v3556 = vrot.slane %v3554, 5
      %v3557 = vsel %vm1483, %v3552, %v3556
      %v3558 = vshrl.u32 %v3350, 16
      %v3560 = vrot.slane %v3558, 4
      %v3561 = vor.u32 %v3560, %v3556
      %v3562 = vrot.slane %v3561, 4
      %v3564 = vshll.u32 %v3351, 16
      %v3566 = vrot.slane %v3564, 5
      %v3567 = vsel %vm1483, %v3562, %v3566
      %v3569 = vshrl.u32 %v3352, 16
      %v3571 = vrot.slane %v3569, 4
      %v3572 = vshll.u32 %v3352, 16
      %v3574 = vrot.slane %v3572, 5
      %v3575 = vor.u32 %v3571, %v3574
      %v3576 = vrot.slane %v3575, 4
      %v3578 = vshll.u32 %v3353, 16
      %v3580 = vrot.slane %v3578, 5
      %v3581 = vsel %vm1483, %v3576, %v3580
      %v3582 = vshrl.u32 %v3353, 16
      %v3584 = vrot.slane %v3582, 4
      %v3585 = vor.u32 %v3584, %v3580
      %v3586 = vrot.slane %v3585, 4
      %v3588 = vshll.u32 %v3354, 16
      %v3590 = vrot.slane %v3588, 5
      %v3591 = vsel %vm1483, %v3586, %v3590
      %v3593 = vshrl.u32 %v3355, 16
      %v3595 = vrot.slane %v3593, 4
      %v3596 = vshll.u32 %v3355, 16
      %v3598 = vrot.slane %v3596, 5
      %v3599 = vor.u32 %v3595, %v3598
      %v3600 = vrot.slane %v3599, 4
      %v3602 = vshll.u32 %v3356, 16
      %v3604 = vrot.slane %v3602, 5
      %v3605 = vsel %vm1483, %v3600, %v3604
      %v3606 = vshrl.u32 %v3356, 16
      %v3608 = vrot.slane %v3606, 4
      %v3609 = vor.u32 %v3608, %v3604
      %v3610 = vrot.slane %v3609, 4
      %v3612 = vshll.u32 %v3357, 16
      %v3614 = vrot.slane %v3612, 5
      %v3615 = vsel %vm1483, %v3610, %v3614
      %v3617 = vshrl.u32 %v3358, 16
      %v3619 = vrot.slane %v3617, 4
      %v3620 = vshll.u32 %v3358, 16
      %v3622 = vrot.slane %v3620, 5
      %v3623 = vor.u32 %v3619, %v3622
      %v3624 = vrot.slane %v3623, 4
      %v3626 = vshll.u32 %v3359, 16
      %v3628 = vrot.slane %v3626, 5
      %v3629 = vsel %vm1483, %v3624, %v3628
      %v3630 = vshrl.u32 %v3359, 16
      %v3632 = vrot.slane %v3630, 4
      %v3633 = vor.u32 %v3632, %v3628
      %v3634 = vrot.slane %v3633, 4
      %v3636 = vshll.u32 %v3360, 16
      %v3638 = vrot.slane %v3636, 5
      %v3639 = vsel %vm1483, %v3634, %v3638
      %v3641 = vshrl.u32 %v3361, 16
      %v3643 = vrot.slane %v3641, 4
      %v3644 = vshll.u32 %v3361, 16
      %v3646 = vrot.slane %v3644, 5
      %v3647 = vor.u32 %v3643, %v3646
      %v3648 = vrot.slane %v3647, 4
      %v3650 = vshll.u32 %v3362, 16
      %v3652 = vrot.slane %v3650, 5
      %v3653 = vsel %vm1483, %v3648, %v3652
      %v3654 = vshrl.u32 %v3362, 16
      %v3656 = vrot.slane %v3654, 4
      %v3657 = vor.u32 %v3656, %v3652
      %v3658 = vrot.slane %v3657, 4
      %v3660 = vshll.u32 %v3363, 16
      %v3662 = vrot.slane %v3660, 5
      %v3663 = vsel %vm1483, %v3658, %v3662
      %v3665 = vshrl.u32 %v3364, 16
      %v3667 = vrot.slane %v3665, 4
      %v3668 = vshll.u32 %v3364, 16
      %v3670 = vrot.slane %v3668, 5
      %v3671 = vor.u32 %v3667, %v3670
      %v3672 = vrot.slane %v3671, 4
      %v3674 = vshll.u32 %v3365, 16
      %v3676 = vrot.slane %v3674, 5
      %v3677 = vsel %vm1483, %v3672, %v3676
      %v3678 = vshrl.u32 %v3365, 16
      %v3680 = vrot.slane %v3678, 4
      %v3681 = vor.u32 %v3680, %v3676
      %v3682 = vrot.slane %v3681, 4
      %v3684 = vshll.u32 %v3366, 16
      %v3686 = vrot.slane %v3684, 5
      %v3687 = vsel %vm1483, %v3682, %v3686
      %v3689 = vshrl.u32 %v3367, 16
      %v3691 = vrot.slane %v3689, 4
      %v3692 = vshll.u32 %v3367, 16
      %v3694 = vrot.slane %v3692, 5
      %v3695 = vor.u32 %v3691, %v3694
      %v3696 = vrot.slane %v3695, 4
      %v3698 = vshll.u32 %v3368, 16
      %v3700 = vrot.slane %v3698, 5
      %v3701 = vsel %vm1483, %v3696, %v3700
      %v3702 = vshrl.u32 %v3368, 16
      %v3704 = vrot.slane %v3702, 4
      %v3705 = vor.u32 %v3704, %v3700
      %v3706 = vrot.slane %v3705, 4
      %v3708 = vshll.u32 %v3369, 16
      %v3710 = vrot.slane %v3708, 5
      %v3711 = vsel %vm1483, %v3706, %v3710
      %v3713 = vshrl.u32 %v3370, 16
      %v3715 = vrot.slane %v3713, 4
      %v3716 = vshll.u32 %v3370, 16
      %v3718 = vrot.slane %v3716, 5
      %v3719 = vor.u32 %v3715, %v3718
      %v3720 = vrot.slane %v3719, 4
      %v3722 = vshll.u32 %v3371, 16
      %v3724 = vrot.slane %v3722, 5
      %v3725 = vsel %vm1483, %v3720, %v3724
      %v3726 = vshrl.u32 %v3371, 16
      %v3728 = vrot.slane %v3726, 4
      %v3729 = vor.u32 %v3728, %v3724
      %v3730 = vrot.slane %v3729, 4
      %v3732 = vshll.u32 %v3372, 16
      %v3734 = vrot.slane %v3732, 5
      %v3735 = vsel %vm1483, %v3730, %v3734
      %v3737 = vshrl.u32 %v3373, 16
      %v3739 = vrot.slane %v3737, 4
      %v3740 = vshll.u32 %v3373, 16
      %v3742 = vrot.slane %v3740, 5
      %v3743 = vor.u32 %v3739, %v3742
      %v3744 = vrot.slane %v3743, 4
      %v3746 = vshll.u32 %v3374, 16
      %v3748 = vrot.slane %v3746, 5
      %v3749 = vsel %vm1483, %v3744, %v3748
      %v3750 = vshrl.u32 %v3374, 16
      %v3752 = vrot.slane %v3750, 4
      %v3753 = vor.u32 %v3752, %v3748
      %v3754 = vrot.slane %v3753, 4
      %v3756 = vshll.u32 %v3375, 16
      %v3758 = vrot.slane %v3756, 5
      %v3759 = vsel %vm1483, %v3754, %v3758
      %v3760 = vunpack.c.l.b16 %v3389
      %v3761 = vunpack.c.l.b16 %v3399
      %v3762 = vunpack.c.l.b16 %v3413
      %v3763 = vunpack.c.l.b16 %v3423
      %v3764 = vunpack.c.l.b16 %v3437
      %v3765 = vunpack.c.l.b16 %v3447
      %v3766 = vunpack.c.l.b16 %v3461
      %v3767 = vunpack.c.l.b16 %v3471
      %v3768 = vunpack.c.l.b16 %v3485
      %v3769 = vunpack.c.l.b16 %v3495
      %v3770 = vunpack.c.l.b16 %v3509
      %v3771 = vunpack.c.l.b16 %v3519
      %v3772 = vunpack.c.l.b16 %v3533
      %v3773 = vunpack.c.l.b16 %v3543
      %v3774 = vunpack.c.l.b16 %v3557
      %v3775 = vunpack.c.l.b16 %v3567
      %v3776 = vunpack.c.l.b16 %v3581
      %v3777 = vunpack.c.l.b16 %v3591
      %v3778 = vunpack.c.l.b16 %v3605
      %v3779 = vunpack.c.l.b16 %v3615
      %v3780 = vunpack.c.l.b16 %v3629
      %v3781 = vunpack.c.l.b16 %v3639
      %v3782 = vunpack.c.l.b16 %v3653
      %v3783 = vunpack.c.l.b16 %v3663
      %v3784 = vunpack.c.l.b16 %v3677
      %v3785 = vunpack.c.l.b16 %v3687
      %v3786 = vunpack.c.l.b16 %v3701
      %v3787 = vunpack.c.l.b16 %v3711
      %v3788 = vunpack.c.l.b16 %v3725
      %v3789 = vunpack.c.l.b16 %v3735
      %v3790 = vunpack.c.l.b16 %v3749
      %v3791 = vunpack.c.l.b16 %v3759
      %v3792 = vpack.c.b16 %v3761, %v3760
      %v3793 = vpack.c.b16 %v3763, %v3762
      %v3794 = vpack.c.b16 %v3765, %v3764
      %v3795 = vpack.c.b16 %v3767, %v3766
      %v3796 = vpack.c.b16 %v3769, %v3768
      %v3797 = vpack.c.b16 %v3771, %v3770
      %v3798 = vpack.c.b16 %v3773, %v3772
      %v3799 = vpack.c.b16 %v3775, %v3774
      %v3800 = vpack.c.b16 %v3777, %v3776
      %v3801 = vpack.c.b16 %v3779, %v3778
      %v3802 = vpack.c.b16 %v3781, %v3780
      %v3803 = vpack.c.b16 %v3783, %v3782
      %v3804 = vpack.c.b16 %v3785, %v3784
      %v3805 = vpack.c.b16 %v3787, %v3786
      %v3806 = vpack.c.b16 %v3789, %v3788
      %v3807 = vpack.c.b16 %v3791, %v3790
      %3824 = vst [vmem:[#allocation3 + $0x38] sm:$0xff] %v3792
      %3825 = vst [vmem:[#allocation3 + $0x80] sm:$0xff] %v3793
      %3826 = vst [vmem:[#allocation3 + $0xc8] sm:$0xff] %v3794
      %3827 = vst [vmem:[#allocation3 + $0x110] sm:$0xff] %v3795
      %3828 = vst [vmem:[#allocation3 + $0x158] sm:$0xff] %v3796
      %3829 = vst [vmem:[#allocation3 + $0x1a0] sm:$0xff] %v3797
      %3830 = vst [vmem:[#allocation3 + $0x1e8] sm:$0xff] %v3798
      %3831 = vst [vmem:[#allocation3 + $0x230] sm:$0xff] %v3799
      %3832 = vst [vmem:[#allocation3 + $0x278] sm:$0xff] %v3800
      %3833 = vst [vmem:[#allocation3 + $0x2c0] sm:$0xff] %v3801
      %3834 = vst [vmem:[#allocation3 + $0x308] sm:$0xff] %v3802
      %3835 = vst [vmem:[#allocation3 + $0x350] sm:$0xff] %v3803
      %3836 = vst [vmem:[#allocation3 + $0x398] sm:$0xff] %v3804
      %3837 = vst [vmem:[#allocation3 + $0x3e0] sm:$0xff] %v3805
      %3838 = vst [vmem:[#allocation3 + $0x428] sm:$0xff] %v3806
      %3839 = vst [vmem:[#allocation3 + $0x470] sm:$0xff] %v3807
      %v3840 = vld [vmem:[%s3183] sm:$0xe]
      %v3841 = vld [vmem:[%s3183 + $0x4] sm:$0xf]
      %v3842 = vld [vmem:[%s3183 + $0x8] sm:$0x1]
      %v3843 = vld [vmem:[%s3183 + $0xc] sm:$0xe]
      %v3844 = vld [vmem:[%s3183 + $0x10] sm:$0xf]
      %v3845 = vld [vmem:[%s3183 + $0x14] sm:$0x1]
      %v3846 = vld [vmem:[%s3183 + $0x18] sm:$0xe]
      %v3847 = vld [vmem:[%s3183 + $0x1c] sm:$0xf]
      %v3848 = vld [vmem:[%s3183 + $0x20] sm:$0x1]
      %v3849 = vld [vmem:[%s3183 + $0x24] sm:$0xe]
      %v3850 = vld [vmem:[%s3183 + $0x28] sm:$0xf]
      %v3851 = vld [vmem:[%s3183 + $0x2c] sm:$0x1]
      %v3852 = vld [vmem:[%s3183 + $0x30] sm:$0xe]
      %v3853 = vld [vmem:[%s3183 + $0x34] sm:$0xf]
      %v3854 = vld [vmem:[%s3183 + $0x38] sm:$0x1]
      %v3855 = vld [vmem:[%s3183 + $0x3c] sm:$0xe]
      %v3856 = vld [vmem:[%s3183 + $0x40] sm:$0xf]
      %v3857 = vld [vmem:[%s3183 + $0x44] sm:$0x1]
      %v3858 = vld [vmem:[%s3183 + $0x48] sm:$0xe]
      %v3859 = vld [vmem:[%s3183 + $0x4c] sm:$0xf]
      %v3860 = vld [vmem:[%s3183 + $0x50] sm:$0x1]
      %v3861 = vld [vmem:[%s3183 + $0x54] sm:$0xe]
      %v3862 = vld [vmem:[%s3183 + $0x58] sm:$0xf]
      %v3863 = vld [vmem:[%s3183 + $0x5c] sm:$0x1]
      %v3864 = vld [vmem:[%s3183 + $0x60] sm:$0xe]
      %v3865 = vld [vmem:[%s3183 + $0x64] sm:$0xf]
      %v3866 = vld [vmem:[%s3183 + $0x68] sm:$0x1]
      %v3867 = vld [vmem:[%s3183 + $0x6c] sm:$0xe]
      %v3868 = vld [vmem:[%s3183 + $0x70] sm:$0xf]
      %v3869 = vld [vmem:[%s3183 + $0x74] sm:$0x1]
      %v3870 = vld [vmem:[%s3183 + $0x78] sm:$0xe]
      %v3871 = vld [vmem:[%s3183 + $0x7c] sm:$0xf]
      %v3872 = vld [vmem:[%s3183 + $0x80] sm:$0x1]
      %v3873 = vld [vmem:[%s3183 + $0x84] sm:$0xe]
      %v3874 = vld [vmem:[%s3183 + $0x88] sm:$0xf]
      %v3875 = vld [vmem:[%s3183 + $0x8c] sm:$0x1]
      %v3876 = vld [vmem:[%s3183 + $0x90] sm:$0xe]
      %v3877 = vld [vmem:[%s3183 + $0x94] sm:$0xf]
      %v3878 = vld [vmem:[%s3183 + $0x98] sm:$0x1]
      %v3879 = vld [vmem:[%s3183 + $0x9c] sm:$0xe]
      %v3880 = vld [vmem:[%s3183 + $0xa0] sm:$0xf]
      %v3881 = vld [vmem:[%s3183 + $0xa4] sm:$0x1]
      %v3882 = vld [vmem:[%s3183 + $0xa8] sm:$0xe]
      %v3883 = vld [vmem:[%s3183 + $0xac] sm:$0xf]
      %v3884 = vld [vmem:[%s3183 + $0xb0] sm:$0x1]
      %v3885 = vld [vmem:[%s3183 + $0xb4] sm:$0xe]
      %v3886 = vld [vmem:[%s3183 + $0xb8] sm:$0xf]
      %v3887 = vld [vmem:[%s3183 + $0xbc] sm:$0x1]
      %v3936 = vrot.slane %v3840, 5
      %v3937 = vrot.slane %v3936, 4
      %v3938 = vrot.slane %v3841, 5
      %v3939 = vsel %vm2046, %v3937, %v3938
      %v3940 = vrot.slane %v3938, 4
      %v3941 = vrot.slane %v3842, 5
      %v3942 = vsel %vm2046, %v3940, %v3941
      %v3943 = vrot.slane %v3843, 5
      %v3944 = vrot.slane %v3943, 4
      %v3945 = vrot.slane %v3844, 5
      %v3946 = vsel %vm2046, %v3944, %v3945
      %v3947 = vrot.slane %v3945, 4
      %v3948 = vrot.slane %v3845, 5
      %v3949 = vsel %vm2046, %v3947, %v3948
      %v3950 = vrot.slane %v3846, 5
      %v3951 = vrot.slane %v3950, 4
      %v3952 = vrot.slane %v3847, 5
      %v3953 = vsel %vm2046, %v3951, %v3952
      %v3954 = vrot.slane %v3952, 4
      %v3955 = vrot.slane %v3848, 5
      %v3956 = vsel %vm2046, %v3954, %v3955
      %v3957 = vrot.slane %v3849, 5
      %v3958 = vrot.slane %v3957, 4
      %v3959 = vrot.slane %v3850, 5
      %v3960 = vsel %vm2046, %v3958, %v3959
      %v3961 = vrot.slane %v3959, 4
      %v3962 = vrot.slane %v3851, 5
      %v3963 = vsel %vm2046, %v3961, %v3962
      %v3964 = vrot.slane %v3852, 5
      %v3965 = vrot.slane %v3964, 4
      %v3966 = vrot.slane %v3853, 5
      %v3967 = vsel %vm2046, %v3965, %v3966
      %v3968 = vrot.slane %v3966, 4
      %v3969 = vrot.slane %v3854, 5
      %v3970 = vsel %vm2046, %v3968, %v3969
      %v3971 = vrot.slane %v3855, 5
      %v3972 = vrot.slane %v3971, 4
      %v3973 = vrot.slane %v3856, 5
      %v3974 = vsel %vm2046, %v3972, %v3973
      %v3975 = vrot.slane %v3973, 4
      %v3976 = vrot.slane %v3857, 5
      %v3977 = vsel %vm2046, %v3975, %v3976
      %v3978 = vrot.slane %v3858, 5
      %v3979 = vrot.slane %v3978, 4
      %v3980 = vrot.slane %v3859, 5
      %v3981 = vsel %vm2046, %v3979, %v3980
      %v3982 = vrot.slane %v3980, 4
      %v3983 = vrot.slane %v3860, 5
      %v3984 = vsel %vm2046, %v3982, %v3983
      %v3985 = vrot.slane %v3861, 5
      %v3986 = vrot.slane %v3985, 4
      %v3987 = vrot.slane %v3862, 5
      %v3988 = vsel %vm2046, %v3986, %v3987
      %v3989 = vrot.slane %v3987, 4
      %v3990 = vrot.slane %v3863, 5
      %v3991 = vsel %vm2046, %v3989, %v3990
      %v3992 = vrot.slane %v3864, 5
      %v3993 = vrot.slane %v3992, 4
      %v3994 = vrot.slane %v3865, 5
      %v3995 = vsel %vm2046, %v3993, %v3994
      %v3996 = vrot.slane %v3994, 4
      %v3997 = vrot.slane %v3866, 5
      %v3998 = vsel %vm2046, %v3996, %v3997
      %v3999 = vrot.slane %v3867, 5
      %v4000 = vrot.slane %v3999, 4
      %v4001 = vrot.slane %v3868, 5
      %v4002 = vsel %vm2046, %v4000, %v4001
      %v4003 = vrot.slane %v4001, 4
      %v4004 = vrot.slane %v3869, 5
      %v4005 = vsel %vm2046, %v4003, %v4004
      %v4006 = vrot.slane %v3870, 5
      %v4007 = vrot.slane %v4006, 4
      %v4008 = vrot.slane %v3871, 5
      %v4009 = vsel %vm2046, %v4007, %v4008
      %v4010 = vrot.slane %v4008, 4
      %v4011 = vrot.slane %v3872, 5
      %v4012 = vsel %vm2046, %v4010, %v4011
      %v4013 = vrot.slane %v3873, 5
      %v4014 = vrot.slane %v4013, 4
      %v4015 = vrot.slane %v3874, 5
      %v4016 = vsel %vm2046, %v4014, %v4015
      %v4017 = vrot.slane %v4015, 4
      %v4018 = vrot.slane %v3875, 5
      %v4019 = vsel %vm2046, %v4017, %v4018
      %v4020 = vrot.slane %v3876, 5
      %v4021 = vrot.slane %v4020, 4
      %v4022 = vrot.slane %v3877, 5
      %v4023 = vsel %vm2046, %v4021, %v4022
      %v4024 = vrot.slane %v4022, 4
      %v4025 = vrot.slane %v3878, 5
      %v4026 = vsel %vm2046, %v4024, %v4025
      %v4027 = vrot.slane %v3879, 5
      %v4028 = vrot.slane %v4027, 4
      %v4029 = vrot.slane %v3880, 5
      %v4030 = vsel %vm2046, %v4028, %v4029
      %v4031 = vrot.slane %v4029, 4
      %v4032 = vrot.slane %v3881, 5
      %v4033 = vsel %vm2046, %v4031, %v4032
      %v4034 = vrot.slane %v3882, 5
      %v4035 = vrot.slane %v4034, 4
      %v4036 = vrot.slane %v3883, 5
      %v4037 = vsel %vm2046, %v4035, %v4036
      %v4038 = vrot.slane %v4036, 4
      %v4039 = vrot.slane %v3884, 5
      %v4040 = vsel %vm2046, %v4038, %v4039
      %v4041 = vrot.slane %v3885, 5
      %v4042 = vrot.slane %v4041, 4
      %v4043 = vrot.slane %v3886, 5
      %v4044 = vsel %vm2046, %v4042, %v4043
      %v4045 = vrot.slane %v4043, 4
      %v4046 = vrot.slane %v3887, 5
      %v4047 = vsel %vm2046, %v4045, %v4046
      %v4048 = vunpack.c.l.b16 %v3939
      %v4049 = vunpack.c.l.b16 %v3942
      %v4050 = vunpack.c.l.b16 %v3946
      %v4051 = vunpack.c.l.b16 %v3949
      %v4052 = vunpack.c.l.b16 %v3953
      %v4053 = vunpack.c.l.b16 %v3956
      %v4054 = vunpack.c.l.b16 %v3960
      %v4055 = vunpack.c.l.b16 %v3963
      %v4056 = vunpack.c.l.b16 %v3967
      %v4057 = vunpack.c.l.b16 %v3970
      %v4058 = vunpack.c.l.b16 %v3974
      %v4059 = vunpack.c.l.b16 %v3977
      %v4060 = vunpack.c.l.b16 %v3981
      %v4061 = vunpack.c.l.b16 %v3984
      %v4062 = vunpack.c.l.b16 %v3988
      %v4063 = vunpack.c.l.b16 %v3991
      %v4064 = vunpack.c.l.b16 %v3995
      %v4065 = vunpack.c.l.b16 %v3998
      %v4066 = vunpack.c.l.b16 %v4002
      %v4067 = vunpack.c.l.b16 %v4005
      %v4068 = vunpack.c.l.b16 %v4009
      %v4069 = vunpack.c.l.b16 %v4012
      %v4070 = vunpack.c.l.b16 %v4016
      %v4071 = vunpack.c.l.b16 %v4019
      %v4072 = vunpack.c.l.b16 %v4023
      %v4073 = vunpack.c.l.b16 %v4026
      %v4074 = vunpack.c.l.b16 %v4030
      %v4075 = vunpack.c.l.b16 %v4033
      %v4076 = vunpack.c.l.b16 %v4037
      %v4077 = vunpack.c.l.b16 %v4040
      %v4078 = vunpack.c.l.b16 %v4044
      %v4079 = vunpack.c.l.b16 %v4047
      %v4080 = vpack.c.b16 %v4049, %v4048
      %v4081 = vpack.c.b16 %v4051, %v4050
      %v4082 = vpack.c.b16 %v4053, %v4052
      %v4083 = vpack.c.b16 %v4055, %v4054
      %v4084 = vpack.c.b16 %v4057, %v4056
      %v4085 = vpack.c.b16 %v4059, %v4058
      %v4086 = vpack.c.b16 %v4061, %v4060
      %v4087 = vpack.c.b16 %v4063, %v4062
      %v4088 = vpack.c.b16 %v4065, %v4064
      %v4089 = vpack.c.b16 %v4067, %v4066
      %v4090 = vpack.c.b16 %v4069, %v4068
      %v4091 = vpack.c.b16 %v4071, %v4070
      %v4092 = vpack.c.b16 %v4073, %v4072
      %v4093 = vpack.c.b16 %v4075, %v4074
      %v4094 = vpack.c.b16 %v4077, %v4076
      %v4095 = vpack.c.b16 %v4079, %v4078
      %4112 = vst [vmem:[#allocation3 + $0x40] sm:$0xff] %v4080
      %4113 = vst [vmem:[#allocation3 + $0x88] sm:$0xff] %v4081
      %4114 = vst [vmem:[#allocation3 + $0xd0] sm:$0xff] %v4082
      %4115 = vst [vmem:[#allocation3 + $0x118] sm:$0xff] %v4083
      %4116 = vst [vmem:[#allocation3 + $0x160] sm:$0xff] %v4084
      %4117 = vst [vmem:[#allocation3 + $0x1a8] sm:$0xff] %v4085
      %4118 = vst [vmem:[#allocation3 + $0x1f0] sm:$0xff] %v4086
      %4119 = vst [vmem:[#allocation3 + $0x238] sm:$0xff] %v4087
      %4120 = vst [vmem:[#allocation3 + $0x280] sm:$0xff] %v4088
      %4121 = vst [vmem:[#allocation3 + $0x2c8] sm:$0xff] %v4089
      %4122 = vst [vmem:[#allocation3 + $0x310] sm:$0xff] %v4090
      %4123 = vst [vmem:[#allocation3 + $0x358] sm:$0xff] %v4091
      %4124 = vst [vmem:[#allocation3 + $0x3a0] sm:$0xff] %v4092
      %4125 = vst [vmem:[#allocation3 + $0x3e8] sm:$0xff] %v4093
      %4126 = vst [vmem:[#allocation3 + $0x430] sm:$0xff] %v4094
      %4127 = vst [vmem:[#allocation3 + $0x478] sm:$0xff] %v4095
      %v4128 = vld [vmem:[#allocation3] sm:$0xff]
      %v4129 = vld [vmem:[#allocation3 + $0x8] sm:$0xff]
      %v4130 = vld [vmem:[#allocation3 + $0x10] sm:$0xff]
      %v4131 = vld [vmem:[#allocation3 + $0x18] sm:$0xff]
      %v4132 = vld [vmem:[#allocation3 + $0x20] sm:$0xff]
      %v4133 = vld [vmem:[#allocation3 + $0x28] sm:$0xff]
      %v4134 = vld [vmem:[#allocation3 + $0x30] sm:$0xff]
      %v4135 = vld [vmem:[#allocation3 + $0x38] sm:$0xff]
      %v4136 = vld [vmem:[#allocation3 + $0x40] sm:$0xff]
      %v4137 = vld [vmem:[#allocation3 + $0x48] sm:$0xff]
      %v4138 = vld [vmem:[#allocation3 + $0x50] sm:$0xff]
      %v4139 = vld [vmem:[#allocation3 + $0x58] sm:$0xff]
      %v4140 = vld [vmem:[#allocation3 + $0x60] sm:$0xff]
      %v4141 = vld [vmem:[#allocation3 + $0x68] sm:$0xff]
      %v4142 = vld [vmem:[#allocation3 + $0x70] sm:$0xff]
      %v4143 = vld [vmem:[#allocation3 + $0x78] sm:$0xff]
      %v4144 = vld [vmem:[#allocation3 + $0x80] sm:$0xff]
      %v4145 = vld [vmem:[#allocation3 + $0x88] sm:$0xff]
      %v4146 = vld [vmem:[#allocation3 + $0x90] sm:$0xff]
      %v4147 = vld [vmem:[#allocation3 + $0x98] sm:$0xff]
      %v4148 = vld [vmem:[#allocation3 + $0xa0] sm:$0xff]
      %v4149 = vld [vmem:[#allocation3 + $0xa8] sm:$0xff]
      %v4150 = vld [vmem:[#allocation3 + $0xb0] sm:$0xff]
      %v4151 = vld [vmem:[#allocation3 + $0xb8] sm:$0xff]
      %v4152 = vld [vmem:[#allocation3 + $0xc0] sm:$0xff]
      %v4153 = vld [vmem:[#allocation3 + $0xc8] sm:$0xff]
      %v4154 = vld [vmem:[#allocation3 + $0xd0] sm:$0xff]
      %v4155 = vld [vmem:[#allocation3 + $0xd8] sm:$0xff]
      %v4156 = vld [vmem:[#allocation3 + $0xe0] sm:$0xff]
      %v4157 = vld [vmem:[#allocation3 + $0xe8] sm:$0xff]
      %v4158 = vld [vmem:[#allocation3 + $0xf0] sm:$0xff]
      %v4159 = vld [vmem:[#allocation3 + $0xf8] sm:$0xff]
      %v4160 = vld [vmem:[#allocation3 + $0x100] sm:$0xff]
      %v4161 = vld [vmem:[#allocation3 + $0x108] sm:$0xff]
      %v4162 = vld [vmem:[#allocation3 + $0x110] sm:$0xff]
      %v4163 = vld [vmem:[#allocation3 + $0x118] sm:$0xff]
      %v4164 = vld [vmem:[#allocation3 + $0x120] sm:$0xff]
      %v4165 = vld [vmem:[#allocation3 + $0x128] sm:$0xff]
      %v4166 = vld [vmem:[#allocation3 + $0x130] sm:$0xff]
      %v4167 = vld [vmem:[#allocation3 + $0x138] sm:$0xff]
      %v4168 = vld [vmem:[#allocation3 + $0x140] sm:$0xff]
      %v4169 = vld [vmem:[#allocation3 + $0x148] sm:$0xff]
      %v4170 = vld [vmem:[#allocation3 + $0x150] sm:$0xff]
      %v4171 = vld [vmem:[#allocation3 + $0x158] sm:$0xff]
      %v4172 = vld [vmem:[#allocation3 + $0x160] sm:$0xff]
      %v4173 = vld [vmem:[#allocation3 + $0x168] sm:$0xff]
      %v4174 = vld [vmem:[#allocation3 + $0x170] sm:$0xff]
      %v4175 = vld [vmem:[#allocation3 + $0x178] sm:$0xff]
      %v4176 = vld [vmem:[#allocation3 + $0x180] sm:$0xff]
      %v4177 = vld [vmem:[#allocation3 + $0x188] sm:$0xff]
      %v4178 = vld [vmem:[#allocation3 + $0x190] sm:$0xff]
      %v4179 = vld [vmem:[#allocation3 + $0x198] sm:$0xff]
      %v4180 = vld [vmem:[#allocation3 + $0x1a0] sm:$0xff]
      %v4181 = vld [vmem:[#allocation3 + $0x1a8] sm:$0xff]
      %v4182 = vld [vmem:[#allocation3 + $0x1b0] sm:$0xff]
      %v4183 = vld [vmem:[#allocation3 + $0x1b8] sm:$0xff]
      %v4184 = vld [vmem:[#allocation3 + $0x1c0] sm:$0xff]
      %v4185 = vld [vmem:[#allocation3 + $0x1c8] sm:$0xff]
      %v4186 = vld [vmem:[#allocation3 + $0x1d0] sm:$0xff]
      %v4187 = vld [vmem:[#allocation3 + $0x1d8] sm:$0xff]
      %v4188 = vld [vmem:[#allocation3 + $0x1e0] sm:$0xff]
      %v4189 = vld [vmem:[#allocation3 + $0x1e8] sm:$0xff]
      %v4190 = vld [vmem:[#allocation3 + $0x1f0] sm:$0xff]
      %v4191 = vld [vmem:[#allocation3 + $0x1f8] sm:$0xff]
      %v4192 = vld [vmem:[#allocation3 + $0x200] sm:$0xff]
      %v4193 = vld [vmem:[#allocation3 + $0x208] sm:$0xff]
      %v4194 = vld [vmem:[#allocation3 + $0x210] sm:$0xff]
      %v4195 = vld [vmem:[#allocation3 + $0x218] sm:$0xff]
      %v4196 = vld [vmem:[#allocation3 + $0x220] sm:$0xff]
      %v4197 = vld [vmem:[#allocation3 + $0x228] sm:$0xff]
      %v4198 = vld [vmem:[#allocation3 + $0x230] sm:$0xff]
      %v4199 = vld [vmem:[#allocation3 + $0x238] sm:$0xff]
      %v4200 = vld [vmem:[#allocation3 + $0x240] sm:$0xff]
      %v4201 = vld [vmem:[#allocation3 + $0x248] sm:$0xff]
      %v4202 = vld [vmem:[#allocation3 + $0x250] sm:$0xff]
      %v4203 = vld [vmem:[#allocation3 + $0x258] sm:$0xff]
      %v4204 = vld [vmem:[#allocation3 + $0x260] sm:$0xff]
      %v4205 = vld [vmem:[#allocation3 + $0x268] sm:$0xff]
      %v4206 = vld [vmem:[#allocation3 + $0x270] sm:$0xff]
      %v4207 = vld [vmem:[#allocation3 + $0x278] sm:$0xff]
      %v4208 = vld [vmem:[#allocation3 + $0x280] sm:$0xff]
      %v4209 = vld [vmem:[#allocation3 + $0x288] sm:$0xff]
      %v4210 = vld [vmem:[#allocation3 + $0x290] sm:$0xff]
      %v4211 = vld [vmem:[#allocation3 + $0x298] sm:$0xff]
      %v4212 = vld [vmem:[#allocation3 + $0x2a0] sm:$0xff]
      %v4213 = vld [vmem:[#allocation3 + $0x2a8] sm:$0xff]
      %v4214 = vld [vmem:[#allocation3 + $0x2b0] sm:$0xff]
      %v4215 = vld [vmem:[#allocation3 + $0x2b8] sm:$0xff]
      %v4216 = vld [vmem:[#allocation3 + $0x2c0] sm:$0xff]
      %v4217 = vld [vmem:[#allocation3 + $0x2c8] sm:$0xff]
      %v4218 = vld [vmem:[#allocation3 + $0x2d0] sm:$0xff]
      %v4219 = vld [vmem:[#allocation3 + $0x2d8] sm:$0xff]
      %v4220 = vld [vmem:[#allocation3 + $0x2e0] sm:$0xff]
      %v4221 = vld [vmem:[#allocation3 + $0x2e8] sm:$0xff]
      %v4222 = vld [vmem:[#allocation3 + $0x2f0] sm:$0xff]
      %v4223 = vld [vmem:[#allocation3 + $0x2f8] sm:$0xff]
      %v4224 = vld [vmem:[#allocation3 + $0x300] sm:$0xff]
      %v4225 = vld [vmem:[#allocation3 + $0x308] sm:$0xff]
      %v4226 = vld [vmem:[#allocation3 + $0x310] sm:$0xff]
      %v4227 = vld [vmem:[#allocation3 + $0x318] sm:$0xff]
      %v4228 = vld [vmem:[#allocation3 + $0x320] sm:$0xff]
      %v4229 = vld [vmem:[#allocation3 + $0x328] sm:$0xff]
      %v4230 = vld [vmem:[#allocation3 + $0x330] sm:$0xff]
      %v4231 = vld [vmem:[#allocation3 + $0x338] sm:$0xff]
      %v4232 = vld [vmem:[#allocation3 + $0x340] sm:$0xff]
      %v4233 = vld [vmem:[#allocation3 + $0x348] sm:$0xff]
      %v4234 = vld [vmem:[#allocation3 + $0x350] sm:$0xff]
      %v4235 = vld [vmem:[#allocation3 + $0x358] sm:$0xff]
      %v4236 = vld [vmem:[#allocation3 + $0x360] sm:$0xff]
      %v4237 = vld [vmem:[#allocation3 + $0x368] sm:$0xff]
      %v4238 = vld [vmem:[#allocation3 + $0x370] sm:$0xff]
      %v4239 = vld [vmem:[#allocation3 + $0x378] sm:$0xff]
      %v4240 = vld [vmem:[#allocation3 + $0x380] sm:$0xff]
      %v4241 = vld [vmem:[#allocation3 + $0x388] sm:$0xff]
      %v4242 = vld [vmem:[#allocation3 + $0x390] sm:$0xff]
      %v4243 = vld [vmem:[#allocation3 + $0x398] sm:$0xff]
      %v4244 = vld [vmem:[#allocation3 + $0x3a0] sm:$0xff]
      %v4245 = vld [vmem:[#allocation3 + $0x3a8] sm:$0xff]
      %v4246 = vld [vmem:[#allocation3 + $0x3b0] sm:$0xff]
      %v4247 = vld [vmem:[#allocation3 + $0x3b8] sm:$0xff]
      %v4248 = vld [vmem:[#allocation3 + $0x3c0] sm:$0xff]
      %v4249 = vld [vmem:[#allocation3 + $0x3c8] sm:$0xff]
      %v4250 = vld [vmem:[#allocation3 + $0x3d0] sm:$0xff]
      %v4251 = vld [vmem:[#allocation3 + $0x3d8] sm:$0xff]
      %v4252 = vld [vmem:[#allocation3 + $0x3e0] sm:$0xff]
      %v4253 = vld [vmem:[#allocation3 + $0x3e8] sm:$0xff]
      %v4254 = vld [vmem:[#allocation3 + $0x3f0] sm:$0xff]
      %v4255 = vld [vmem:[#allocation3 + $0x3f8] sm:$0xff]
      %v4256 = vld [vmem:[#allocation3 + $0x400] sm:$0xff]
      %v4257 = vld [vmem:[#allocation3 + $0x408] sm:$0xff]
      %v4258 = vld [vmem:[#allocation3 + $0x410] sm:$0xff]
      %v4259 = vld [vmem:[#allocation3 + $0x418] sm:$0xff]
      %v4260 = vld [vmem:[#allocation3 + $0x420] sm:$0xff]
      %v4261 = vld [vmem:[#allocation3 + $0x428] sm:$0xff]
      %v4262 = vld [vmem:[#allocation3 + $0x430] sm:$0xff]
      %v4263 = vld [vmem:[#allocation3 + $0x438] sm:$0xff]
      %v4264 = vld [vmem:[#allocation3 + $0x440] sm:$0xff]
      %v4265 = vld [vmem:[#allocation3 + $0x448] sm:$0xff]
      %v4266 = vld [vmem:[#allocation3 + $0x450] sm:$0xff]
      %v4267 = vld [vmem:[#allocation3 + $0x458] sm:$0xff]
      %v4268 = vld [vmem:[#allocation3 + $0x460] sm:$0xff]
      %v4269 = vld [vmem:[#allocation3 + $0x468] sm:$0xff]
      %v4270 = vld [vmem:[#allocation3 + $0x470] sm:$0xff]
      %v4271 = vld [vmem:[#allocation3 + $0x478] sm:$0xff]
      %v4272 = vld [vmem:[%s3] sm:$0xf]
      %v4273 = vld [vmem:[%s3 + $0x4] sm:$0xf]
      %v4274 = vld [vmem:[%s3 + $0x8] sm:$0xf]
      %v4275 = vld [vmem:[%s3 + $0xc] sm:$0xf]
      %v4276 = vld [vmem:[%s3 + $0x10] sm:$0xf]
      %v4277 = vld [vmem:[%s3 + $0x14] sm:$0xf]
      %v4278 = vld [vmem:[%s3 + $0x18] sm:$0xf]
      %v4279 = vld [vmem:[%s3 + $0x1c] sm:$0xf]
      %v4280 = vld [vmem:[%s3 + $0x20] sm:$0xf]
      %v4281 = vld [vmem:[%s3 + $0x24] sm:$0xf]
      %v4282 = vld [vmem:[%s3 + $0x28] sm:$0xf]
      %v4283 = vld [vmem:[%s3 + $0x2c] sm:$0xf]
      %v4284 = vld [vmem:[%s3 + $0x30] sm:$0xf]
      %v4285 = vld [vmem:[%s3 + $0x34] sm:$0xf]
      %v4286 = vld [vmem:[%s3 + $0x38] sm:$0xf]
      %v4287 = vld [vmem:[%s3 + $0x3c] sm:$0xf]
      %v4288 = vld [vmem:[%s3 + $0x40] sm:$0xf]
      %v4289 = vld [vmem:[%s3 + $0x44] sm:$0xf]
      %v4290 = vld [vmem:[%s3 + $0x48] sm:$0xf]
      %v4291 = vld [vmem:[%s3 + $0x4c] sm:$0xf]
      %v4292 = vld [vmem:[%s3 + $0x50] sm:$0xf]
      %v4293 = vld [vmem:[%s3 + $0x54] sm:$0xf]
      %v4294 = vld [vmem:[%s3 + $0x58] sm:$0xf]
      %v4295 = vld [vmem:[%s3 + $0x5c] sm:$0xf]
      %v4296 = vld [vmem:[%s3 + $0x60] sm:$0xf]
      %v4297 = vld [vmem:[%s3 + $0x64] sm:$0xf]
      %v4298 = vld [vmem:[%s3 + $0x68] sm:$0xf]
      %v4299 = vld [vmem:[%s3 + $0x6c] sm:$0xf]
      %v4300 = vld [vmem:[%s3 + $0x70] sm:$0xf]
      %v4301 = vld [vmem:[%s3 + $0x74] sm:$0xf]
      %v4302 = vld [vmem:[%s3 + $0x78] sm:$0xf]
      %v4303 = vld [vmem:[%s3 + $0x7c] sm:$0xf]
      %v4304 = vld [vmem:[%s3 + $0x80] sm:$0xf]
      %v4305 = vld [vmem:[%s3 + $0x84] sm:$0xf]
      %v4306 = vld [vmem:[%s3 + $0x88] sm:$0xf]
      %v4307 = vld [vmem:[%s3 + $0x8c] sm:$0xf]
      %v4308 = vld [vmem:[%s3 + $0x90] sm:$0xf]
      %v4309 = vld [vmem:[%s3 + $0x94] sm:$0xf]
      %v4310 = vld [vmem:[%s3 + $0x98] sm:$0xf]
      %v4311 = vld [vmem:[%s3 + $0x9c] sm:$0xf]
      %v4312 = vld [vmem:[%s3 + $0xa0] sm:$0xf]
      %v4313 = vld [vmem:[%s3 + $0xa4] sm:$0xf]
      %v4314 = vld [vmem:[%s3 + $0xa8] sm:$0xf]
      %v4315 = vld [vmem:[%s3 + $0xac] sm:$0xf]
      %v4316 = vld [vmem:[%s3 + $0xb0] sm:$0xf]
      %v4317 = vld [vmem:[%s3 + $0xb4] sm:$0xf]
      %v4318 = vld [vmem:[%s3 + $0xb8] sm:$0xf]
      %v4319 = vld [vmem:[%s3 + $0xbc] sm:$0xf]
      %v4320 = vld [vmem:[%s3 + $0xc0] sm:$0xf]
      %v4321 = vld [vmem:[%s3 + $0xc4] sm:$0xf]
      %v4322 = vld [vmem:[%s3 + $0xc8] sm:$0xf]
      %v4323 = vld [vmem:[%s3 + $0xcc] sm:$0xf]
      %v4324 = vld [vmem:[%s3 + $0xd0] sm:$0xf]
      %v4325 = vld [vmem:[%s3 + $0xd4] sm:$0xf]
      %v4326 = vld [vmem:[%s3 + $0xd8] sm:$0xf]
      %v4327 = vld [vmem:[%s3 + $0xdc] sm:$0xf]
      %v4328 = vld [vmem:[%s3 + $0xe0] sm:$0xf]
      %v4329 = vld [vmem:[%s3 + $0xe4] sm:$0xf]
      %v4330 = vld [vmem:[%s3 + $0xe8] sm:$0xf]
      %v4331 = vld [vmem:[%s3 + $0xec] sm:$0xf]
      %v4332 = vld [vmem:[%s3 + $0xf0] sm:$0xf]
      %v4333 = vld [vmem:[%s3 + $0xf4] sm:$0xf]
      %v4334 = vld [vmem:[%s3 + $0xf8] sm:$0xf]
      %v4335 = vld [vmem:[%s3 + $0xfc] sm:$0xf]
      %v4336 = vld [vmem:[%s3 + $0x100] sm:$0xf]
      %v4337 = vld [vmem:[%s3 + $0x104] sm:$0xf]
      %v4338 = vld [vmem:[%s3 + $0x108] sm:$0xf]
      %v4339 = vld [vmem:[%s3 + $0x10c] sm:$0xf]
      %v4340 = vld [vmem:[%s3 + $0x110] sm:$0xf]
      %v4341 = vld [vmem:[%s3 + $0x114] sm:$0xf]
      %v4342 = vld [vmem:[%s3 + $0x118] sm:$0xf]
      %v4343 = vld [vmem:[%s3 + $0x11c] sm:$0xf]
      %v4344 = vld [vmem:[%s3 + $0x120] sm:$0xf]
      %v4345 = vld [vmem:[%s3 + $0x124] sm:$0xf]
      %v4346 = vld [vmem:[%s3 + $0x128] sm:$0xf]
      %v4347 = vld [vmem:[%s3 + $0x12c] sm:$0xf]
      %v4348 = vld [vmem:[%s3 + $0x130] sm:$0xf]
      %v4349 = vld [vmem:[%s3 + $0x134] sm:$0xf]
      %v4350 = vld [vmem:[%s3 + $0x138] sm:$0xf]
      %v4351 = vld [vmem:[%s3 + $0x13c] sm:$0xf]
      %v4352 = vld [vmem:[%s3 + $0x140] sm:$0xf]
      %v4353 = vld [vmem:[%s3 + $0x144] sm:$0xf]
      %v4354 = vld [vmem:[%s3 + $0x148] sm:$0xf]
      %v4355 = vld [vmem:[%s3 + $0x14c] sm:$0xf]
      %v4356 = vld [vmem:[%s3 + $0x150] sm:$0xf]
      %v4357 = vld [vmem:[%s3 + $0x154] sm:$0xf]
      %v4358 = vld [vmem:[%s3 + $0x158] sm:$0xf]
      %v4359 = vld [vmem:[%s3 + $0x15c] sm:$0xf]
      %v4360 = vld [vmem:[%s3 + $0x160] sm:$0xf]
      %v4361 = vld [vmem:[%s3 + $0x164] sm:$0xf]
      %v4362 = vld [vmem:[%s3 + $0x168] sm:$0xf]
      %v4363 = vld [vmem:[%s3 + $0x16c] sm:$0xf]
      %v4364 = vld [vmem:[%s3 + $0x170] sm:$0xf]
      %v4365 = vld [vmem:[%s3 + $0x174] sm:$0xf]
      %v4366 = vld [vmem:[%s3 + $0x178] sm:$0xf]
      %v4367 = vld [vmem:[%s3 + $0x17c] sm:$0xf]
      %v4368 = vld [vmem:[%s3 + $0x180] sm:$0xf]
      %v4369 = vld [vmem:[%s3 + $0x184] sm:$0xf]
      %v4370 = vld [vmem:[%s3 + $0x188] sm:$0xf]
      %v4371 = vld [vmem:[%s3 + $0x18c] sm:$0xf]
      %v4372 = vld [vmem:[%s3 + $0x190] sm:$0xf]
      %v4373 = vld [vmem:[%s3 + $0x194] sm:$0xf]
      %v4374 = vld [vmem:[%s3 + $0x198] sm:$0xf]
      %v4375 = vld [vmem:[%s3 + $0x19c] sm:$0xf]
      %v4376 = vld [vmem:[%s3 + $0x1a0] sm:$0xf]
      %v4377 = vld [vmem:[%s3 + $0x1a4] sm:$0xf]
      %v4378 = vld [vmem:[%s3 + $0x1a8] sm:$0xf]
      %v4379 = vld [vmem:[%s3 + $0x1ac] sm:$0xf]
      %v4380 = vld [vmem:[%s3 + $0x1b0] sm:$0xf]
      %v4381 = vld [vmem:[%s3 + $0x1b4] sm:$0xf]
      %v4382 = vld [vmem:[%s3 + $0x1b8] sm:$0xf]
      %v4383 = vld [vmem:[%s3 + $0x1bc] sm:$0xf]
      %v4384 = vld [vmem:[%s3 + $0x1c0] sm:$0xf]
      %v4385 = vld [vmem:[%s3 + $0x1c4] sm:$0xf]
      %v4386 = vld [vmem:[%s3 + $0x1c8] sm:$0xf]
      %v4387 = vld [vmem:[%s3 + $0x1cc] sm:$0xf]
      %v4388 = vld [vmem:[%s3 + $0x1d0] sm:$0xf]
      %v4389 = vld [vmem:[%s3 + $0x1d4] sm:$0xf]
      %v4390 = vld [vmem:[%s3 + $0x1d8] sm:$0xf]
      %v4391 = vld [vmem:[%s3 + $0x1dc] sm:$0xf]
      %v4392 = vld [vmem:[%s3 + $0x1e0] sm:$0xf]
      %v4393 = vld [vmem:[%s3 + $0x1e4] sm:$0xf]
      %v4394 = vld [vmem:[%s3 + $0x1e8] sm:$0xf]
      %v4395 = vld [vmem:[%s3 + $0x1ec] sm:$0xf]
      %v4396 = vld [vmem:[%s3 + $0x1f0] sm:$0xf]
      %v4397 = vld [vmem:[%s3 + $0x1f4] sm:$0xf]
      %v4398 = vld [vmem:[%s3 + $0x1f8] sm:$0xf]
      %v4399 = vld [vmem:[%s3 + $0x1fc] sm:$0xf]
      %v4400 = vld [vmem:[%s3 + $0x200] sm:$0xf]
      %v4401 = vld [vmem:[%s3 + $0x204] sm:$0xf]
      %v4402 = vld [vmem:[%s3 + $0x208] sm:$0xf]
      %v4403 = vld [vmem:[%s3 + $0x20c] sm:$0xf]
      %v4404 = vld [vmem:[%s3 + $0x210] sm:$0xf]
      %v4405 = vld [vmem:[%s3 + $0x214] sm:$0xf]
      %v4406 = vld [vmem:[%s3 + $0x218] sm:$0xf]
      %v4407 = vld [vmem:[%s3 + $0x21c] sm:$0xf]
      %v4408 = vld [vmem:[%s3 + $0x220] sm:$0xf]
      %v4409 = vld [vmem:[%s3 + $0x224] sm:$0xf]
      %v4410 = vld [vmem:[%s3 + $0x228] sm:$0xf]
      %v4411 = vld [vmem:[%s3 + $0x22c] sm:$0xf]
      %v4412 = vld [vmem:[%s3 + $0x230] sm:$0xf]
      %v4413 = vld [vmem:[%s3 + $0x234] sm:$0xf]
      %v4414 = vld [vmem:[%s3 + $0x238] sm:$0xf]
      %v4415 = vld [vmem:[%s3 + $0x23c] sm:$0xf]
      %v4416 = vld [vmem:[%s4] sm:$0x1]
      %v4418 = vlaneseq
      %v4419 = vshrl.u32 %v4418, 7
      %v4420 = vsub.s32 0, %v4419
      %v4421 = vrot.slane %v4416, %v4420
      %v4567 = vunpack.c.l.b16 %v4272
      %v4568 = vunpack.c.l.b16 %v4273
      %v4569 = vunpack.c.l.b16 %v4274
      %v4570 = vunpack.c.l.b16 %v4275
      %v4571 = vunpack.c.l.b16 %v4276
      %v4572 = vunpack.c.l.b16 %v4277
      %v4573 = vunpack.c.l.b16 %v4278
      %v4574 = vunpack.c.l.b16 %v4279
      %v4575 = vunpack.c.l.b16 %v4280
      %v4576 = vunpack.c.l.b16 %v4281
      %v4577 = vunpack.c.l.b16 %v4282
      %v4578 = vunpack.c.l.b16 %v4283
      %v4579 = vunpack.c.l.b16 %v4284
      %v4580 = vunpack.c.l.b16 %v4285
      %v4581 = vunpack.c.l.b16 %v4286
      %v4582 = vunpack.c.l.b16 %v4287
      %v4583 = vunpack.c.l.b16 %v4288
      %v4584 = vunpack.c.l.b16 %v4289
      %v4585 = vunpack.c.l.b16 %v4290
      %v4586 = vunpack.c.l.b16 %v4291
      %v4587 = vunpack.c.l.b16 %v4292
      %v4588 = vunpack.c.l.b16 %v4293
      %v4589 = vunpack.c.l.b16 %v4294
      %v4590 = vunpack.c.l.b16 %v4295
      %v4591 = vunpack.c.l.b16 %v4296
      %v4592 = vunpack.c.l.b16 %v4297
      %v4593 = vunpack.c.l.b16 %v4298
      %v4594 = vunpack.c.l.b16 %v4299
      %v4595 = vunpack.c.l.b16 %v4300
      %v4596 = vunpack.c.l.b16 %v4301
      %v4597 = vunpack.c.l.b16 %v4302
      %v4598 = vunpack.c.l.b16 %v4303
      %v4599 = vunpack.c.l.b16 %v4304
      %v4600 = vunpack.c.l.b16 %v4305
      %v4601 = vunpack.c.l.b16 %v4306
      %v4602 = vunpack.c.l.b16 %v4307
      %v4603 = vunpack.c.l.b16 %v4308
      %v4604 = vunpack.c.l.b16 %v4309
      %v4605 = vunpack.c.l.b16 %v4310
      %v4606 = vunpack.c.l.b16 %v4311
      %v4607 = vunpack.c.l.b16 %v4312
      %v4608 = vunpack.c.l.b16 %v4313
      %v4609 = vunpack.c.l.b16 %v4314
      %v4610 = vunpack.c.l.b16 %v4315
      %v4611 = vunpack.c.l.b16 %v4316
      %v4612 = vunpack.c.l.b16 %v4317
      %v4613 = vunpack.c.l.b16 %v4318
      %v4614 = vunpack.c.l.b16 %v4319
      %v4615 = vunpack.c.l.b16 %v4320
      %v4616 = vunpack.c.l.b16 %v4321
      %v4617 = vunpack.c.l.b16 %v4322
      %v4618 = vunpack.c.l.b16 %v4323
      %v4619 = vunpack.c.l.b16 %v4324
      %v4620 = vunpack.c.l.b16 %v4325
      %v4621 = vunpack.c.l.b16 %v4326
      %v4622 = vunpack.c.l.b16 %v4327
      %v4623 = vunpack.c.l.b16 %v4328
      %v4624 = vunpack.c.l.b16 %v4329
      %v4625 = vunpack.c.l.b16 %v4330
      %v4626 = vunpack.c.l.b16 %v4331
      %v4627 = vunpack.c.l.b16 %v4332
      %v4628 = vunpack.c.l.b16 %v4333
      %v4629 = vunpack.c.l.b16 %v4334
      %v4630 = vunpack.c.l.b16 %v4335
      %v4631 = vunpack.c.l.b16 %v4336
      %v4632 = vunpack.c.l.b16 %v4337
      %v4633 = vunpack.c.l.b16 %v4338
      %v4634 = vunpack.c.l.b16 %v4339
      %v4635 = vunpack.c.l.b16 %v4340
      %v4636 = vunpack.c.l.b16 %v4341
      %v4637 = vunpack.c.l.b16 %v4342
      %v4638 = vunpack.c.l.b16 %v4343
      %v4639 = vunpack.c.l.b16 %v4344
      %v4640 = vunpack.c.l.b16 %v4345
      %v4641 = vunpack.c.l.b16 %v4346
      %v4642 = vunpack.c.l.b16 %v4347
      %v4643 = vunpack.c.l.b16 %v4348
      %v4644 = vunpack.c.l.b16 %v4349
      %v4645 = vunpack.c.l.b16 %v4350
      %v4646 = vunpack.c.l.b16 %v4351
      %v4647 = vunpack.c.l.b16 %v4352
      %v4648 = vunpack.c.l.b16 %v4353
      %v4649 = vunpack.c.l.b16 %v4354
      %v4650 = vunpack.c.l.b16 %v4355
      %v4651 = vunpack.c.l.b16 %v4356
      %v4652 = vunpack.c.l.b16 %v4357
      %v4653 = vunpack.c.l.b16 %v4358
      %v4654 = vunpack.c.l.b16 %v4359
      %v4655 = vunpack.c.l.b16 %v4360
      %v4656 = vunpack.c.l.b16 %v4361
      %v4657 = vunpack.c.l.b16 %v4362
      %v4658 = vunpack.c.l.b16 %v4363
      %v4659 = vunpack.c.l.b16 %v4364
      %v4660 = vunpack.c.l.b16 %v4365
      %v4661 = vunpack.c.l.b16 %v4366
      %v4662 = vunpack.c.l.b16 %v4367
      %v4663 = vunpack.c.l.b16 %v4368
      %v4664 = vunpack.c.l.b16 %v4369
      %v4665 = vunpack.c.l.b16 %v4370
      %v4666 = vunpack.c.l.b16 %v4371
      %v4667 = vunpack.c.l.b16 %v4372
      %v4668 = vunpack.c.l.b16 %v4373
      %v4669 = vunpack.c.l.b16 %v4374
      %v4670 = vunpack.c.l.b16 %v4375
      %v4671 = vunpack.c.l.b16 %v4376
      %v4672 = vunpack.c.l.b16 %v4377
      %v4673 = vunpack.c.l.b16 %v4378
      %v4674 = vunpack.c.l.b16 %v4379
      %v4675 = vunpack.c.l.b16 %v4380
      %v4676 = vunpack.c.l.b16 %v4381
      %v4677 = vunpack.c.l.b16 %v4382
      %v4678 = vunpack.c.l.b16 %v4383
      %v4679 = vunpack.c.l.b16 %v4384
      %v4680 = vunpack.c.l.b16 %v4385
      %v4681 = vunpack.c.l.b16 %v4386
      %v4682 = vunpack.c.l.b16 %v4387
      %v4683 = vunpack.c.l.b16 %v4388
      %v4684 = vunpack.c.l.b16 %v4389
      %v4685 = vunpack.c.l.b16 %v4390
      %v4686 = vunpack.c.l.b16 %v4391
      %v4687 = vunpack.c.l.b16 %v4392
      %v4688 = vunpack.c.l.b16 %v4393
      %v4689 = vunpack.c.l.b16 %v4394
      %v4690 = vunpack.c.l.b16 %v4395
      %v4691 = vunpack.c.l.b16 %v4396
      %v4692 = vunpack.c.l.b16 %v4397
      %v4693 = vunpack.c.l.b16 %v4398
      %v4694 = vunpack.c.l.b16 %v4399
      %v4695 = vunpack.c.l.b16 %v4400
      %v4696 = vunpack.c.l.b16 %v4401
      %v4697 = vunpack.c.l.b16 %v4402
      %v4698 = vunpack.c.l.b16 %v4403
      %v4699 = vunpack.c.l.b16 %v4404
      %v4700 = vunpack.c.l.b16 %v4405
      %v4701 = vunpack.c.l.b16 %v4406
      %v4702 = vunpack.c.l.b16 %v4407
      %v4703 = vunpack.c.l.b16 %v4408
      %v4704 = vunpack.c.l.b16 %v4409
      %v4705 = vunpack.c.l.b16 %v4410
      %v4706 = vunpack.c.l.b16 %v4411
      %v4707 = vunpack.c.l.b16 %v4412
      %v4708 = vunpack.c.l.b16 %v4413
      %v4709 = vunpack.c.l.b16 %v4414
      %v4710 = vunpack.c.l.b16 %v4415
      %v4711 = vpack.c.b16 %v4568, %v4567
      %v4712 = vpack.c.b16 %v4570, %v4569
      %v4713 = vpack.c.b16 %v4572, %v4571
      %v4714 = vpack.c.b16 %v4574, %v4573
      %v4715 = vpack.c.b16 %v4576, %v4575
      %v4716 = vpack.c.b16 %v4578, %v4577
      %v4717 = vpack.c.b16 %v4580, %v4579
      %v4718 = vpack.c.b16 %v4582, %v4581
      %v4719 = vpack.c.b16 %v4584, %v4583
      %v4720 = vpack.c.b16 %v4586, %v4585
      %v4721 = vpack.c.b16 %v4588, %v4587
      %v4722 = vpack.c.b16 %v4590, %v4589
      %v4723 = vpack.c.b16 %v4592, %v4591
      %v4724 = vpack.c.b16 %v4594, %v4593
      %v4725 = vpack.c.b16 %v4596, %v4595
      %v4726 = vpack.c.b16 %v4598, %v4597
      %v4727 = vpack.c.b16 %v4600, %v4599
      %v4728 = vpack.c.b16 %v4602, %v4601
      %v4729 = vpack.c.b16 %v4604, %v4603
      %v4730 = vpack.c.b16 %v4606, %v4605
      %v4731 = vpack.c.b16 %v4608, %v4607
      %v4732 = vpack.c.b16 %v4610, %v4609
      %v4733 = vpack.c.b16 %v4612, %v4611
      %v4734 = vpack.c.b16 %v4614, %v4613
      %v4735 = vpack.c.b16 %v4616, %v4615
      %v4736 = vpack.c.b16 %v4618, %v4617
      %v4737 = vpack.c.b16 %v4620, %v4619
      %v4738 = vpack.c.b16 %v4622, %v4621
      %v4739 = vpack.c.b16 %v4624, %v4623
      %v4740 = vpack.c.b16 %v4626, %v4625
      %v4741 = vpack.c.b16 %v4628, %v4627
      %v4742 = vpack.c.b16 %v4630, %v4629
      %v4743 = vpack.c.b16 %v4632, %v4631
      %v4744 = vpack.c.b16 %v4634, %v4633
      %v4745 = vpack.c.b16 %v4636, %v4635
      %v4746 = vpack.c.b16 %v4638, %v4637
      %v4747 = vpack.c.b16 %v4640, %v4639
      %v4748 = vpack.c.b16 %v4642, %v4641
      %v4749 = vpack.c.b16 %v4644, %v4643
      %v4750 = vpack.c.b16 %v4646, %v4645
      %v4751 = vpack.c.b16 %v4648, %v4647
      %v4752 = vpack.c.b16 %v4650, %v4649
      %v4753 = vpack.c.b16 %v4652, %v4651
      %v4754 = vpack.c.b16 %v4654, %v4653
      %v4755 = vpack.c.b16 %v4656, %v4655
      %v4756 = vpack.c.b16 %v4658, %v4657
      %v4757 = vpack.c.b16 %v4660, %v4659
      %v4758 = vpack.c.b16 %v4662, %v4661
      %v4759 = vpack.c.b16 %v4664, %v4663
      %v4760 = vpack.c.b16 %v4666, %v4665
      %v4761 = vpack.c.b16 %v4668, %v4667
      %v4762 = vpack.c.b16 %v4670, %v4669
      %v4763 = vpack.c.b16 %v4672, %v4671
      %v4764 = vpack.c.b16 %v4674, %v4673
      %v4765 = vpack.c.b16 %v4676, %v4675
      %v4766 = vpack.c.b16 %v4678, %v4677
      %v4767 = vpack.c.b16 %v4680, %v4679
      %v4768 = vpack.c.b16 %v4682, %v4681
      %v4769 = vpack.c.b16 %v4684, %v4683
      %v4770 = vpack.c.b16 %v4686, %v4685
      %v4771 = vpack.c.b16 %v4688, %v4687
      %v4772 = vpack.c.b16 %v4690, %v4689
      %v4773 = vpack.c.b16 %v4692, %v4691
      %v4774 = vpack.c.b16 %v4694, %v4693
      %v4775 = vpack.c.b16 %v4696, %v4695
      %v4776 = vpack.c.b16 %v4698, %v4697
      %v4777 = vpack.c.b16 %v4700, %v4699
      %v4778 = vpack.c.b16 %v4702, %v4701
      %v4779 = vpack.c.b16 %v4704, %v4703
      %v4780 = vpack.c.b16 %v4706, %v4705
      %v4781 = vpack.c.b16 %v4708, %v4707
      %v4782 = vpack.c.b16 %v4710, %v4709
      %4855 = vmatprep.subr.bf16.mxu0 0
      %4856 = vmatpush1.bf16.msra.mxu0 %v4711
      %4857 = vmatprep.subr.bf16.mxu0 0
      %4858 = vmatpush1.bf16.msra.mxu0 %v4712
      %4859 = vmatprep.subr.bf16.mxu0 0
      %4860 = vmatpush1.bf16.msra.mxu0 %v4713
      %4861 = vmatprep.subr.bf16.mxu0 0
      %4862 = vmatpush1.bf16.msra.mxu0 %v4714
      %4863 = vmatprep.subr.bf16.mxu0 0
      %4864 = vmatpush1.bf16.msra.mxu0 %v4715
      %4865 = vmatprep.subr.bf16.mxu0 0
      %4866 = vmatpush1.bf16.msra.mxu0 %v4716
      %4867 = vmatprep.subr.bf16.mxu0 0
      %4868 = vmatpush1.bf16.msra.mxu0 %v4717
      %4869 = vmatprep.subr.bf16.mxu0 0
      %4870 = vmatpush1.bf16.msra.mxu0 %v4718
      %4871 = vmatprep.subr.bf16.mxu0 0
      %4872 = vmatpush1.bf16.msra.mxu0 %v4719
      %4873 = vmatprep.subr.bf16.mxu0 0
      %4874 = vmatpush1.bf16.msra.mxu0 %v4720
      %4875 = vmatprep.subr.bf16.mxu0 0
      %4876 = vmatpush1.bf16.msra.mxu0 %v4721
      %4877 = vmatprep.subr.bf16.mxu0 0
      %4878 = vmatpush1.bf16.msra.mxu0 %v4722
      %4879 = vmatprep.subr.bf16.mxu0 0
      %4880 = vmatpush1.bf16.msra.mxu0 %v4723
      %4881 = vmatprep.subr.bf16.mxu0 0
      %4882 = vmatpush1.bf16.msra.mxu0 %v4724
      %4883 = vmatprep.subr.bf16.mxu0 0
      %4884 = vmatpush1.bf16.msra.mxu0 %v4725
      %4885 = vmatprep.subr.bf16.mxu0 0
      %4886 = vmatpush1.bf16.msra.mxu0 %v4726
      %4887 = vmatprep.mubr.bf16.mxu0 %v4129
      %4888 = vmatmul.mubr.bf16.gmra.mrb[0].mxu0 %v4128
      %v4889 = vpop.f32.mrb[0].mxu0
      %v4890 = vadd.f32 %v4421, %v4889
      %v4891 = vpop.f32.mrb[0].mxu0
      %v4892 = vpop.f32.mrb[0].mxu0
      %v4893 = vadd.f32 %v4421, %v4892
      %v4894 = vpop.f32.mrb[0].mxu0
      %4895 = vmatprep.mubr.bf16.mxu0 %v4138
      %4896 = vmatmul.mubr.bf16.gmra.mrb[0].mxu0 %v4137
      %v4897 = vpop.f32.mrb[0].mxu0
      %v4898 = vadd.f32 %v4421, %v4897
      %v4899 = vpop.f32.mrb[0].mxu0
      %v4900 = vpop.f32.mrb[0].mxu0
      %v4901 = vadd.f32 %v4421, %v4900
      %v4902 = vpop.f32.mrb[0].mxu0
      %4903 = vmatprep.mubr.bf16.mxu0 %v4147
      %4904 = vmatmul.mubr.bf16.gmra.mrb[0].mxu0 %v4146
      %v4905 = vpop.f32.mrb[0].mxu0
      %v4906 = vadd.f32 %v4421, %v4905
      %v4907 = vpop.f32.mrb[0].mxu0
      %v4908 = vpop.f32.mrb[0].mxu0
      %v4909 = vadd.f32 %v4421, %v4908
      %v4910 = vpop.f32.mrb[0].mxu0
      %4911 = vmatprep.mubr.bf16.mxu0 %v4156
      %4912 = vmatmul.mubr.bf16.gmra.mrb[0].mxu0 %v4155
      %v4913 = vpop.f32.mrb[0].mxu0
      %v4914 = vadd.f32 %v4421, %v4913
      %v4915 = vpop.f32.mrb[0].mxu0
      %v4916 = vpop.f32.mrb[0].mxu0
      %v4917 = vadd.f32 %v4421, %v4916
      %v4918 = vpop.f32.mrb[0].mxu0
      %4919 = vmatprep.mubr.bf16.mxu0 %v4165
      %4920 = vmatmul.mubr.bf16.gmra.mrb[0].mxu0 %v4164
      %v4921 = vpop.f32.mrb[0].mxu0
      %v4922 = vadd.f32 %v4421, %v4921
      %v4923 = vpop.f32.mrb[0].mxu0
      %v4924 = vpop.f32.mrb[0].mxu0
      %v4925 = vadd.f32 %v4421, %v4924
      %v4926 = vpop.f32.mrb[0].mxu0
      %4927 = vmatprep.mubr.bf16.mxu0 %v4174
      %4928 = vmatmul.mubr.bf16.gmra.mrb[0].mxu0 %v4173
      %v4929 = vpop.f32.mrb[0].mxu0
      %v4930 = vadd.f32 %v4421, %v4929
      %v4931 = vpop.f32.mrb[0].mxu0
      %v4932 = vpop.f32.mrb[0].mxu0
      %v4933 = vadd.f32 %v4421, %v4932
      %v4934 = vpop.f32.mrb[0].mxu0
      %4935 = vmatprep.mubr.bf16.mxu0 %v4183
      %4936 = vmatmul.mubr.bf16.gmra.mrb[0].mxu0 %v4182
      %v4937 = vpop.f32.mrb[0].mxu0
      %v4938 = vadd.f32 %v4421, %v4937
      %v4939 = vpop.f32.mrb[0].mxu0
      %v4940 = vpop.f32.mrb[0].mxu0
      %v4941 = vadd.f32 %v4421, %v4940
      %v4942 = vpop.f32.mrb[0].mxu0
      %4943 = vmatprep.mubr.bf16.mxu0 %v4192
      %4944 = vmatmul.mubr.bf16.gmra.mrb[0].mxu0 %v4191
      %v4945 = vpop.f32.mrb[0].mxu0
      %v4946 = vadd.f32 %v4421, %v4945
      %v4947 = vpop.f32.mrb[0].mxu0
      %v4948 = vpop.f32.mrb[0].mxu0
      %v4949 = vadd.f32 %v4421, %v4948
      %v4950 = vpop.f32.mrb[0].mxu0
      %4951 = vmatprep.mubr.bf16.mxu0 %v4201
      %4952 = vmatmul.mubr.bf16.gmra.mrb[0].mxu0 %v4200
      %v4953 = vpop.f32.mrb[0].mxu0
      %v4954 = vadd.f32 %v4421, %v4953
      %v4955 = vpop.f32.mrb[0].mxu0
      %v4956 = vpop.f32.mrb[0].mxu0
      %v4957 = vadd.f32 %v4421, %v4956
      %v4958 = vpop.f32.mrb[0].mxu0
      %4959 = vmatprep.mubr.bf16.mxu0 %v4210
      %4960 = vmatmul.mubr.bf16.gmra.mrb[0].mxu0 %v4209
      %v4961 = vpop.f32.mrb[0].mxu0
      %v4962 = vadd.f32 %v4421, %v4961
      %v4963 = vpop.f32.mrb[0].mxu0
      %v4964 = vpop.f32.mrb[0].mxu0
      %v4965 = vadd.f32 %v4421, %v4964
      %v4966 = vpop.f32.mrb[0].mxu0
      %4967 = vmatprep.mubr.bf16.mxu0 %v4219
      %4968 = vmatmul.mubr.bf16.gmra.mrb[0].mxu0 %v4218
      %v4969 = vpop.f32.mrb[0].mxu0
      %v4970 = vadd.f32 %v4421, %v4969
      %v4971 = vpop.f32.mrb[0].mxu0
      %v4972 = vpop.f32.mrb[0].mxu0
      %v4973 = vadd.f32 %v4421, %v4972
      %v4974 = vpop.f32.mrb[0].mxu0
      %4975 = vmatprep.mubr.bf16.mxu0 %v4228
      %4976 = vmatmul.mubr.bf16.gmra.mrb[0].mxu0 %v4227
      %v4977 = vpop.f32.mrb[0].mxu0
      %v4978 = vadd.f32 %v4421, %v4977
      %v4979 = vpop.f32.mrb[0].mxu0
      %v4980 = vpop.f32.mrb[0].mxu0
      %v4981 = vadd.f32 %v4421, %v4980
      %v4982 = vpop.f32.mrb[0].mxu0
      %4983 = vmatprep.mubr.bf16.mxu0 %v4237
      %4984 = vmatmul.mubr.bf16.gmra.mrb[0].mxu0 %v4236
      %v4985 = vpop.f32.mrb[0].mxu0
      %v4986 = vadd.f32 %v4421, %v4985
      %v4987 = vpop.f32.mrb[0].mxu0
      %v4988 = vpop.f32.mrb[0].mxu0
      %v4989 = vadd.f32 %v4421, %v4988
      %v4990 = vpop.f32.mrb[0].mxu0
      %4991 = vmatprep.mubr.bf16.mxu0 %v4246
      %4992 = vmatmul.mubr.bf16.gmra.mrb[0].mxu0 %v4245
      %v4993 = vpop.f32.mrb[0].mxu0
      %v4994 = vadd.f32 %v4421, %v4993
      %v4995 = vpop.f32.mrb[0].mxu0
      %v4996 = vpop.f32.mrb[0].mxu0
      %v4997 = vadd.f32 %v4421, %v4996
      %v4998 = vpop.f32.mrb[0].mxu0
      %4999 = vmatprep.mubr.bf16.mxu0 %v4255
      %5000 = vmatmul.mubr.bf16.gmra.mrb[0].mxu0 %v4254
      %v5001 = vpop.f32.mrb[0].mxu0
      %v5002 = vadd.f32 %v4421, %v5001
      %v5003 = vpop.f32.mrb[0].mxu0
      %v5004 = vpop.f32.mrb[0].mxu0
      %v5005 = vadd.f32 %v4421, %v5004
      %v5006 = vpop.f32.mrb[0].mxu0
      %5007 = vmatprep.mubr.bf16.mxu0 %v4264
      %5008 = vmatmul.mubr.bf16.gmra.mrb[0].mxu0 %v4263
      %v5009 = vpop.f32.mrb[0].mxu0
      %v5010 = vadd.f32 %v4421, %v5009
      %v5011 = vpop.f32.mrb[0].mxu0
      %v5012 = vpop.f32.mrb[0].mxu0
      %v5013 = vadd.f32 %v4421, %v5012
      %v5014 = vpop.f32.mrb[0].mxu0
      %5015 = vdwg.mxu0
      %5016 = vmatprep.subr.bf16.mxu0 0
      %5017 = vmatpush1.bf16.msra.mxu0 %v4727
      %5018 = vmatprep.subr.bf16.mxu0 0
      %5019 = vmatpush1.bf16.msra.mxu0 %v4728
      %5020 = vmatprep.subr.bf16.mxu0 0
      %5021 = vmatpush1.bf16.msra.mxu0 %v4729
      %5022 = vmatprep.subr.bf16.mxu0 0
      %5023 = vmatpush1.bf16.msra.mxu0 %v4730
      %5024 = vmatprep.subr.bf16.mxu0 0
      %5025 = vmatpush1.bf16.msra.mxu0 %v4731
      %5026 = vmatprep.subr.bf16.mxu0 0
      %5027 = vmatpush1.bf16.msra.mxu0 %v4732
      %5028 = vmatprep.subr.bf16.mxu0 0
      %5029 = vmatpush1.bf16.msra.mxu0 %v4733
      %5030 = vmatprep.subr.bf16.mxu0 0
      %5031 = vmatpush1.bf16.msra.mxu0 %v4734
      %5032 = vmatprep.subr.bf16.mxu0 0
      %5033 = vmatpush1.bf16.msra.mxu0 %v4735
      %5034 = vmatprep.subr.bf16.mxu0 0
      %5035 = vmatpush1.bf16.msra.mxu0 %v4736
      %5036 = vmatprep.subr.bf16.mxu0 0
      %5037 = vmatpush1.bf16.msra.mxu0 %v4737
      %5038 = vmatprep.subr.bf16.mxu0 0
      %5039 = vmatpush1.bf16.msra.mxu0 %v4738
      %5040 = vmatprep.subr.bf16.mxu0 0
      %5041 = vmatpush1.bf16.msra.mxu0 %v4739
      %5042 = vmatprep.subr.bf16.mxu0 0
      %5043 = vmatpush1.bf16.msra.mxu0 %v4740
      %5044 = vmatprep.subr.bf16.mxu0 0
      %5045 = vmatpush1.bf16.msra.mxu0 %v4741
      %5046 = vmatprep.subr.bf16.mxu0 0
      %5047 = vmatpush1.bf16.msra.mxu0 %v4742
      %5048 = vmatprep.mubr.bf16.mxu0 %v4131
      %5049 = vmatmul.mubr.bf16.gmra.mrb[0].mxu0 %v4130
      %v5050 = vpop.f32.mrb[0].mxu0
      %v5051 = vadd.f32 %v4890, %v5050
      %v5052 = vpop.f32.mrb[0].mxu0
      %v5053 = vpop.f32.mrb[0].mxu0
      %v5054 = vadd.f32 %v4893, %v5053
      %v5055 = vpop.f32.mrb[0].mxu0
      %5056 = vmatprep.mubr.bf16.mxu0 %v4140
      %5057 = vmatmul.mubr.bf16.gmra.mrb[0].mxu0 %v4139
      %v5058 = vpop.f32.mrb[0].mxu0
      %v5059 = vadd.f32 %v4898, %v5058
      %v5060 = vpop.f32.mrb[0].mxu0
      %v5061 = vpop.f32.mrb[0].mxu0
      %v5062 = vadd.f32 %v4901, %v5061
      %v5063 = vpop.f32.mrb[0].mxu0
      %5064 = vmatprep.mubr.bf16.mxu0 %v4149
      %5065 = vmatmul.mubr.bf16.gmra.mrb[0].mxu0 %v4148
      %v5066 = vpop.f32.mrb[0].mxu0
      %v5067 = vadd.f32 %v4906, %v5066
      %v5068 = vpop.f32.mrb[0].mxu0
      %v5069 = vpop.f32.mrb[0].mxu0
      %v5070 = vadd.f32 %v4909, %v5069
      %v5071 = vpop.f32.mrb[0].mxu0
      %5072 = vmatprep.mubr.bf16.mxu0 %v4158
      %5073 = vmatmul.mubr.bf16.gmra.mrb[0].mxu0 %v4157
      %v5074 = vpop.f32.mrb[0].mxu0
      %v5075 = vadd.f32 %v4914, %v5074
      %v5076 = vpop.f32.mrb[0].mxu0
      %v5077 = vpop.f32.mrb[0].mxu0
      %v5078 = vadd.f32 %v4917, %v5077
      %v5079 = vpop.f32.mrb[0].mxu0
      %5080 = vmatprep.mubr.bf16.mxu0 %v4167
      %5081 = vmatmul.mubr.bf16.gmra.mrb[0].mxu0 %v4166
      %v5082 = vpop.f32.mrb[0].mxu0
      %v5083 = vadd.f32 %v4922, %v5082
      %v5084 = vpop.f32.mrb[0].mxu0
      %v5085 = vpop.f32.mrb[0].mxu0
      %v5086 = vadd.f32 %v4925, %v5085
      %v5087 = vpop.f32.mrb[0].mxu0
      %5088 = vmatprep.mubr.bf16.mxu0 %v4176
      %5089 = vmatmul.mubr.bf16.gmra.mrb[0].mxu0 %v4175
      %v5090 = vpop.f32.mrb[0].mxu0
      %v5091 = vadd.f32 %v4930, %v5090
      %v5092 = vpop.f32.mrb[0].mxu0
      %v5093 = vpop.f32.mrb[0].mxu0
      %v5094 = vadd.f32 %v4933, %v5093
      %v5095 = vpop.f32.mrb[0].mxu0
      %5096 = vmatprep.mubr.bf16.mxu0 %v4185
      %5097 = vmatmul.mubr.bf16.gmra.mrb[0].mxu0 %v4184
      %v5098 = vpop.f32.mrb[0].mxu0
      %v5099 = vadd.f32 %v4938, %v5098
      %v5100 = vpop.f32.mrb[0].mxu0
      %v5101 = vpop.f32.mrb[0].mxu0
      %v5102 = vadd.f32 %v4941, %v5101
      %v5103 = vpop.f32.mrb[0].mxu0
      %5104 = vmatprep.mubr.bf16.mxu0 %v4194
      %5105 = vmatmul.mubr.bf16.gmra.mrb[0].mxu0 %v4193
      %v5106 = vpop.f32.mrb[0].mxu0
      %v5107 = vadd.f32 %v4946, %v5106
      %v5108 = vpop.f32.mrb[0].mxu0
      %v5109 = vpop.f32.mrb[0].mxu0
      %v5110 = vadd.f32 %v4949, %v5109
      %v5111 = vpop.f32.mrb[0].mxu0
      %5112 = vmatprep.mubr.bf16.mxu0 %v4203
      %5113 = vmatmul.mubr.bf16.gmra.mrb[0].mxu0 %v4202
      %v5114 = vpop.f32.mrb[0].mxu0
      %v5115 = vadd.f32 %v4954, %v5114
      %v5116 = vpop.f32.mrb[0].mxu0
      %v5117 = vpop.f32.mrb[0].mxu0
      %v5118 = vadd.f32 %v4957, %v5117
      %v5119 = vpop.f32.mrb[0].mxu0
      %5120 = vmatprep.mubr.bf16.mxu0 %v4212
      %5121 = vmatmul.mubr.bf16.gmra.mrb[0].mxu0 %v4211
      %v5122 = vpop.f32.mrb[0].mxu0
      %v5123 = vadd.f32 %v4962, %v5122
      %v5124 = vpop.f32.mrb[0].mxu0
      %v5125 = vpop.f32.mrb[0].mxu0
      %v5126 = vadd.f32 %v4965, %v5125
      %v5127 = vpop.f32.mrb[0].mxu0
      %5128 = vmatprep.mubr.bf16.mxu0 %v4221
      %5129 = vmatmul.mubr.bf16.gmra.mrb[0].mxu0 %v4220
      %v5130 = vpop.f32.mrb[0].mxu0
      %v5131 = vadd.f32 %v4970, %v5130
      %v5132 = vpop.f32.mrb[0].mxu0
      %v5133 = vpop.f32.mrb[0].mxu0
      %v5134 = vadd.f32 %v4973, %v5133
      %v5135 = vpop.f32.mrb[0].mxu0
      %5136 = vmatprep.mubr.bf16.mxu0 %v4230
      %5137 = vmatmul.mubr.bf16.gmra.mrb[0].mxu0 %v4229
      %v5138 = vpop.f32.mrb[0].mxu0
      %v5139 = vadd.f32 %v4978, %v5138
      %v5140 = vpop.f32.mrb[0].mxu0
      %v5141 = vpop.f32.mrb[0].mxu0
      %v5142 = vadd.f32 %v4981, %v5141
      %v5143 = vpop.f32.mrb[0].mxu0
      %5144 = vmatprep.mubr.bf16.mxu0 %v4239
      %5145 = vmatmul.mubr.bf16.gmra.mrb[0].mxu0 %v4238
      %v5146 = vpop.f32.mrb[0].mxu0
      %v5147 = vadd.f32 %v4986, %v5146
      %v5148 = vpop.f32.mrb[0].mxu0
      %v5149 = vpop.f32.mrb[0].mxu0
      %v5150 = vadd.f32 %v4989, %v5149
      %v5151 = vpop.f32.mrb[0].mxu0
      %5152 = vmatprep.mubr.bf16.mxu0 %v4248
      %5153 = vmatmul.mubr.bf16.gmra.mrb[0].mxu0 %v4247
      %v5154 = vpop.f32.mrb[0].mxu0
      %v5155 = vadd.f32 %v4994, %v5154
      %v5156 = vpop.f32.mrb[0].mxu0
      %v5157 = vpop.f32.mrb[0].mxu0
      %v5158 = vadd.f32 %v4997, %v5157
      %v5159 = vpop.f32.mrb[0].mxu0
      %5160 = vmatprep.mubr.bf16.mxu0 %v4257
      %5161 = vmatmul.mubr.bf16.gmra.mrb[0].mxu0 %v4256
      %v5162 = vpop.f32.mrb[0].mxu0
      %v5163 = vadd.f32 %v5002, %v5162
      %v5164 = vpop.f32.mrb[0].mxu0
      %v5165 = vpop.f32.mrb[0].mxu0
      %v5166 = vadd.f32 %v5005, %v5165
      %v5167 = vpop.f32.mrb[0].mxu0
      %5168 = vmatprep.mubr.bf16.mxu0 %v4266
      %5169 = vmatmul.mubr.bf16.gmra.mrb[0].mxu0 %v4265
      %v5170 = vpop.f32.mrb[0].mxu0
      %v5171 = vadd.f32 %v5010, %v5170
      %v5172 = vpop.f32.mrb[0].mxu0
      %v5173 = vpop.f32.mrb[0].mxu0
      %v5174 = vadd.f32 %v5013, %v5173
      %v5175 = vpop.f32.mrb[0].mxu0
      %5176 = vdwg.mxu0
      %5177 = vmatprep.subr.bf16.mxu0 0
      %5178 = vmatpush1.bf16.msra.mxu0 %v4743
      %5179 = vmatprep.subr.bf16.mxu0 0
      %5180 = vmatpush1.bf16.msra.mxu0 %v4744
      %5181 = vmatprep.subr.bf16.mxu0 0
      %5182 = vmatpush1.bf16.msra.mxu0 %v4745
      %5183 = vmatprep.subr.bf16.mxu0 0
      %5184 = vmatpush1.bf16.msra.mxu0 %v4746
      %5185 = vmatprep.subr.bf16.mxu0 0
      %5186 = vmatpush1.bf16.msra.mxu0 %v4747
      %5187 = vmatprep.subr.bf16.mxu0 0
      %5188 = vmatpush1.bf16.msra.mxu0 %v4748
      %5189 = vmatprep.subr.bf16.mxu0 0
      %5190 = vmatpush1.bf16.msra.mxu0 %v4749
      %5191 = vmatprep.subr.bf16.mxu0 0
      %5192 = vmatpush1.bf16.msra.mxu0 %v4750
      %5193 = vmatprep.subr.bf16.mxu0 0
      %5194 = vmatpush1.bf16.msra.mxu0 %v4751
      %5195 = vmatprep.subr.bf16.mxu0 0
      %5196 = vmatpush1.bf16.msra.mxu0 %v4752
      %5197 = vmatprep.subr.bf16.mxu0 0
      %5198 = vmatpush1.bf16.msra.mxu0 %v4753
      %5199 = vmatprep.subr.bf16.mxu0 0
      %5200 = vmatpush1.bf16.msra.mxu0 %v4754
      %5201 = vmatprep.subr.bf16.mxu0 0
      %5202 = vmatpush1.bf16.msra.mxu0 %v4755
      %5203 = vmatprep.subr.bf16.mxu0 0
      %5204 = vmatpush1.bf16.msra.mxu0 %v4756
      %5205 = vmatprep.subr.bf16.mxu0 0
      %5206 = vmatpush1.bf16.msra.mxu0 %v4757
      %5207 = vmatprep.subr.bf16.mxu0 0
      %5208 = vmatpush1.bf16.msra.mxu0 %v4758
      %5209 = vmatprep.mubr.bf16.mxu0 %v4133
      %5210 = vmatmul.mubr.bf16.gmra.mrb[0].mxu0 %v4132
      %v5211 = vpop.f32.mrb[0].mxu0
      %v5212 = vadd.f32 %v5051, %v5211
      %v5213 = vpop.f32.mrb[0].mxu0
      %v5214 = vpop.f32.mrb[0].mxu0
      %v5215 = vadd.f32 %v5054, %v5214
      %v5216 = vpop.f32.mrb[0].mxu0
      %5217 = vmatprep.mubr.bf16.mxu0 %v4142
      %5218 = vmatmul.mubr.bf16.gmra.mrb[0].mxu0 %v4141
      %v5219 = vpop.f32.mrb[0].mxu0
      %v5220 = vadd.f32 %v5059, %v5219
      %v5221 = vpop.f32.mrb[0].mxu0
      %v5222 = vpop.f32.mrb[0].mxu0
      %v5223 = vadd.f32 %v5062, %v5222
      %v5224 = vpop.f32.mrb[0].mxu0
      %5225 = vmatprep.mubr.bf16.mxu0 %v4151
      %5226 = vmatmul.mubr.bf16.gmra.mrb[0].mxu0 %v4150
      %v5227 = vpop.f32.mrb[0].mxu0
      %v5228 = vadd.f32 %v5067, %v5227
      %v5229 = vpop.f32.mrb[0].mxu0
      %v5230 = vpop.f32.mrb[0].mxu0
      %v5231 = vadd.f32 %v5070, %v5230
      %v5232 = vpop.f32.mrb[0].mxu0
      %5233 = vmatprep.mubr.bf16.mxu0 %v4160
      %5234 = vmatmul.mubr.bf16.gmra.mrb[0].mxu0 %v4159
      %v5235 = vpop.f32.mrb[0].mxu0
      %v5236 = vadd.f32 %v5075, %v5235
      %v5237 = vpop.f32.mrb[0].mxu0
      %v5238 = vpop.f32.mrb[0].mxu0
      %v5239 = vadd.f32 %v5078, %v5238
      %v5240 = vpop.f32.mrb[0].mxu0
      %5241 = vmatprep.mubr.bf16.mxu0 %v4169
      %5242 = vmatmul.mubr.bf16.gmra.mrb[0].mxu0 %v4168
      %v5243 = vpop.f32.mrb[0].mxu0
      %v5244 = vadd.f32 %v5083, %v5243
      %v5245 = vpop.f32.mrb[0].mxu0
      %v5246 = vpop.f32.mrb[0].mxu0
      %v5247 = vadd.f32 %v5086, %v5246
      %v5248 = vpop.f32.mrb[0].mxu0
      %5249 = vmatprep.mubr.bf16.mxu0 %v4178
      %5250 = vmatmul.mubr.bf16.gmra.mrb[0].mxu0 %v4177
      %v5251 = vpop.f32.mrb[0].mxu0
      %v5252 = vadd.f32 %v5091, %v5251
      %v5253 = vpop.f32.mrb[0].mxu0
      %v5254 = vpop.f32.mrb[0].mxu0
      %v5255 = vadd.f32 %v5094, %v5254
      %v5256 = vpop.f32.mrb[0].mxu0
      %5257 = vmatprep.mubr.bf16.mxu0 %v4187
      %5258 = vmatmul.mubr.bf16.gmra.mrb[0].mxu0 %v4186
      %v5259 = vpop.f32.mrb[0].mxu0
      %v5260 = vadd.f32 %v5099, %v5259
      %v5261 = vpop.f32.mrb[0].mxu0
      %v5262 = vpop.f32.mrb[0].mxu0
      %v5263 = vadd.f32 %v5102, %v5262
      %v5264 = vpop.f32.mrb[0].mxu0
      %5265 = vmatprep.mubr.bf16.mxu0 %v4196
      %5266 = vmatmul.mubr.bf16.gmra.mrb[0].mxu0 %v4195
      %v5267 = vpop.f32.mrb[0].mxu0
      %v5268 = vadd.f32 %v5107, %v5267
      %v5269 = vpop.f32.mrb[0].mxu0
      %v5270 = vpop.f32.mrb[0].mxu0
      %v5271 = vadd.f32 %v5110, %v5270
      %v5272 = vpop.f32.mrb[0].mxu0
      %5273 = vmatprep.mubr.bf16.mxu0 %v4205
      %5274 = vmatmul.mubr.bf16.gmra.mrb[0].mxu0 %v4204
      %v5275 = vpop.f32.mrb[0].mxu0
      %v5276 = vadd.f32 %v5115, %v5275
      %v5277 = vpop.f32.mrb[0].mxu0
      %v5278 = vpop.f32.mrb[0].mxu0
      %v5279 = vadd.f32 %v5118, %v5278
      %v5280 = vpop.f32.mrb[0].mxu0
      %5281 = vmatprep.mubr.bf16.mxu0 %v4214
      %5282 = vmatmul.mubr.bf16.gmra.mrb[0].mxu0 %v4213
      %v5283 = vpop.f32.mrb[0].mxu0
      %v5284 = vadd.f32 %v5123, %v5283
      %v5285 = vpop.f32.mrb[0].mxu0
      %v5286 = vpop.f32.mrb[0].mxu0
      %v5287 = vadd.f32 %v5126, %v5286
      %v5288 = vpop.f32.mrb[0].mxu0
      %5289 = vmatprep.mubr.bf16.mxu0 %v4223
      %5290 = vmatmul.mubr.bf16.gmra.mrb[0].mxu0 %v4222
      %v5291 = vpop.f32.mrb[0].mxu0
      %v5292 = vadd.f32 %v5131, %v5291
      %v5293 = vpop.f32.mrb[0].mxu0
      %v5294 = vpop.f32.mrb[0].mxu0
      %v5295 = vadd.f32 %v5134, %v5294
      %v5296 = vpop.f32.mrb[0].mxu0
      %5297 = vmatprep.mubr.bf16.mxu0 %v4232
      %5298 = vmatmul.mubr.bf16.gmra.mrb[0].mxu0 %v4231
      %v5299 = vpop.f32.mrb[0].mxu0
      %v5300 = vadd.f32 %v5139, %v5299
      %v5301 = vpop.f32.mrb[0].mxu0
      %v5302 = vpop.f32.mrb[0].mxu0
      %v5303 = vadd.f32 %v5142, %v5302
      %v5304 = vpop.f32.mrb[0].mxu0
      %5305 = vmatprep.mubr.bf16.mxu0 %v4241
      %5306 = vmatmul.mubr.bf16.gmra.mrb[0].mxu0 %v4240
      %v5307 = vpop.f32.mrb[0].mxu0
      %v5308 = vadd.f32 %v5147, %v5307
      %v5309 = vpop.f32.mrb[0].mxu0
      %v5310 = vpop.f32.mrb[0].mxu0
      %v5311 = vadd.f32 %v5150, %v5310
      %v5312 = vpop.f32.mrb[0].mxu0
      %5313 = vmatprep.mubr.bf16.mxu0 %v4250
      %5314 = vmatmul.mubr.bf16.gmra.mrb[0].mxu0 %v4249
      %v5315 = vpop.f32.mrb[0].mxu0
      %v5316 = vadd.f32 %v5155, %v5315
      %v5317 = vpop.f32.mrb[0].mxu0
      %v5318 = vpop.f32.mrb[0].mxu0
      %v5319 = vadd.f32 %v5158, %v5318
      %v5320 = vpop.f32.mrb[0].mxu0
      %5321 = vmatprep.mubr.bf16.mxu0 %v4259
      %5322 = vmatmul.mubr.bf16.gmra.mrb[0].mxu0 %v4258
      %v5323 = vpop.f32.mrb[0].mxu0
      %v5324 = vadd.f32 %v5163, %v5323
      %v5325 = vpop.f32.mrb[0].mxu0
      %v5326 = vpop.f32.mrb[0].mxu0
      %v5327 = vadd.f32 %v5166, %v5326
      %v5328 = vpop.f32.mrb[0].mxu0
      %5329 = vmatprep.mubr.bf16.mxu0 %v4268
      %5330 = vmatmul.mubr.bf16.gmra.mrb[0].mxu0 %v4267
      %v5331 = vpop.f32.mrb[0].mxu0
      %v5332 = vadd.f32 %v5171, %v5331
      %v5333 = vpop.f32.mrb[0].mxu0
      %v5334 = vpop.f32.mrb[0].mxu0
      %v5335 = vadd.f32 %v5174, %v5334
      %v5336 = vpop.f32.mrb[0].mxu0
      %5337 = vdwg.mxu0
      %5338 = vmatprep.subr.bf16.mxu0 0
      %5339 = vmatpush1.bf16.msra.mxu0 %v4759
      %5340 = vmatprep.subr.bf16.mxu0 0
      %5341 = vmatpush1.bf16.msra.mxu0 %v4760
      %5342 = vmatprep.subr.bf16.mxu0 0
      %5343 = vmatpush1.bf16.msra.mxu0 %v4761
      %5344 = vmatprep.subr.bf16.mxu0 0
      %5345 = vmatpush1.bf16.msra.mxu0 %v4762
      %5346 = vmatprep.subr.bf16.mxu0 0
      %5347 = vmatpush1.bf16.msra.mxu0 %v4763
      %5348 = vmatprep.subr.bf16.mxu0 0
      %5349 = vmatpush1.bf16.msra.mxu0 %v4764
      %5350 = vmatprep.subr.bf16.mxu0 0
      %5351 = vmatpush1.bf16.msra.mxu0 %v4765
      %5352 = vmatprep.subr.bf16.mxu0 0
      %5353 = vmatpush1.bf16.msra.mxu0 %v4766
      %5354 = vmatprep.subr.bf16.mxu0 0
      %5355 = vmatpush1.bf16.msra.mxu0 %v4767
      %5356 = vmatprep.subr.bf16.mxu0 0
      %5357 = vmatpush1.bf16.msra.mxu0 %v4768
      %5358 = vmatprep.subr.bf16.mxu0 0
      %5359 = vmatpush1.bf16.msra.mxu0 %v4769
      %5360 = vmatprep.subr.bf16.mxu0 0
      %5361 = vmatpush1.bf16.msra.mxu0 %v4770
      %5362 = vmatprep.subr.bf16.mxu0 0
      %5363 = vmatpush1.bf16.msra.mxu0 %v4771
      %5364 = vmatprep.subr.bf16.mxu0 0
      %5365 = vmatpush1.bf16.msra.mxu0 %v4772
      %5366 = vmatprep.subr.bf16.mxu0 0
      %5367 = vmatpush1.bf16.msra.mxu0 %v4773
      %5368 = vmatprep.subr.bf16.mxu0 0
      %5369 = vmatpush1.bf16.msra.mxu0 %v4774
      %5370 = vmatprep.mubr.bf16.mxu0 %v4135
      %5371 = vmatmul.mubr.bf16.gmra.mrb[0].mxu0 %v4134
      %v5372 = vpop.f32.mrb[0].mxu0
      %v5373 = vadd.f32 %v5212, %v5372
      %v5374 = vpop.f32.mrb[0].mxu0
      %v5375 = vpop.f32.mrb[0].mxu0
      %v5376 = vadd.f32 %v5215, %v5375
      %v5377 = vpop.f32.mrb[0].mxu0
      %5378 = vmatprep.mubr.bf16.mxu0 %v4144
      %5379 = vmatmul.mubr.bf16.gmra.mrb[0].mxu0 %v4143
      %v5380 = vpop.f32.mrb[0].mxu0
      %v5381 = vadd.f32 %v5220, %v5380
      %v5382 = vpop.f32.mrb[0].mxu0
      %v5383 = vpop.f32.mrb[0].mxu0
      %v5384 = vadd.f32 %v5223, %v5383
      %v5385 = vpop.f32.mrb[0].mxu0
      %5386 = vmatprep.mubr.bf16.mxu0 %v4153
      %5387 = vmatmul.mubr.bf16.gmra.mrb[0].mxu0 %v4152
      %v5388 = vpop.f32.mrb[0].mxu0
      %v5389 = vadd.f32 %v5228, %v5388
      %v5390 = vpop.f32.mrb[0].mxu0
      %v5391 = vpop.f32.mrb[0].mxu0
      %v5392 = vadd.f32 %v5231, %v5391
      %v5393 = vpop.f32.mrb[0].mxu0
      %5394 = vmatprep.mubr.bf16.mxu0 %v4162
      %5395 = vmatmul.mubr.bf16.gmra.mrb[0].mxu0 %v4161
      %v5396 = vpop.f32.mrb[0].mxu0
      %v5397 = vadd.f32 %v5236, %v5396
      %v5398 = vpop.f32.mrb[0].mxu0
      %v5399 = vpop.f32.mrb[0].mxu0
      %v5400 = vadd.f32 %v5239, %v5399
      %v5401 = vpop.f32.mrb[0].mxu0
      %5402 = vmatprep.mubr.bf16.mxu0 %v4171
      %5403 = vmatmul.mubr.bf16.gmra.mrb[0].mxu0 %v4170
      %v5404 = vpop.f32.mrb[0].mxu0
      %v5405 = vadd.f32 %v5244, %v5404
      %v5406 = vpop.f32.mrb[0].mxu0
      %v5407 = vpop.f32.mrb[0].mxu0
      %v5408 = vadd.f32 %v5247, %v5407
      %v5409 = vpop.f32.mrb[0].mxu0
      %5410 = vmatprep.mubr.bf16.mxu0 %v4180
      %5411 = vmatmul.mubr.bf16.gmra.mrb[0].mxu0 %v4179
      %v5412 = vpop.f32.mrb[0].mxu0
      %v5413 = vadd.f32 %v5252, %v5412
      %v5414 = vpop.f32.mrb[0].mxu0
      %v5415 = vpop.f32.mrb[0].mxu0
      %v5416 = vadd.f32 %v5255, %v5415
      %v5417 = vpop.f32.mrb[0].mxu0
      %5418 = vmatprep.mubr.bf16.mxu0 %v4189
      %5419 = vmatmul.mubr.bf16.gmra.mrb[0].mxu0 %v4188
      %v5420 = vpop.f32.mrb[0].mxu0
      %v5421 = vadd.f32 %v5260, %v5420
      %v5422 = vpop.f32.mrb[0].mxu0
      %v5423 = vpop.f32.mrb[0].mxu0
      %v5424 = vadd.f32 %v5263, %v5423
      %v5425 = vpop.f32.mrb[0].mxu0
      %5426 = vmatprep.mubr.bf16.mxu0 %v4198
      %5427 = vmatmul.mubr.bf16.gmra.mrb[0].mxu0 %v4197
      %v5428 = vpop.f32.mrb[0].mxu0
      %v5429 = vadd.f32 %v5268, %v5428
      %v5430 = vpop.f32.mrb[0].mxu0
      %v5431 = vpop.f32.mrb[0].mxu0
      %v5432 = vadd.f32 %v5271, %v5431
      %v5433 = vpop.f32.mrb[0].mxu0
      %5434 = vmatprep.mubr.bf16.mxu0 %v4207
      %5435 = vmatmul.mubr.bf16.gmra.mrb[0].mxu0 %v4206
      %v5436 = vpop.f32.mrb[0].mxu0
      %v5437 = vadd.f32 %v5276, %v5436
      %v5438 = vpop.f32.mrb[0].mxu0
      %v5439 = vpop.f32.mrb[0].mxu0
      %v5440 = vadd.f32 %v5279, %v5439
      %v5441 = vpop.f32.mrb[0].mxu0
      %5442 = vmatprep.mubr.bf16.mxu0 %v4216
      %5443 = vmatmul.mubr.bf16.gmra.mrb[0].mxu0 %v4215
      %v5444 = vpop.f32.mrb[0].mxu0
      %v5445 = vadd.f32 %v5284, %v5444
      %v5446 = vpop.f32.mrb[0].mxu0
      %v5447 = vpop.f32.mrb[0].mxu0
      %v5448 = vadd.f32 %v5287, %v5447
      %v5449 = vpop.f32.mrb[0].mxu0
      %5450 = vmatprep.mubr.bf16.mxu0 %v4225
      %5451 = vmatmul.mubr.bf16.gmra.mrb[0].mxu0 %v4224
      %v5452 = vpop.f32.mrb[0].mxu0
      %v5453 = vadd.f32 %v5292, %v5452
      %v5454 = vpop.f32.mrb[0].mxu0
      %v5455 = vpop.f32.mrb[0].mxu0
      %v5456 = vadd.f32 %v5295, %v5455
      %v5457 = vpop.f32.mrb[0].mxu0
      %5458 = vmatprep.mubr.bf16.mxu0 %v4234
      %5459 = vmatmul.mubr.bf16.gmra.mrb[0].mxu0 %v4233
      %v5460 = vpop.f32.mrb[0].mxu0
      %v5461 = vadd.f32 %v5300, %v5460
      %v5462 = vpop.f32.mrb[0].mxu0
      %v5463 = vpop.f32.mrb[0].mxu0
      %v5464 = vadd.f32 %v5303, %v5463
      %v5465 = vpop.f32.mrb[0].mxu0
      %5466 = vmatprep.mubr.bf16.mxu0 %v4243
      %5467 = vmatmul.mubr.bf16.gmra.mrb[0].mxu0 %v4242
      %v5468 = vpop.f32.mrb[0].mxu0
      %v5469 = vadd.f32 %v5308, %v5468
      %v5470 = vpop.f32.mrb[0].mxu0
      %v5471 = vpop.f32.mrb[0].mxu0
      %v5472 = vadd.f32 %v5311, %v5471
      %v5473 = vpop.f32.mrb[0].mxu0
      %5474 = vmatprep.mubr.bf16.mxu0 %v4252
      %5475 = vmatmul.mubr.bf16.gmra.mrb[0].mxu0 %v4251
      %v5476 = vpop.f32.mrb[0].mxu0
      %v5477 = vadd.f32 %v5316, %v5476
      %v5478 = vpop.f32.mrb[0].mxu0
      %v5479 = vpop.f32.mrb[0].mxu0
      %v5480 = vadd.f32 %v5319, %v5479
      %v5481 = vpop.f32.mrb[0].mxu0
      %5482 = vmatprep.mubr.bf16.mxu0 %v4261
      %5483 = vmatmul.mubr.bf16.gmra.mrb[0].mxu0 %v4260
      %v5484 = vpop.f32.mrb[0].mxu0
      %v5485 = vadd.f32 %v5324, %v5484
      %v5486 = vpop.f32.mrb[0].mxu0
      %v5487 = vpop.f32.mrb[0].mxu0
      %v5488 = vadd.f32 %v5327, %v5487
      %v5489 = vpop.f32.mrb[0].mxu0
      %5490 = vmatprep.mubr.bf16.mxu0 %v4270
      %5491 = vmatmul.mubr.bf16.gmra.mrb[0].mxu0 %v4269
      %v5492 = vpop.f32.mrb[0].mxu0
      %v5493 = vadd.f32 %v5332, %v5492
      %v5494 = vpop.f32.mrb[0].mxu0
      %v5495 = vpop.f32.mrb[0].mxu0
      %v5496 = vadd.f32 %v5335, %v5495
      %v5497 = vpop.f32.mrb[0].mxu0
      %5498 = vdwg.mxu0
      %5499 = vmatprep.subr.bf16.mxu0 0
      %5500 = vmatpush1.bf16.msra.mxu0 %v4775
      %5501 = vmatprep.subr.bf16.mxu0 0
      %5502 = vmatpush1.bf16.msra.mxu0 %v4776
      %5503 = vmatprep.subr.bf16.mxu0 0
      %5504 = vmatpush1.bf16.msra.mxu0 %v4777
      %5505 = vmatprep.subr.bf16.mxu0 0
      %5506 = vmatpush1.bf16.msra.mxu0 %v4778
      %5507 = vmatprep.subr.bf16.mxu0 0
      %5508 = vmatpush1.bf16.msra.mxu0 %v4779
      %5509 = vmatprep.subr.bf16.mxu0 0
      %5510 = vmatpush1.bf16.msra.mxu0 %v4780
      %5511 = vmatprep.subr.bf16.mxu0 0
      %5512 = vmatpush1.bf16.msra.mxu0 %v4781
      %5513 = vmatprep.subr.bf16.mxu0 0
      %5514 = vmatpush1.bf16.msra.mxu0 %v4782
      %5515 = vmatprep.subr.bf16.mxu0 0
      %5516 = vmatpush1.bf16.msra.mxu0 0
      %5517 = vmatprep.subr.bf16.mxu0 0
      %5518 = vmatpush1.bf16.msra.mxu0 0
      %5519 = vmatprep.subr.bf16.mxu0 0
      %5520 = vmatpush1.bf16.msra.mxu0 0
      %5521 = vmatprep.subr.bf16.mxu0 0
      %5522 = vmatpush1.bf16.msra.mxu0 0
      %5523 = vmatprep.subr.bf16.mxu0 0
      %5524 = vmatpush1.bf16.msra.mxu0 0
      %5525 = vmatprep.subr.bf16.mxu0 0
      %5526 = vmatpush1.bf16.msra.mxu0 0
      %5527 = vmatprep.subr.bf16.mxu0 0
      %5528 = vmatpush1.bf16.msra.mxu0 0
      %5529 = vmatprep.subr.bf16.mxu0 0
      %5530 = vmatpush1.bf16.msra.mxu0 0
      %5531 = vmatprep.mubr.bf16.mxu0 0
      %5532 = vmatmul.mubr.bf16.gmra.mrb[0].mxu0 %v4136
      %v5533 = vpop.f32.mrb[0].mxu0
      %v5534 = vadd.f32 %v5373, %v5533
      %v5535 = vpop.f32.mrb[0].mxu0
      %v5536 = vpop.f32.mrb[0].mxu0
      %v5537 = vadd.f32 %v5376, %v5536
      %v5538 = vpop.f32.mrb[0].mxu0
      %5539 = vmatprep.mubr.bf16.mxu0 0
      %5540 = vmatmul.mubr.bf16.gmra.mrb[0].mxu0 %v4145
      %v5541 = vpop.f32.mrb[0].mxu0
      %v5542 = vadd.f32 %v5381, %v5541
      %v5543 = vpop.f32.mrb[0].mxu0
      %v5544 = vpop.f32.mrb[0].mxu0
      %v5545 = vadd.f32 %v5384, %v5544
      %v5546 = vpop.f32.mrb[0].mxu0
      %5547 = vmatprep.mubr.bf16.mxu0 0
      %5548 = vmatmul.mubr.bf16.gmra.mrb[0].mxu0 %v4154
      %v5549 = vpop.f32.mrb[0].mxu0
      %v5550 = vadd.f32 %v5389, %v5549
      %v5551 = vpop.f32.mrb[0].mxu0
      %v5552 = vpop.f32.mrb[0].mxu0
      %v5553 = vadd.f32 %v5392, %v5552
      %v5554 = vpop.f32.mrb[0].mxu0
      %5555 = vmatprep.mubr.bf16.mxu0 0
      %5556 = vmatmul.mubr.bf16.gmra.mrb[0].mxu0 %v4163
      %v5557 = vpop.f32.mrb[0].mxu0
      %v5558 = vadd.f32 %v5397, %v5557
      %v5559 = vpop.f32.mrb[0].mxu0
      %v5560 = vpop.f32.mrb[0].mxu0
      %v5561 = vadd.f32 %v5400, %v5560
      %v5562 = vpop.f32.mrb[0].mxu0
      %5563 = vmatprep.mubr.bf16.mxu0 0
      %5564 = vmatmul.mubr.bf16.gmra.mrb[0].mxu0 %v4172
      %v5565 = vpop.f32.mrb[0].mxu0
      %v5566 = vadd.f32 %v5405, %v5565
      %v5567 = vpop.f32.mrb[0].mxu0
      %v5568 = vpop.f32.mrb[0].mxu0
      %v5569 = vadd.f32 %v5408, %v5568
      %v5570 = vpop.f32.mrb[0].mxu0
      %5571 = vmatprep.mubr.bf16.mxu0 0
      %5572 = vmatmul.mubr.bf16.gmra.mrb[0].mxu0 %v4181
      %v5573 = vpop.f32.mrb[0].mxu0
      %v5574 = vadd.f32 %v5413, %v5573
      %v5575 = vpop.f32.mrb[0].mxu0
      %v5576 = vpop.f32.mrb[0].mxu0
      %v5577 = vadd.f32 %v5416, %v5576
      %v5578 = vpop.f32.mrb[0].mxu0
      %5579 = vmatprep.mubr.bf16.mxu0 0
      %5580 = vmatmul.mubr.bf16.gmra.mrb[0].mxu0 %v4190
      %v5581 = vpop.f32.mrb[0].mxu0
      %v5582 = vadd.f32 %v5421, %v5581
      %v5583 = vpop.f32.mrb[0].mxu0
      %v5584 = vpop.f32.mrb[0].mxu0
      %v5585 = vadd.f32 %v5424, %v5584
      %v5586 = vpop.f32.mrb[0].mxu0
      %5587 = vmatprep.mubr.bf16.mxu0 0
      %5588 = vmatmul.mubr.bf16.gmra.mrb[0].mxu0 %v4199
      %v5589 = vpop.f32.mrb[0].mxu0
      %v5590 = vadd.f32 %v5429, %v5589
      %v5591 = vpop.f32.mrb[0].mxu0
      %v5592 = vpop.f32.mrb[0].mxu0
      %v5593 = vadd.f32 %v5432, %v5592
      %v5594 = vpop.f32.mrb[0].mxu0
      %5595 = vmatprep.mubr.bf16.mxu0 0
      %5596 = vmatmul.mubr.bf16.gmra.mrb[0].mxu0 %v4208
      %v5597 = vpop.f32.mrb[0].mxu0
      %v5598 = vadd.f32 %v5437, %v5597
      %v5599 = vpop.f32.mrb[0].mxu0
      %v5600 = vpop.f32.mrb[0].mxu0
      %v5601 = vadd.f32 %v5440, %v5600
      %v5602 = vpop.f32.mrb[0].mxu0
      %5603 = vmatprep.mubr.bf16.mxu0 0
      %5604 = vmatmul.mubr.bf16.gmra.mrb[0].mxu0 %v4217
      %v5605 = vpop.f32.mrb[0].mxu0
      %v5606 = vadd.f32 %v5445, %v5605
      %v5607 = vpop.f32.mrb[0].mxu0
      %v5608 = vpop.f32.mrb[0].mxu0
      %v5609 = vadd.f32 %v5448, %v5608
      %v5610 = vpop.f32.mrb[0].mxu0
      %5611 = vmatprep.mubr.bf16.mxu0 0
      %5612 = vmatmul.mubr.bf16.gmra.mrb[0].mxu0 %v4226
      %v5613 = vpop.f32.mrb[0].mxu0
      %v5614 = vadd.f32 %v5453, %v5613
      %v5615 = vpop.f32.mrb[0].mxu0
      %v5616 = vpop.f32.mrb[0].mxu0
      %v5617 = vadd.f32 %v5456, %v5616
      %v5618 = vpop.f32.mrb[0].mxu0
      %5619 = vmatprep.mubr.bf16.mxu0 0
      %5620 = vmatmul.mubr.bf16.gmra.mrb[0].mxu0 %v4235
      %v5621 = vpop.f32.mrb[0].mxu0
      %v5622 = vadd.f32 %v5461, %v5621
      %v5623 = vpop.f32.mrb[0].mxu0
      %v5624 = vpop.f32.mrb[0].mxu0
      %v5625 = vadd.f32 %v5464, %v5624
      %v5626 = vpop.f32.mrb[0].mxu0
      %5627 = vmatprep.mubr.bf16.mxu0 0
      %5628 = vmatmul.mubr.bf16.gmra.mrb[0].mxu0 %v4244
      %v5629 = vpop.f32.mrb[0].mxu0
      %v5630 = vadd.f32 %v5469, %v5629
      %v5631 = vpop.f32.mrb[0].mxu0
      %v5632 = vpop.f32.mrb[0].mxu0
      %v5633 = vadd.f32 %v5472, %v5632
      %v5634 = vpop.f32.mrb[0].mxu0
      %5635 = vmatprep.mubr.bf16.mxu0 0
      %5636 = vmatmul.mubr.bf16.gmra.mrb[0].mxu0 %v4253
      %v5637 = vpop.f32.mrb[0].mxu0
      %v5638 = vadd.f32 %v5477, %v5637
      %v5639 = vpop.f32.mrb[0].mxu0
      %v5640 = vpop.f32.mrb[0].mxu0
      %v5641 = vadd.f32 %v5480, %v5640
      %v5642 = vpop.f32.mrb[0].mxu0
      %5643 = vmatprep.mubr.bf16.mxu0 0
      %5644 = vmatmul.mubr.bf16.gmra.mrb[0].mxu0 %v4262
      %v5645 = vpop.f32.mrb[0].mxu0
      %v5646 = vadd.f32 %v5485, %v5645
      %v5647 = vpop.f32.mrb[0].mxu0
      %v5648 = vpop.f32.mrb[0].mxu0
      %v5649 = vadd.f32 %v5488, %v5648
      %v5650 = vpop.f32.mrb[0].mxu0
      %5651 = vmatprep.mubr.bf16.mxu0 0
      %5652 = vmatmul.mubr.bf16.gmra.mrb[0].mxu0 %v4271
      %v5653 = vpop.f32.mrb[0].mxu0
      %v5654 = vadd.f32 %v5493, %v5653
      %v5655 = vpop.f32.mrb[0].mxu0
      %v5656 = vpop.f32.mrb[0].mxu0
      %v5657 = vadd.f32 %v5496, %v5656
      %v5658 = vpop.f32.mrb[0].mxu0
      %5659 = vdwg.mxu0
      %v5660 = vmax.f32 %v5534, 0.0
      %v5661 = vmax.f32 %v5537, 0.0
      %v5662 = vmax.f32 %v5542, 0.0
      %v5663 = vmax.f32 %v5545, 0.0
      %v5664 = vmax.f32 %v5550, 0.0
      %v5665 = vmax.f32 %v5553, 0.0
      %v5666 = vmax.f32 %v5558, 0.0
      %v5667 = vmax.f32 %v5561, 0.0
      %v5668 = vmax.f32 %v5566, 0.0
      %v5669 = vmax.f32 %v5569, 0.0
      %v5670 = vmax.f32 %v5574, 0.0
      %v5671 = vmax.f32 %v5577, 0.0
      %v5672 = vmax.f32 %v5582, 0.0
      %v5673 = vmax.f32 %v5585, 0.0
      %v5674 = vmax.f32 %v5590, 0.0
      %v5675 = vmax.f32 %v5593, 0.0
      %v5676 = vmax.f32 %v5598, 0.0
      %v5677 = vmax.f32 %v5601, 0.0
      %v5678 = vmax.f32 %v5606, 0.0
      %v5679 = vmax.f32 %v5609, 0.0
      %v5680 = vmax.f32 %v5614, 0.0
      %v5681 = vmax.f32 %v5617, 0.0
      %v5682 = vmax.f32 %v5622, 0.0
      %v5683 = vmax.f32 %v5625, 0.0
      %v5684 = vmax.f32 %v5630, 0.0
      %v5685 = vmax.f32 %v5633, 0.0
      %v5686 = vmax.f32 %v5638, 0.0
      %v5687 = vmax.f32 %v5641, 0.0
      %v5688 = vmax.f32 %v5646, 0.0
      %v5689 = vmax.f32 %v5649, 0.0
      %v5690 = vmax.f32 %v5654, 0.0
      %v5691 = vmax.f32 %v5657, 0.0
      %v5692 = vpack.c.bf16 %v5661, %v5660
      %v5693 = vpack.c.bf16 %v5663, %v5662
      %v5694 = vpack.c.bf16 %v5665, %v5664
      %v5695 = vpack.c.bf16 %v5667, %v5666
      %v5696 = vpack.c.bf16 %v5669, %v5668
      %v5697 = vpack.c.bf16 %v5671, %v5670
      %v5698 = vpack.c.bf16 %v5673, %v5672
      %v5699 = vpack.c.bf16 %v5675, %v5674
      %v5700 = vpack.c.bf16 %v5677, %v5676
      %v5701 = vpack.c.bf16 %v5679, %v5678
      %v5702 = vpack.c.bf16 %v5681, %v5680
      %v5703 = vpack.c.bf16 %v5683, %v5682
      %v5704 = vpack.c.bf16 %v5685, %v5684
      %v5705 = vpack.c.bf16 %v5687, %v5686
      %v5706 = vpack.c.bf16 %v5689, %v5688
      %v5707 = vpack.c.bf16 %v5691, %v5690
      %v5708 = vld [vmem:[%s5] sm:$0xf]
      %v5709 = vld [vmem:[%s5 + $0x4] sm:$0xf]
      %v5710 = vld [vmem:[%s5 + $0x8] sm:$0xf]
      %v5711 = vld [vmem:[%s5 + $0xc] sm:$0xf]
      %v5712 = vld [vmem:[%s5 + $0x10] sm:$0xf]
      %v5713 = vld [vmem:[%s5 + $0x14] sm:$0xf]
      %v5714 = vld [vmem:[%s5 + $0x18] sm:$0xf]
      %v5715 = vld [vmem:[%s5 + $0x1c] sm:$0xf]
      %v5716 = vld [vmem:[%s5 + $0x20] sm:$0xf]
      %v5717 = vld [vmem:[%s5 + $0x24] sm:$0xf]
      %v5718 = vld [vmem:[%s5 + $0x28] sm:$0xf]
      %v5719 = vld [vmem:[%s5 + $0x2c] sm:$0xf]
      %v5720 = vld [vmem:[%s5 + $0x30] sm:$0xf]
      %v5721 = vld [vmem:[%s5 + $0x34] sm:$0xf]
      %v5722 = vld [vmem:[%s5 + $0x38] sm:$0xf]
      %v5723 = vld [vmem:[%s5 + $0x3c] sm:$0xf]
      %v5724 = vld [vmem:[%s6] sm:$0x1]
      %v5726 = vlaneseq
      %v5727 = vshrl.u32 %v5726, 7
      %v5728 = vsub.s32 0, %v5727
      %v5729 = vrot.slane %v5724, %v5728
      %v5747 = vunpack.c.l.b16 %v5708
      %v5748 = vunpack.c.l.b16 %v5709
      %v5749 = vunpack.c.l.b16 %v5710
      %v5750 = vunpack.c.l.b16 %v5711
      %v5751 = vunpack.c.l.b16 %v5712
      %v5752 = vunpack.c.l.b16 %v5713
      %v5753 = vunpack.c.l.b16 %v5714
      %v5754 = vunpack.c.l.b16 %v5715
      %v5755 = vunpack.c.l.b16 %v5716
      %v5756 = vunpack.c.l.b16 %v5717
      %v5757 = vunpack.c.l.b16 %v5718
      %v5758 = vunpack.c.l.b16 %v5719
      %v5759 = vunpack.c.l.b16 %v5720
      %v5760 = vunpack.c.l.b16 %v5721
      %v5761 = vunpack.c.l.b16 %v5722
      %v5762 = vunpack.c.l.b16 %v5723
      %v5763 = vpack.c.b16 %v5748, %v5747
      %v5764 = vpack.c.b16 %v5750, %v5749
      %v5765 = vpack.c.b16 %v5752, %v5751
      %v5766 = vpack.c.b16 %v5754, %v5753
      %v5767 = vpack.c.b16 %v5756, %v5755
      %v5768 = vpack.c.b16 %v5758, %v5757
      %v5769 = vpack.c.b16 %v5760, %v5759
      %v5770 = vpack.c.b16 %v5762, %v5761
      %5779 = vmatprep.subr.bf16.mxu0 0
      %5780 = vmatpush1.bf16.msra.mxu0 %v5763
      %5781 = vmatprep.subr.bf16.mxu0 0
      %5782 = vmatpush1.bf16.msra.mxu0 %v5764
      %5783 = vmatprep.subr.bf16.mxu0 0
      %5784 = vmatpush1.bf16.msra.mxu0 %v5765
      %5785 = vmatprep.subr.bf16.mxu0 0
      %5786 = vmatpush1.bf16.msra.mxu0 %v5766
      %5787 = vmatprep.subr.bf16.mxu0 0
      %5788 = vmatpush1.bf16.msra.mxu0 %v5767
      %5789 = vmatprep.subr.bf16.mxu0 0
      %5790 = vmatpush1.bf16.msra.mxu0 %v5768
      %5791 = vmatprep.subr.bf16.mxu0 0
      %5792 = vmatpush1.bf16.msra.mxu0 %v5769
      %5793 = vmatprep.subr.bf16.mxu0 0
      %5794 = vmatpush1.bf16.msra.mxu0 %v5770
      %5795 = vmatprep.subr.bf16.mxu0 0
      %5796 = vmatpush1.bf16.msra.mxu0 0
      %5797 = vmatprep.subr.bf16.mxu0 0
      %5798 = vmatpush1.bf16.msra.mxu0 0
      %5799 = vmatprep.subr.bf16.mxu0 0
      %5800 = vmatpush1.bf16.msra.mxu0 0
      %5801 = vmatprep.subr.bf16.mxu0 0
      %5802 = vmatpush1.bf16.msra.mxu0 0
      %5803 = vmatprep.subr.bf16.mxu0 0
      %5804 = vmatpush1.bf16.msra.mxu0 0
      %5805 = vmatprep.subr.bf16.mxu0 0
      %5806 = vmatpush1.bf16.msra.mxu0 0
      %5807 = vmatprep.subr.bf16.mxu0 0
      %5808 = vmatpush1.bf16.msra.mxu0 0
      %5809 = vmatprep.subr.bf16.mxu0 0
      %5810 = vmatpush1.bf16.msra.mxu0 0
      %5811 = vmatprep.mubr.bf16.mxu0 0
      %5812 = vmatmul.mubr.bf16.gmra.mrb[0].mxu0 %v5692
      %v5813 = vpop.f32.mrb[0].mxu0
      %v5814 = vadd.f32 %v5729, %v5813
      %v5815 = vpop.f32.mrb[0].mxu0
      %v5816 = vpop.f32.mrb[0].mxu0
      %v5817 = vadd.f32 %v5729, %v5816
      %v5818 = vpop.f32.mrb[0].mxu0
      %5819 = vmatprep.mubr.bf16.mxu0 0
      %5820 = vmatmul.mubr.bf16.gmra.mrb[0].mxu0 %v5693
      %v5821 = vpop.f32.mrb[0].mxu0
      %v5822 = vadd.f32 %v5729, %v5821
      %v5823 = vpop.f32.mrb[0].mxu0
      %v5824 = vpop.f32.mrb[0].mxu0
      %v5825 = vadd.f32 %v5729, %v5824
      %v5826 = vpop.f32.mrb[0].mxu0
      %5827 = vmatprep.mubr.bf16.mxu0 0
      %5828 = vmatmul.mubr.bf16.gmra.mrb[0].mxu0 %v5694
      %v5829 = vpop.f32.mrb[0].mxu0
      %v5830 = vadd.f32 %v5729, %v5829
      %v5831 = vpop.f32.mrb[0].mxu0
      %v5832 = vpop.f32.mrb[0].mxu0
      %v5833 = vadd.f32 %v5729, %v5832
      %v5834 = vpop.f32.mrb[0].mxu0
      %5835 = vmatprep.mubr.bf16.mxu0 0
      %5836 = vmatmul.mubr.bf16.gmra.mrb[0].mxu0 %v5695
      %v5837 = vpop.f32.mrb[0].mxu0
      %v5838 = vadd.f32 %v5729, %v5837
      %v5839 = vpop.f32.mrb[0].mxu0
      %v5840 = vpop.f32.mrb[0].mxu0
      %v5841 = vadd.f32 %v5729, %v5840
      %v5842 = vpop.f32.mrb[0].mxu0
      %5843 = vmatprep.mubr.bf16.mxu0 0
      %5844 = vmatmul.mubr.bf16.gmra.mrb[0].mxu0 %v5696
      %v5845 = vpop.f32.mrb[0].mxu0
      %v5846 = vadd.f32 %v5729, %v5845
      %v5847 = vpop.f32.mrb[0].mxu0
      %v5848 = vpop.f32.mrb[0].mxu0
      %v5849 = vadd.f32 %v5729, %v5848
      %v5850 = vpop.f32.mrb[0].mxu0
      %5851 = vmatprep.mubr.bf16.mxu0 0
      %5852 = vmatmul.mubr.bf16.gmra.mrb[0].mxu0 %v5697
      %v5853 = vpop.f32.mrb[0].mxu0
      %v5854 = vadd.f32 %v5729, %v5853
      %v5855 = vpop.f32.mrb[0].mxu0
      %v5856 = vpop.f32.mrb[0].mxu0
      %v5857 = vadd.f32 %v5729, %v5856
      %v5858 = vpop.f32.mrb[0].mxu0
      %5859 = vmatprep.mubr.bf16.mxu0 0
      %5860 = vmatmul.mubr.bf16.gmra.mrb[0].mxu0 %v5698
      %v5861 = vpop.f32.mrb[0].mxu0
      %v5862 = vadd.f32 %v5729, %v5861
      %v5863 = vpop.f32.mrb[0].mxu0
      %v5864 = vpop.f32.mrb[0].mxu0
      %v5865 = vadd.f32 %v5729, %v5864
      %v5866 = vpop.f32.mrb[0].mxu0
      %5867 = vmatprep.mubr.bf16.mxu0 0
      %5868 = vmatmul.mubr.bf16.gmra.mrb[0].mxu0 %v5699
      %v5869 = vpop.f32.mrb[0].mxu0
      %v5870 = vadd.f32 %v5729, %v5869
      %v5871 = vpop.f32.mrb[0].mxu0
      %v5872 = vpop.f32.mrb[0].mxu0
      %v5873 = vadd.f32 %v5729, %v5872
      %v5874 = vpop.f32.mrb[0].mxu0
      %5875 = vmatprep.mubr.bf16.mxu0 0
      %5876 = vmatmul.mubr.bf16.gmra.mrb[0].mxu0 %v5700
      %v5877 = vpop.f32.mrb[0].mxu0
      %v5878 = vadd.f32 %v5729, %v5877
      %v5879 = vpop.f32.mrb[0].mxu0
      %v5880 = vpop.f32.mrb[0].mxu0
      %v5881 = vadd.f32 %v5729, %v5880
      %v5882 = vpop.f32.mrb[0].mxu0
      %5883 = vmatprep.mubr.bf16.mxu0 0
      %5884 = vmatmul.mubr.bf16.gmra.mrb[0].mxu0 %v5701
      %v5885 = vpop.f32.mrb[0].mxu0
      %v5886 = vadd.f32 %v5729, %v5885
      %v5887 = vpop.f32.mrb[0].mxu0
      %v5888 = vpop.f32.mrb[0].mxu0
      %v5889 = vadd.f32 %v5729, %v5888
      %v5890 = vpop.f32.mrb[0].mxu0
      %5891 = vmatprep.mubr.bf16.mxu0 0
      %5892 = vmatmul.mubr.bf16.gmra.mrb[0].mxu0 %v5702
      %v5893 = vpop.f32.mrb[0].mxu0
      %v5894 = vadd.f32 %v5729, %v5893
      %v5895 = vpop.f32.mrb[0].mxu0
      %v5896 = vpop.f32.mrb[0].mxu0
      %v5897 = vadd.f32 %v5729, %v5896
      %v5898 = vpop.f32.mrb[0].mxu0
      %5899 = vmatprep.mubr.bf16.mxu0 0
      %5900 = vmatmul.mubr.bf16.gmra.mrb[0].mxu0 %v5703
      %v5901 = vpop.f32.mrb[0].mxu0
      %v5902 = vadd.f32 %v5729, %v5901
      %v5903 = vpop.f32.mrb[0].mxu0
      %v5904 = vpop.f32.mrb[0].mxu0
      %v5905 = vadd.f32 %v5729, %v5904
      %v5906 = vpop.f32.mrb[0].mxu0
      %5907 = vmatprep.mubr.bf16.mxu0 0
      %5908 = vmatmul.mubr.bf16.gmra.mrb[0].mxu0 %v5704
      %v5909 = vpop.f32.mrb[0].mxu0
      %v5910 = vadd.f32 %v5729, %v5909
      %v5911 = vpop.f32.mrb[0].mxu0
      %v5912 = vpop.f32.mrb[0].mxu0
      %v5913 = vadd.f32 %v5729, %v5912
      %v5914 = vpop.f32.mrb[0].mxu0
      %5915 = vmatprep.mubr.bf16.mxu0 0
      %5916 = vmatmul.mubr.bf16.gmra.mrb[0].mxu0 %v5705
      %v5917 = vpop.f32.mrb[0].mxu0
      %v5918 = vadd.f32 %v5729, %v5917
      %v5919 = vpop.f32.mrb[0].mxu0
      %v5920 = vpop.f32.mrb[0].mxu0
      %v5921 = vadd.f32 %v5729, %v5920
      %v5922 = vpop.f32.mrb[0].mxu0
      %5923 = vmatprep.mubr.bf16.mxu0 0
      %5924 = vmatmul.mubr.bf16.gmra.mrb[0].mxu0 %v5706
      %v5925 = vpop.f32.mrb[0].mxu0
      %v5926 = vadd.f32 %v5729, %v5925
      %v5927 = vpop.f32.mrb[0].mxu0
      %v5928 = vpop.f32.mrb[0].mxu0
      %v5929 = vadd.f32 %v5729, %v5928
      %v5930 = vpop.f32.mrb[0].mxu0
      %5931 = vmatprep.mubr.bf16.mxu0 0
      %5932 = vmatmul.mubr.bf16.gmra.mrb[0].mxu0 %v5707
      %v5933 = vpop.f32.mrb[0].mxu0
      %v5934 = vadd.f32 %v5729, %v5933
      %v5935 = vpop.f32.mrb[0].mxu0
      %v5936 = vpop.f32.mrb[0].mxu0
      %v5937 = vadd.f32 %v5729, %v5936
      %v5938 = vpop.f32.mrb[0].mxu0
      %5939 = vdwg.mxu0
      %v5940 = vld [vmem:[%s273] sm:$0xff]
      %v5941 = vld [vmem:[%s273 + $0x8] sm:$0xff]
      %v5942 = vld [vmem:[%s273 + $0x10] sm:$0xff]
      %v5943 = vld [vmem:[%s273 + $0x18] sm:$0xff]
      %v5944 = vld [vmem:[%s273 + $0x20] sm:$0xff]
      %v5945 = vld [vmem:[%s273 + $0x28] sm:$0xff]
      %v5946 = vld [vmem:[%s273 + $0x30] sm:$0xff]
      %v5947 = vld [vmem:[%s273 + $0x38] sm:$0xff]
      %v5948 = vld [vmem:[%s273 + $0x40] sm:$0xff]
      %v5949 = vld [vmem:[%s273 + $0x48] sm:$0xff]
      %v5950 = vld [vmem:[%s273 + $0x50] sm:$0xff]
      %v5951 = vld [vmem:[%s273 + $0x58] sm:$0xff]
      %v5952 = vld [vmem:[%s273 + $0x60] sm:$0xff]
      %v5953 = vld [vmem:[%s273 + $0x68] sm:$0xff]
      %v5954 = vld [vmem:[%s273 + $0x70] sm:$0xff]
      %v5955 = vld [vmem:[%s273 + $0x78] sm:$0xff]
      %v5956 = vld [vmem:[%s273 + $0x80] sm:$0xff]
      %v5957 = vld [vmem:[%s273 + $0x88] sm:$0xff]
      %v5958 = vld [vmem:[%s273 + $0x90] sm:$0xff]
      %v5959 = vld [vmem:[%s273 + $0x98] sm:$0xff]
      %v5960 = vld [vmem:[%s273 + $0xa0] sm:$0xff]
      %v5961 = vld [vmem:[%s273 + $0xa8] sm:$0xff]
      %v5962 = vld [vmem:[%s273 + $0xb0] sm:$0xff]
      %v5963 = vld [vmem:[%s273 + $0xb8] sm:$0xff]
      %v5964 = vld [vmem:[%s273 + $0xc0] sm:$0xff]
      %v5965 = vld [vmem:[%s273 + $0xc8] sm:$0xff]
      %v5966 = vld [vmem:[%s273 + $0xd0] sm:$0xff]
      %v5967 = vld [vmem:[%s273 + $0xd8] sm:$0xff]
      %v5968 = vld [vmem:[%s273 + $0xe0] sm:$0xff]
      %v5969 = vld [vmem:[%s273 + $0xe8] sm:$0xff]
      %v5970 = vld [vmem:[%s273 + $0xf0] sm:$0xff]
      %v5971 = vld [vmem:[%s273 + $0xf8] sm:$0xff]
      %v5972 = vadd.f32 %v5814, %v5940
      %v5973 = vadd.f32 %v5817, %v5941
      %v5974 = vadd.f32 %v5822, %v5942
      %v5975 = vadd.f32 %v5825, %v5943
      %v5976 = vadd.f32 %v5830, %v5944
      %v5977 = vadd.f32 %v5833, %v5945
      %v5978 = vadd.f32 %v5838, %v5946
      %v5979 = vadd.f32 %v5841, %v5947
      %v5980 = vadd.f32 %v5846, %v5948
      %v5981 = vadd.f32 %v5849, %v5949
      %v5982 = vadd.f32 %v5854, %v5950
      %v5983 = vadd.f32 %v5857, %v5951
      %v5984 = vadd.f32 %v5862, %v5952
      %v5985 = vadd.f32 %v5865, %v5953
      %v5986 = vadd.f32 %v5870, %v5954
      %v5987 = vadd.f32 %v5873, %v5955
      %v5988 = vadd.f32 %v5878, %v5956
      %v5989 = vadd.f32 %v5881, %v5957
      %v5990 = vadd.f32 %v5886, %v5958
      %v5991 = vadd.f32 %v5889, %v5959
      %v5992 = vadd.f32 %v5894, %v5960
      %v5993 = vadd.f32 %v5897, %v5961
      %v5994 = vadd.f32 %v5902, %v5962
      %v5995 = vadd.f32 %v5905, %v5963
      %v5996 = vadd.f32 %v5910, %v5964
      %v5997 = vadd.f32 %v5913, %v5965
      %v5998 = vadd.f32 %v5918, %v5966
      %v5999 = vadd.f32 %v5921, %v5967
      %v6000 = vadd.f32 %v5926, %v5968
      %v6001 = vadd.f32 %v5929, %v5969
      %v6002 = vadd.f32 %v5934, %v5970
      %v6003 = vadd.f32 %v5937, %v5971
      %6004 = vst [vmem:[%s278] sm:$0xff] %v5972
      %6005 = vst [vmem:[%s278 + $0x8] sm:$0xff] %v5973
      %6006 = vst [vmem:[%s278 + $0x10] sm:$0xff] %v5974
      %6007 = vst [vmem:[%s278 + $0x18] sm:$0xff] %v5975
      %6008 = vst [vmem:[%s278 + $0x20] sm:$0xff] %v5976
      %6009 = vst [vmem:[%s278 + $0x28] sm:$0xff] %v5977
      %6010 = vst [vmem:[%s278 + $0x30] sm:$0xff] %v5978
      %6011 = vst [vmem:[%s278 + $0x38] sm:$0xff] %v5979
      %6012 = vst [vmem:[%s278 + $0x40] sm:$0xff] %v5980
      %6013 = vst [vmem:[%s278 + $0x48] sm:$0xff] %v5981
      %6014 = vst [vmem:[%s278 + $0x50] sm:$0xff] %v5982
      %6015 = vst [vmem:[%s278 + $0x58] sm:$0xff] %v5983
      %6016 = vst [vmem:[%s278 + $0x60] sm:$0xff] %v5984
      %6017 = vst [vmem:[%s278 + $0x68] sm:$0xff] %v5985
      %6018 = vst [vmem:[%s278 + $0x70] sm:$0xff] %v5986
      %6019 = vst [vmem:[%s278 + $0x78] sm:$0xff] %v5987
      %6020 = vst [vmem:[%s278 + $0x80] sm:$0xff] %v5988
      %6021 = vst [vmem:[%s278 + $0x88] sm:$0xff] %v5989
      %6022 = vst [vmem:[%s278 + $0x90] sm:$0xff] %v5990
      %6023 = vst [vmem:[%s278 + $0x98] sm:$0xff] %v5991
      %6024 = vst [vmem:[%s278 + $0xa0] sm:$0xff] %v5992
      %6025 = vst [vmem:[%s278 + $0xa8] sm:$0xff] %v5993
      %6026 = vst [vmem:[%s278 + $0xb0] sm:$0xff] %v5994
      %6027 = vst [vmem:[%s278 + $0xb8] sm:$0xff] %v5995
      %6028 = vst [vmem:[%s278 + $0xc0] sm:$0xff] %v5996
      %6029 = vst [vmem:[%s278 + $0xc8] sm:$0xff] %v5997
      %6030 = vst [vmem:[%s278 + $0xd0] sm:$0xff] %v5998
      %6031 = vst [vmem:[%s278 + $0xd8] sm:$0xff] %v5999
      %6032 = vst [vmem:[%s278 + $0xe0] sm:$0xff] %v6000
      %6033 = vst [vmem:[%s278 + $0xe8] sm:$0xff] %v6001
      %6034 = vst [vmem:[%s278 + $0xf0] sm:$0xff] %v6002
      %6035 = vst [vmem:[%s278 + $0xf8] sm:$0xff] %v6003
      %p6036 = scmp.lt.s32.totalorder %s18, 1
      %s6037 = scalar_select %p6036, %s18, 1
      %s6038 = smul.addr %s6037, 32
      %s6039 = smul.addr %s6038, 8
      %s6040 = scalar_lea.vmem %s7, %s6039
      // Predicated region
      $region49: #{_forward_one.1} parent=47 // pred_check
        %p6041 = pneg %p188
      $region50: #{_forward_one.1} parent=47 // pred_check_branch
        %6043 = sbr.rel (%p6041) target = $region52
      $region51: #{_forward_one.1} parent=47 // pred_region
        _
      $region52: #{_forward_one.1} parent=47 // pred_fallthru
        _
    $region48: #{_forward_one.1} parent=5 // pred_fallthru
      _
    %p6044 = scmp.le.s32.totalorder 2, %s13
    // Predicated region
    $region53: #{_forward_one.1} parent=5 // pred_check
      %p6045 = pneg %p6044
    $region54: #{_forward_one.1} parent=5 // pred_check_branch
      %6047 = sbr.rel (%p6045) target = $region56
    $region55: #{_forward_one.1} parent=5 // pred_region
      %s6048 = ssub.s32 %s13, 2
      // Predicated region
      $region57: #{_forward_one.1} parent=55 // pred_check
        %p6049 = pneg %p194
      $region58: #{_forward_one.1} parent=55 // pred_check_branch
        %6051 = sbr.rel (%p6049) target = $region60
      $region59: #{_forward_one.1} parent=55 // pred_region
        %p6052 = scmp.lt.s32.totalorder %s19, 1
        %s6053 = scalar_select %p6052, %s19, 1
        %s6054 = smul.addr %s6053, 32
        %s6055 = smul.addr %s6054, 8
        %s6056 = scalar_lea.vmem %s7, %s6055
      $region60: #{_forward_one.1} parent=55 // pred_fallthru
        _
    $region56: #{_forward_one.1} parent=5 // pred_fallthru
      _
  $region6: #{_forward_one.1} parent=0 // loop_footer
    %s17 = sadd.s32 1, %s13
  $region7: #{_forward_one.1} parent=0 // loop_footer_branch
    %12 = sbr.rel target = $region3
  $region8: #{_forward_one.1} parent=0 // loop_exit
    _

</llo_original>
